<compile_context>
chip_gen: v5e
topology: v5e:2x2
jax: 0.10.0
libtpu: 0.0.40
codegen_flags: <defaults>
</compile_context>

<pallas_src>
import functools
import math

import jax
import jax.numpy as jnp
import numpy as np
from jax.experimental import pallas as pl
from jax.experimental.pallas import tpu as pltpu


# ----------------------------- kernel ---------------------------------------


def gru_kernel(x_ref, wih_ref, whh_ref, bx_ref, bhn_ref, wfc_ref, bfc_ref,
               out_ref, xp_ref, *, num_layers, seq_len, batch_pad, hidden):
    L, S, Bp, H = num_layers, seq_len, batch_pad, hidden
    Hg = xp_ref.shape[-1]                       # packed gate slab width (128)

    # Layer-0 input projection for every timestep in ONE MXU matmul.
    # bx already folds b_ih + b_hh for the r/z gates (and the z duplicate).
    xp_ref[...] = jnp.dot(x_ref[...], wih_ref[0],
                          preferred_element_type=jnp.float32) + bx_ref[0]

    # Hoisted broadcasts (JAX does not CSE broadcast_in_dim across unrolled steps).
    bhn_b = [jnp.broadcast_to(bhn_ref[l], (Bp, Hg)) for l in range(L)]
    bx_b = [None] + [jnp.broadcast_to(bx_ref[l], (Bp, Hg)) for l in range(1, L)]

    def sigmoid(v):                             # tanh form: EUP only, no exp/divide
        return 0.5 * jnp.tanh(0.5 * v) + 0.5

    def cell(l, xg, h_prev):
        # Lane layout of the packed slab: [ r | z | n | z ]; hidden state lives on
        # the n block (lanes [2H:3H)).  All other lanes of h_prev carry bounded
        # junk that the zero-padded rows of whh/wih/wfc annihilate exactly.
        hp = jnp.dot(h_prev, whh_ref[l], preferred_element_type=jnp.float32)
        s = sigmoid(xg + hp)                            # r / z valid on their blocks
        r_n = pltpu.roll(s, shift=2 * H, axis=1)        # r -> n block (2H = Hg/2)
        z_n = pltpu.roll(s, shift=H, axis=1)            # z -> n block (either dir.)
        n = jnp.tanh(xg + r_n * (hp + bhn_b[l]))        # valid on n block
        return n + z_n * (h_prev - n)                   # h_t, valid on n block

    # Wavefront over (layer, time): stage s runs layer l at t = s - l; layer l only
    # needs layer l-1's output from the *previous* stage, so the per-layer chains
    # are independent within a stage (ILP) and the critical path is S+L-1 stages.
    h = [jnp.zeros((Bp, Hg), jnp.float32) for _ in range(L)]
    for stage in range(S + L - 1):
        prev = list(h)                                  # snapshot of previous stage
        for l in range(L):
            t = stage - l
            if 0 <= t < S:
                if l == 0:
                    xg = xp_ref[pl.ds(t * Bp, Bp), :]
                else:
                    xg = jnp.dot(prev[l - 1], wih_ref[l],
                                 preferred_element_type=jnp.float32) + bx_b[l]
                h[l] = cell(l, xg, prev[l])

    # Linear head on the last layer's final hidden state (lane-dense 128-wide out).
    out_ref[...] = jnp.dot(h[L - 1], wfc_ref[...],
                           preferred_element_type=jnp.float32) + bfc_ref[...]


# ----------------------------- wrapper ---------------------------------------


def gru_forward(x, params, *, num_layers, hidden, gate_pad, out_pad_dim, batch_pad):
    B, S, in_dim = x.shape
    Bp, Hg, Op = batch_pad, gate_pad, out_pad_dim

    # [B,S,in] -> time-major [S,Bp,Hg] -> [S*Bp,Hg]; features at lanes [0:in_dim).
    xt = jnp.transpose(x, (1, 0, 2))
    xt = jnp.pad(xt, ((0, 0), (0, Bp - B), (0, Hg - in_dim)))
    x2d = xt.reshape(S * Bp, Hg)

    kern = functools.partial(gru_kernel, num_layers=num_layers, seq_len=S,
                             batch_pad=Bp, hidden=hidden)
    return pl.pallas_call(
        kern,
        out_shape=jax.ShapeDtypeStruct((Bp, Op), jnp.float32),
        in_specs=[pl.BlockSpec(memory_space=pltpu.MemorySpace.VMEM)] * 7,
        out_specs=pl.BlockSpec(memory_space=pltpu.MemorySpace.VMEM),
        scratch_shapes=[pltpu.VMEM((S * Bp, Hg), jnp.float32)],   # layer-0 x-proj
    )(x2d, *params)


# ------------------------ parameter preparation ------------------------------


def build_packed_params(pt_params, hidden, output, Hg, Op):
    """PyTorch GRU layout -> packed / pre-transposed / zero-padded layout.

    Packed lane layout (Hg = 128 lanes): columns [r | z | n | z-duplicate], each
    `hidden` wide.  Hidden-state features live on the n block ("n-frame"), so the
    K-rows of whh (all layers), wih (layers >= 1) and wfc sit at rows [2H:3H);
    layer-0's wih K-rows sit at rows [0:input_size).  b_hh for r/z is folded into
    the input-side bias (bx); only the n-gate b_hh stays separate (bhn).
    All padding rows/columns are exactly zero — this is load-bearing.
    """
    H = hidden
    assert 4 * H <= Hg, "gate packing needs 4*hidden <= 128"
    L = len(pt_params['layers'])
    wih = np.zeros((L, Hg, Hg), np.float32)
    whh = np.zeros((L, Hg, Hg), np.float32)
    bx = np.zeros((L, 1, Hg), np.float32)
    bhn = np.zeros((L, 1, Hg), np.float32)
    col_of = {'r': 0, 'z': H, 'n': 2 * H, 'z2': 3 * H}
    for l, (w_ih, w_hh, b_ih, b_hh) in enumerate(pt_params['layers']):
        in_dim = w_ih.shape[1]
        row0 = 0 if l == 0 else 2 * H          # raw x lanes vs n-frame hidden lanes
        for name, g in (('r', 0), ('z', 1), ('n', 2), ('z2', 1)):   # PyTorch r|z|n
            c = col_of[name]
            gs = slice(g * H, (g + 1) * H)
            wih[l, row0:row0 + in_dim, c:c + H] = w_ih[gs, :].T
            whh[l, 2 * H:3 * H, c:c + H] = w_hh[gs, :].T
            if name == 'n':
                bx[l, 0, c:c + H] = b_ih[gs]
                bhn[l, 0, c:c + H] = b_hh[gs]
            else:                               # fold b_hh into bx for r / z / z2
                bx[l, 0, c:c + H] = b_ih[gs] + b_hh[gs]
    wfc = np.zeros((Hg, Op), np.float32)
    wfc[2 * H:3 * H, :output] = pt_params['fc_w'].T
    bfc = np.zeros((1, Op), np.float32)
    bfc[0, :output] = pt_params['fc_b']
    return tuple(jnp.asarray(a) for a in (wih, whh, bx, bhn, wfc, bfc))


# ----------------------------- reference -------------------------------------


def _np_sigmoid(x):
    return 1.0 / (1.0 + np.exp(-x))


def gru_reference(x, pt_params):
    """Pure-numpy PyTorch-semantics GRU + Linear head (eval mode)."""
    B, S, _ = x.shape
    h_in = x.astype(np.float32)
    for (w_ih, w_hh, b_ih, b_hh) in pt_params['layers']:
        H = w_hh.shape[1]
        h = np.zeros((B, H), np.float32)
        outs = np.zeros((B, S, H), np.float32)
        for t in range(S):
            gi = h_in[:, t, :] @ w_ih.T + b_ih
            gh = h @ w_hh.T + b_hh
            r = _np_sigmoid(gi[:, :H] + gh[:, :H])
            z = _np_sigmoid(gi[:, H:2 * H] + gh[:, H:2 * H])
            n = np.tanh(gi[:, 2 * H:] + r * gh[:, 2 * H:])
            h = (1.0 - z) * n + z * h
            outs[:, t, :] = h
        h_in = outs
    return h_in[:, -1, :] @ pt_params['fc_w'].T + pt_params['fc_b']


# ------------------------------- main ----------------------------------------


if __name__ == "__main__":
    config = {'input_size': 8, 'hidden': 32, 'num_layers': 2,
              'dropout': 0.1, 'output': 8}
    B, S = 2, 16
    Hg = 128   # packed gate slab: 4 * hidden = 128 lanes
    Op = 128   # fc output padded to one full lane width (lane-dense store)
    Bp = 8     # batch padded to one sublane tile

    key = jax.random.PRNGKey(0)
    kx, kp = jax.random.split(key)
    x = jax.random.normal(kx, (B, S, config['input_size']), jnp.float32)

    # Parameters in native PyTorch GRU layout (weight_ih_l{k}: [3H, in], gates r|z|n).
    scale = 1.0 / math.sqrt(config['hidden'])
    keys = jax.random.split(kp, 4 * config['num_layers'] + 2)
    layers = []
    for l in range(config['num_layers']):
        in_dim = config['input_size'] if l == 0 else config['hidden']
        k0, k1, k2, k3 = keys[4 * l:4 * l + 4]
        layers.append((
            np.asarray(jax.random.uniform(k0, (3 * config['hidden'], in_dim),
                                          jnp.float32, -scale, scale)),
            np.asarray(jax.random.uniform(k1, (3 * config['hidden'], config['hidden']),
                                          jnp.float32, -scale, scale)),
            np.asarray(jax.random.uniform(k2, (3 * config['hidden'],),
                                          jnp.float32, -scale, scale)),
            np.asarray(jax.random.uniform(k3, (3 * config['hidden'],),
                                          jnp.float32, -scale, scale)),
        ))
    pt_params = {
        'layers': layers,
        'fc_w': np.asarray(jax.random.uniform(keys[-2], (config['output'], config['hidden']),
                                              jnp.float32, -scale, scale)),
        'fc_b': np.asarray(jax.random.uniform(keys[-1], (config['output'],),
                                              jnp.float32, -scale, scale)),
    }
    # NOTE: inter-layer dropout (config['dropout']) is identity in eval mode.

    params = build_packed_params(pt_params, config['hidden'], config['output'], Hg, Op)

    fwd = jax.jit(functools.partial(gru_forward, num_layers=config['num_layers'],
                                    hidden=config['hidden'], gate_pad=Hg,
                                    out_pad_dim=Op, batch_pad=Bp))
    out_pad = jax.block_until_ready(fwd(x, params))
    out = np.asarray(out_pad)[:B, :config['output']]

    ref = gru_reference(np.asarray(x), pt_params)
    assert out.shape == (B, config['output'])
    assert np.all(np.isfinite(out))
    assert np.max(np.abs(out - ref)) < 1e-3, float(np.max(np.abs(out - ref)))
    print("KERNEL_OK")
</pallas_src>

<mosaic_0001>
module attributes {stable_mosaic.version = 11 : i64} {
  func.func @gru_kernel(%arg0: memref<128x128xf32, #tpu.memory_space<vmem>>, %arg1: memref<2x128x128xf32, #tpu.memory_space<vmem>>, %arg2: memref<2x128x128xf32, #tpu.memory_space<vmem>>, %arg3: memref<2x1x128xf32, #tpu.memory_space<vmem>>, %arg4: memref<2x1x128xf32, #tpu.memory_space<vmem>>, %arg5: memref<128x128xf32, #tpu.memory_space<vmem>>, %arg6: memref<1x128xf32, #tpu.memory_space<vmem>>, %arg7: memref<8x128xf32, #tpu.memory_space<vmem>>, %arg8: memref<128x128xf32, #tpu.memory_space<vmem>>) attributes {dimension_semantics = [], scalar_prefetch = 0 : i64, scratch_operands = 1 : i64, tpu.core_type = #tpu.core_type<tc>} {
    %c0 = arith.constant 0 : index
    %c0_0 = arith.constant 0 : index
    %0 = vector.load %arg0[%c0, %c0_0] : memref<128x128xf32, #tpu.memory_space<vmem>>, vector<128x128xf32>
    %c0_1 = arith.constant 0 : index
    %c0_2 = arith.constant 0 : index
    %c0_3 = arith.constant 0 : index
    %1 = vector.load %arg1[%c0_1, %c0_2, %c0_3] : memref<2x128x128xf32, #tpu.memory_space<vmem>>, vector<1x128x128xf32>
    %2 = vector.shape_cast %1 : vector<1x128x128xf32> to vector<128x128xf32>
    %cst = arith.constant dense<0.000000e+00> : vector<128x128xf32>
    %3 = tpu.matmul %0, %2, %cst {dimension_numbers = #tpu.dot_dimension_numbers<[1], [0], [0], [1], [0, 0, 1, 1], [], []>} : vector<128x128xf32>, vector<128x128xf32>, vector<128x128xf32> -> vector<128x128xf32>
    %c0_4 = arith.constant 0 : index
    %c0_5 = arith.constant 0 : index
    %c0_6 = arith.constant 0 : index
    %4 = vector.load %arg3[%c0_4, %c0_5, %c0_6] : memref<2x1x128xf32, #tpu.memory_space<vmem>>, vector<1x1x128xf32>
    %5 = vector.shape_cast %4 : vector<1x1x128xf32> to vector<1x128xf32>
    %6 = vector.broadcast %5 : vector<1x128xf32> to vector<128x128xf32>
    %7 = arith.addf %3, %6 : vector<128x128xf32>
    %c0_7 = arith.constant 0 : index
    %c0_8 = arith.constant 0 : index
    %8 = vector.load %arg8[%c0_7, %c0_8] : memref<128x128xf32, #tpu.memory_space<vmem>>, vector<128x128xf32>
    tpu.vector_store %arg8[%c0_7, %c0_8], %7 {strides = array<i32>} : memref<128x128xf32, #tpu.memory_space<vmem>>, vector<128x128xf32>,
    %c0_9 = arith.constant 0 : index
    %c0_10 = arith.constant 0 : index
    %c0_11 = arith.constant 0 : index
    %9 = vector.load %arg4[%c0_9, %c0_10, %c0_11] : memref<2x1x128xf32, #tpu.memory_space<vmem>>, vector<1x1x128xf32>
    %10 = vector.shape_cast %9 : vector<1x1x128xf32> to vector<1x128xf32>
    %11 = vector.shape_cast %10 : vector<1x128xf32> to vector<1x128xf32>
    %12 = vector.broadcast %11 : vector<1x128xf32> to vector<8x128xf32>
    %c1 = arith.constant 1 : index
    %c0_12 = arith.constant 0 : index
    %c0_13 = arith.constant 0 : index
    %13 = vector.load %arg4[%c1, %c0_12, %c0_13] : memref<2x1x128xf32, #tpu.memory_space<vmem>>, vector<1x1x128xf32>
    %14 = vector.shape_cast %13 : vector<1x1x128xf32> to vector<1x128xf32>
    %15 = vector.shape_cast %14 : vector<1x128xf32> to vector<1x128xf32>
    %16 = vector.broadcast %15 : vector<1x128xf32> to vector<8x128xf32>
    %c1_14 = arith.constant 1 : index
    %c0_15 = arith.constant 0 : index
    %c0_16 = arith.constant 0 : index
    %17 = vector.load %arg3[%c1_14, %c0_15, %c0_16] : memref<2x1x128xf32, #tpu.memory_space<vmem>>, vector<1x1x128xf32>
    %18 = vector.shape_cast %17 : vector<1x1x128xf32> to vector<1x128xf32>
    %19 = vector.shape_cast %18 : vector<1x128xf32> to vector<1x128xf32>
    %20 = vector.broadcast %19 : vector<1x128xf32> to vector<8x128xf32>
    %cst_17 = arith.constant 0.000000e+00 : f32
    %21 = vector.broadcast %cst_17 : f32 to vector<8x128xf32>
    %cst_18 = arith.constant 0.000000e+00 : f32
    %22 = vector.broadcast %cst_18 : f32 to vector<8x128xf32>
    %c0_19 = arith.constant 0 : index
    %c0_20 = arith.constant 0 : index
    %23 = vector.load %arg8[%c0_19, %c0_20] : memref<128x128xf32, #tpu.memory_space<vmem>>, vector<8x128xf32>
    %c0_21 = arith.constant 0 : index
    %c0_22 = arith.constant 0 : index
    %c0_23 = arith.constant 0 : index
    %24 = vector.load %arg2[%c0_21, %c0_22, %c0_23] : memref<2x128x128xf32, #tpu.memory_space<vmem>>, vector<1x128x128xf32>
    %25 = vector.shape_cast %24 : vector<1x128x128xf32> to vector<128x128xf32>
    %cst_24 = arith.constant dense<0.000000e+00> : vector<8x128xf32>
    %26 = tpu.matmul %21, %25, %cst_24 {dimension_numbers = #tpu.dot_dimension_numbers<[1], [0], [0], [1], [0, 0, 1, 1], [], []>} : vector<8x128xf32>, vector<128x128xf32>, vector<8x128xf32> -> vector<8x128xf32>
    %27 = arith.addf %23, %26 : vector<8x128xf32>
    %cst_25 = arith.constant 5.000000e-01 : f32
    %28 = vector.broadcast %cst_25 : f32 to vector<8x128xf32>
    %29 = arith.mulf %28, %27 : vector<8x128xf32>
    %30 = math.tanh %29 : vector<8x128xf32>
    %cst_26 = arith.constant 5.000000e-01 : f32
    %31 = vector.broadcast %cst_26 : f32 to vector<8x128xf32>
    %32 = arith.mulf %31, %30 : vector<8x128xf32>
    %cst_27 = arith.constant 5.000000e-01 : f32
    %33 = vector.broadcast %cst_27 : f32 to vector<8x128xf32>
    %34 = arith.addf %32, %33 : vector<8x128xf32>
    %c64_i32 = arith.constant 64 : i32
    %35 = tpu.dynamic_rotate %34 by %c64_i32 dim 1 : vector<8x128xf32>, i32 -> vector<8x128xf32>
    %c32_i32 = arith.constant 32 : i32
    %36 = tpu.dynamic_rotate %34 by %c32_i32 dim 1 : vector<8x128xf32>, i32 -> vector<8x128xf32>
    %37 = arith.addf %26, %12 : vector<8x128xf32>
    %38 = arith.mulf %35, %37 : vector<8x128xf32>
    %39 = arith.addf %23, %38 : vector<8x128xf32>
    %40 = math.tanh %39 : vector<8x128xf32>
    %41 = arith.subf %21, %40 : vector<8x128xf32>
    %42 = arith.mulf %36, %41 : vector<8x128xf32>
    %43 = arith.addf %40, %42 : vector<8x128xf32>
    %c8 = arith.constant 8 : index
    %c0_28 = arith.constant 0 : index
    %44 = vector.load %arg8[%c8, %c0_28] : memref<128x128xf32, #tpu.memory_space<vmem>>, vector<8x128xf32>
    %c0_29 = arith.constant 0 : index
    %c0_30 = arith.constant 0 : index
    %c0_31 = arith.constant 0 : index
    %45 = vector.load %arg2[%c0_29, %c0_30, %c0_31] : memref<2x128x128xf32, #tpu.memory_space<vmem>>, vector<1x128x128xf32>
    %46 = vector.shape_cast %45 : vector<1x128x128xf32> to vector<128x128xf32>
    %cst_32 = arith.constant dense<0.000000e+00> : vector<8x128xf32>
    %47 = tpu.matmul %43, %46, %cst_32 {dimension_numbers = #tpu.dot_dimension_numbers<[1], [0], [0], [1], [0, 0, 1, 1], [], []>} : vector<8x128xf32>, vector<128x128xf32>, vector<8x128xf32> -> vector<8x128xf32>
    %48 = arith.addf %44, %47 : vector<8x128xf32>
    %cst_33 = arith.constant 5.000000e-01 : f32
    %49 = vector.broadcast %cst_33 : f32 to vector<8x128xf32>
    %50 = arith.mulf %49, %48 : vector<8x128xf32>
    %51 = math.tanh %50 : vector<8x128xf32>
    %cst_34 = arith.constant 5.000000e-01 : f32
    %52 = vector.broadcast %cst_34 : f32 to vector<8x128xf32>
    %53 = arith.mulf %52, %51 : vector<8x128xf32>
    %cst_35 = arith.constant 5.000000e-01 : f32
    %54 = vector.broadcast %cst_35 : f32 to vector<8x128xf32>
    %55 = arith.addf %53, %54 : vector<8x128xf32>
    %c64_i32_36 = arith.constant 64 : i32
    %56 = tpu.dynamic_rotate %55 by %c64_i32_36 dim 1 : vector<8x128xf32>, i32 -> vector<8x128xf32>
    %c32_i32_37 = arith.constant 32 : i32
    %57 = tpu.dynamic_rotate %55 by %c32_i32_37 dim 1 : vector<8x128xf32>, i32 -> vector<8x128xf32>
    %58 = arith.addf %47, %12 : vector<8x128xf32>
    %59 = arith.mulf %56, %58 : vector<8x128xf32>
    %60 = arith.addf %44, %59 : vector<8x128xf32>
    %61 = math.tanh %60 : vector<8x128xf32>
    %62 = arith.subf %43, %61 : vector<8x128xf32>
    %63 = arith.mulf %57, %62 : vector<8x128xf32>
    %64 = arith.addf %61, %63 : vector<8x128xf32>
    %c1_38 = arith.constant 1 : index
    %c0_39 = arith.constant 0 : index
    %c0_40 = arith.constant 0 : index
    %65 = vector.load %arg1[%c1_38, %c0_39, %c0_40] : memref<2x128x128xf32, #tpu.memory_space<vmem>>, vector<1x128x128xf32>
    %66 = vector.shape_cast %65 : vector<1x128x128xf32> to vector<128x128xf32>
    %cst_41 = arith.constant dense<0.000000e+00> : vector<8x128xf32>
    %67 = tpu.matmul %43, %66, %cst_41 {dimension_numbers = #tpu.dot_dimension_numbers<[1], [0], [0], [1], [0, 0, 1, 1], [], []>} : vector<8x128xf32>, vector<128x128xf32>, vector<8x128xf32> -> vector<8x128xf32>
    %68 = arith.addf %67, %20 : vector<8x128xf32>
    %c1_42 = arith.constant 1 : index
    %c0_43 = arith.constant 0 : index
    %c0_44 = arith.constant 0 : index
    %69 = vector.load %arg2[%c1_42, %c0_43, %c0_44] : memref<2x128x128xf32, #tpu.memory_space<vmem>>, vector<1x128x128xf32>
    %70 = vector.shape_cast %69 : vector<1x128x128xf32> to vector<128x128xf32>
    %cst_45 = arith.constant dense<0.000000e+00> : vector<8x128xf32>
    %71 = tpu.matmul %22, %70, %cst_45 {dimension_numbers = #tpu.dot_dimension_numbers<[1], [0], [0], [1], [0, 0, 1, 1], [], []>} : vector<8x128xf32>, vector<128x128xf32>, vector<8x128xf32> -> vector<8x128xf32>
    %72 = arith.addf %68, %71 : vector<8x128xf32>
    %cst_46 = arith.constant 5.000000e-01 : f32
    %73 = vector.broadcast %cst_46 : f32 to vector<8x128xf32>
    %74 = arith.mulf %73, %72 : vector<8x128xf32>
    %75 = math.tanh %74 : vector<8x128xf32>
    %cst_47 = arith.constant 5.000000e-01 : f32
    %76 = vector.broadcast %cst_47 : f32 to vector<8x128xf32>
    %77 = arith.mulf %76, %75 : vector<8x128xf32>
    %cst_48 = arith.constant 5.000000e-01 : f32
    %78 = vector.broadcast %cst_48 : f32 to vector<8x128xf32>
    %79 = arith.addf %77, %78 : vector<8x128xf32>
    %c64_i32_49 = arith.constant 64 : i32
    %80 = tpu.dynamic_rotate %79 by %c64_i32_49 dim 1 : vector<8x128xf32>, i32 -> vector<8x128xf32>
    %c32_i32_50 = arith.constant 32 : i32
    %81 = tpu.dynamic_rotate %79 by %c32_i32_50 dim 1 : vector<8x128xf32>, i32 -> vector<8x128xf32>
    %82 = arith.addf %71, %16 : vector<8x128xf32>
    %83 = arith.mulf %80, %82 : vector<8x128xf32>
    %84 = arith.addf %68, %83 : vector<8x128xf32>
    %85 = math.tanh %84 : vector<8x128xf32>
    %86 = arith.subf %22, %85 : vector<8x128xf32>
    %87 = arith.mulf %81, %86 : vector<8x128xf32>
    %88 = arith.addf %85, %87 : vector<8x128xf32>
    %c16 = arith.constant 16 : index
    %c0_51 = arith.constant 0 : index
    %89 = vector.load %arg8[%c16, %c0_51] : memref<128x128xf32, #tpu.memory_space<vmem>>, vector<8x128xf32>
    %c0_52 = arith.constant 0 : index
    %c0_53 = arith.constant 0 : index
    %c0_54 = arith.constant 0 : index
    %90 = vector.load %arg2[%c0_52, %c0_53, %c0_54] : memref<2x128x128xf32, #tpu.memory_space<vmem>>, vector<1x128x128xf32>
    %91 = vector.shape_cast %90 : vector<1x128x128xf32> to vector<128x128xf32>
    %cst_55 = arith.constant dense<0.000000e+00> : vector<8x128xf32>
    %92 = tpu.matmul %64, %91, %cst_55 {dimension_numbers = #tpu.dot_dimension_numbers<[1], [0], [0], [1], [0, 0, 1, 1], [], []>} : vector<8x128xf32>, vector<128x128xf32>, vector<8x128xf32> -> vector<8x128xf32>
    %93 = arith.addf %89, %92 : vector<8x128xf32>
    %cst_56 = arith.constant 5.000000e-01 : f32
    %94 = vector.broadcast %cst_56 : f32 to vector<8x128xf32>
    %95 = arith.mulf %94, %93 : vector<8x128xf32>
    %96 = math.tanh %95 : vector<8x128xf32>
    %cst_57 = arith.constant 5.000000e-01 : f32
    %97 = vector.broadcast %cst_57 : f32 to vector<8x128xf32>
    %98 = arith.mulf %97, %96 : vector<8x128xf32>
    %cst_58 = arith.constant 5.000000e-01 : f32
    %99 = vector.broadcast %cst_58 : f32 to vector<8x128xf32>
    %100 = arith.addf %98, %99 : vector<8x128xf32>
    %c64_i32_59 = arith.constant 64 : i32
    %101 = tpu.dynamic_rotate %100 by %c64_i32_59 dim 1 : vector<8x128xf32>, i32 -> vector<8x128xf32>
    %c32_i32_60 = arith.constant 32 : i32
    %102 = tpu.dynamic_rotate %100 by %c32_i32_60 dim 1 : vector<8x128xf32>, i32 -> vector<8x128xf32>
    %103 = arith.addf %92, %12 : vector<8x128xf32>
    %104 = arith.mulf %101, %103 : vector<8x128xf32>
    %105 = arith.addf %89, %104 : vector<8x128xf32>
    %106 = math.tanh %105 : vector<8x128xf32>
    %107 = arith.subf %64, %106 : vector<8x128xf32>
    %108 = arith.mulf %102, %107 : vector<8x128xf32>
    %109 = arith.addf %106, %108 : vector<8x128xf32>
    %c1_61 = arith.constant 1 : index
    %c0_62 = arith.constant 0 : index
    %c0_63 = arith.constant 0 : index
    %110 = vector.load %arg1[%c1_61, %c0_62, %c0_63] : memref<2x128x128xf32, #tpu.memory_space<vmem>>, vector<1x128x128xf32>
    %111 = vector.shape_cast %110 : vector<1x128x128xf32> to vector<128x128xf32>
    %cst_64 = arith.constant dense<0.000000e+00> : vector<8x128xf32>
    %112 = tpu.matmul %64, %111, %cst_64 {dimension_numbers = #tpu.dot_dimension_numbers<[1], [0], [0], [1], [0, 0, 1, 1], [], []>} : vector<8x128xf32>, vector<128x128xf32>, vector<8x128xf32> -> vector<8x128xf32>
    %113 = arith.addf %112, %20 : vector<8x128xf32>
    %c1_65 = arith.constant 1 : index
    %c0_66 = arith.constant 0 : index
    %c0_67 = arith.constant 0 : index
    %114 = vector.load %arg2[%c1_65, %c0_66, %c0_67] : memref<2x128x128xf32, #tpu.memory_space<vmem>>, vector<1x128x128xf32>
    %115 = vector.shape_cast %114 : vector<1x128x128xf32> to vector<128x128xf32>
    %cst_68 = arith.constant dense<0.000000e+00> : vector<8x128xf32>
    %116 = tpu.matmul %88, %115, %cst_68 {dimension_numbers = #tpu.dot_dimension_numbers<[1], [0], [0], [1], [0, 0, 1, 1], [], []>} : vector<8x128xf32>, vector<128x128xf32>, vector<8x128xf32> -> vector<8x128xf32>
    %117 = arith.addf %113, %116 : vector<8x128xf32>
    %cst_69 = arith.constant 5.000000e-01 : f32
    %118 = vector.broadcast %cst_69 : f32 to vector<8x128xf32>
    %119 = arith.mulf %118, %117 : vector<8x128xf32>
    %120 = math.tanh %119 : vector<8x128xf32>
    %cst_70 = arith.constant 5.000000e-01 : f32
    %121 = vector.broadcast %cst_70 : f32 to vector<8x128xf32>
    %122 = arith.mulf %121, %120 : vector<8x128xf32>
    %cst_71 = arith.constant 5.000000e-01 : f32
    %123 = vector.broadcast %cst_71 : f32 to vector<8x128xf32>
    %124 = arith.addf %122, %123 : vector<8x128xf32>
    %c64_i32_72 = arith.constant 64 : i32
    %125 = tpu.dynamic_rotate %124 by %c64_i32_72 dim 1 : vector<8x128xf32>, i32 -> vector<8x128xf32>
    %c32_i32_73 = arith.constant 32 : i32
    %126 = tpu.dynamic_rotate %124 by %c32_i32_73 dim 1 : vector<8x128xf32>, i32 -> vector<8x128xf32>
    %127 = arith.addf %116, %16 : vector<8x128xf32>
    %128 = arith.mulf %125, %127 : vector<8x128xf32>
    %129 = arith.addf %113, %128 : vector<8x128xf32>
    %130 = math.tanh %129 : vector<8x128xf32>
    %131 = arith.subf %88, %130 : vector<8x128xf32>
    %132 = arith.mulf %126, %131 : vector<8x128xf32>
    %133 = arith.addf %130, %132 : vector<8x128xf32>
    %c24 = arith.constant 24 : index
    %c0_74 = arith.constant 0 : index
    %134 = vector.load %arg8[%c24, %c0_74] : memref<128x128xf32, #tpu.memory_space<vmem>>, vector<8x128xf32>
    %c0_75 = arith.constant 0 : index
    %c0_76 = arith.constant 0 : index
    %c0_77 = arith.constant 0 : index
    %135 = vector.load %arg2[%c0_75, %c0_76, %c0_77] : memref<2x128x128xf32, #tpu.memory_space<vmem>>, vector<1x128x128xf32>
    %136 = vector.shape_cast %135 : vector<1x128x128xf32> to vector<128x128xf32>
    %cst_78 = arith.constant dense<0.000000e+00> : vector<8x128xf32>
    %137 = tpu.matmul %109, %136, %cst_78 {dimension_numbers = #tpu.dot_dimension_numbers<[1], [0], [0], [1], [0, 0, 1, 1], [], []>} : vector<8x128xf32>, vector<128x128xf32>, vector<8x128xf32> -> vector<8x128xf32>
    %138 = arith.addf %134, %137 : vector<8x128xf32>
    %cst_79 = arith.constant 5.000000e-01 : f32
    %139 = vector.broadcast %cst_79 : f32 to vector<8x128xf32>
    %140 = arith.mulf %139, %138 : vector<8x128xf32>
    %141 = math.tanh %140 : vector<8x128xf32>
    %cst_80 = arith.constant 5.000000e-01 : f32
    %142 = vector.broadcast %cst_80 : f32 to vector<8x128xf32>
    %143 = arith.mulf %142, %141 : vector<8x128xf32>
    %cst_81 = arith.constant 5.000000e-01 : f32
    %144 = vector.broadcast %cst_81 : f32 to vector<8x128xf32>
    %145 = arith.addf %143, %144 : vector<8x128xf32>
    %c64_i32_82 = arith.constant 64 : i32
    %146 = tpu.dynamic_rotate %145 by %c64_i32_82 dim 1 : vector<8x128xf32>, i32 -> vector<8x128xf32>
    %c32_i32_83 = arith.constant 32 : i32
    %147 = tpu.dynamic_rotate %145 by %c32_i32_83 dim 1 : vector<8x128xf32>, i32 -> vector<8x128xf32>
    %148 = arith.addf %137, %12 : vector<8x128xf32>
    %149 = arith.mulf %146, %148 : vector<8x128xf32>
    %150 = arith.addf %134, %149 : vector<8x128xf32>
    %151 = math.tanh %150 : vector<8x128xf32>
    %152 = arith.subf %109, %151 : vector<8x128xf32>
    %153 = arith.mulf %147, %152 : vector<8x128xf32>
    %154 = arith.addf %151, %153 : vector<8x128xf32>
    %c1_84 = arith.constant 1 : index
    %c0_85 = arith.constant 0 : index
    %c0_86 = arith.constant 0 : index
    %155 = vector.load %arg1[%c1_84, %c0_85, %c0_86] : memref<2x128x128xf32, #tpu.memory_space<vmem>>, vector<1x128x128xf32>
    %156 = vector.shape_cast %155 : vector<1x128x128xf32> to vector<128x128xf32>
    %cst_87 = arith.constant dense<0.000000e+00> : vector<8x128xf32>
    %157 = tpu.matmul %109, %156, %cst_87 {dimension_numbers = #tpu.dot_dimension_numbers<[1], [0], [0], [1], [0, 0, 1, 1], [], []>} : vector<8x128xf32>, vector<128x128xf32>, vector<8x128xf32> -> vector<8x128xf32>
    %158 = arith.addf %157, %20 : vector<8x128xf32>
    %c1_88 = arith.constant 1 : index
    %c0_89 = arith.constant 0 : index
    %c0_90 = arith.constant 0 : index
    %159 = vector.load %arg2[%c1_88, %c0_89, %c0_90] : memref<2x128x128xf32, #tpu.memory_space<vmem>>, vector<1x128x128xf32>
    %160 = vector.shape_cast %159 : vector<1x128x128xf32> to vector<128x128xf32>
    %cst_91 = arith.constant dense<0.000000e+00> : vector<8x128xf32>
    %161 = tpu.matmul %133, %160, %cst_91 {dimension_numbers = #tpu.dot_dimension_numbers<[1], [0], [0], [1], [0, 0, 1, 1], [], []>} : vector<8x128xf32>, vector<128x128xf32>, vector<8x128xf32> -> vector<8x128xf32>
    %162 = arith.addf %158, %161 : vector<8x128xf32>
    %cst_92 = arith.constant 5.000000e-01 : f32
    %163 = vector.broadcast %cst_92 : f32 to vector<8x128xf32>
    %164 = arith.mulf %163, %162 : vector<8x128xf32>
    %165 = math.tanh %164 : vector<8x128xf32>
    %cst_93 = arith.constant 5.000000e-01 : f32
    %166 = vector.broadcast %cst_93 : f32 to vector<8x128xf32>
    %167 = arith.mulf %166, %165 : vector<8x128xf32>
    %cst_94 = arith.constant 5.000000e-01 : f32
    %168 = vector.broadcast %cst_94 : f32 to vector<8x128xf32>
    %169 = arith.addf %167, %168 : vector<8x128xf32>
    %c64_i32_95 = arith.constant 64 : i32
    %170 = tpu.dynamic_rotate %169 by %c64_i32_95 dim 1 : vector<8x128xf32>, i32 -> vector<8x128xf32>
    %c32_i32_96 = arith.constant 32 : i32
    %171 = tpu.dynamic_rotate %169 by %c32_i32_96 dim 1 : vector<8x128xf32>, i32 -> vector<8x128xf32>
    %172 = arith.addf %161, %16 : vector<8x128xf32>
    %173 = arith.mulf %170, %172 : vector<8x128xf32>
    %174 = arith.addf %158, %173 : vector<8x128xf32>
    %175 = math.tanh %174 : vector<8x128xf32>
    %176 = arith.subf %133, %175 : vector<8x128xf32>
    %177 = arith.mulf %171, %176 : vector<8x128xf32>
    %178 = arith.addf %175, %177 : vector<8x128xf32>
    %c32 = arith.constant 32 : index
    %c0_97 = arith.constant 0 : index
    %179 = vector.load %arg8[%c32, %c0_97] : memref<128x128xf32, #tpu.memory_space<vmem>>, vector<8x128xf32>
    %c0_98 = arith.constant 0 : index
    %c0_99 = arith.constant 0 : index
    %c0_100 = arith.constant 0 : index
    %180 = vector.load %arg2[%c0_98, %c0_99, %c0_100] : memref<2x128x128xf32, #tpu.memory_space<vmem>>, vector<1x128x128xf32>
    %181 = vector.shape_cast %180 : vector<1x128x128xf32> to vector<128x128xf32>
    %cst_101 = arith.constant dense<0.000000e+00> : vector<8x128xf32>
    %182 = tpu.matmul %154, %181, %cst_101 {dimension_numbers = #tpu.dot_dimension_numbers<[1], [0], [0], [1], [0, 0, 1, 1], [], []>} : vector<8x128xf32>, vector<128x128xf32>, vector<8x128xf32> -> vector<8x128xf32>
    %183 = arith.addf %179, %182 : vector<8x128xf32>
    %cst_102 = arith.constant 5.000000e-01 : f32
    %184 = vector.broadcast %cst_102 : f32 to vector<8x128xf32>
    %185 = arith.mulf %184, %183 : vector<8x128xf32>
    %186 = math.tanh %185 : vector<8x128xf32>
    %cst_103 = arith.constant 5.000000e-01 : f32
    %187 = vector.broadcast %cst_103 : f32 to vector<8x128xf32>
    %188 = arith.mulf %187, %186 : vector<8x128xf32>
    %cst_104 = arith.constant 5.000000e-01 : f32
    %189 = vector.broadcast %cst_104 : f32 to vector<8x128xf32>
    %190 = arith.addf %188, %189 : vector<8x128xf32>
    %c64_i32_105 = arith.constant 64 : i32
    %191 = tpu.dynamic_rotate %190 by %c64_i32_105 dim 1 : vector<8x128xf32>, i32 -> vector<8x128xf32>
    %c32_i32_106 = arith.constant 32 : i32
    %192 = tpu.dynamic_rotate %190 by %c32_i32_106 dim 1 : vector<8x128xf32>, i32 -> vector<8x128xf32>
    %193 = arith.addf %182, %12 : vector<8x128xf32>
    %194 = arith.mulf %191, %193 : vector<8x128xf32>
    %195 = arith.addf %179, %194 : vector<8x128xf32>
    %196 = math.tanh %195 : vector<8x128xf32>
    %197 = arith.subf %154, %196 : vector<8x128xf32>
    %198 = arith.mulf %192, %197 : vector<8x128xf32>
    %199 = arith.addf %196, %198 : vector<8x128xf32>
    %c1_107 = arith.constant 1 : index
    %c0_108 = arith.constant 0 : index
    %c0_109 = arith.constant 0 : index
    %200 = vector.load %arg1[%c1_107, %c0_108, %c0_109] : memref<2x128x128xf32, #tpu.memory_space<vmem>>, vector<1x128x128xf32>
    %201 = vector.shape_cast %200 : vector<1x128x128xf32> to vector<128x128xf32>
    %cst_110 = arith.constant dense<0.000000e+00> : vector<8x128xf32>
    %202 = tpu.matmul %154, %201, %cst_110 {dimension_numbers = #tpu.dot_dimension_numbers<[1], [0], [0], [1], [0, 0, 1, 1], [], []>} : vector<8x128xf32>, vector<128x128xf32>, vector<8x128xf32> -> vector<8x128xf32>
    %203 = arith.addf %202, %20 : vector<8x128xf32>
    %c1_111 = arith.constant 1 : index
    %c0_112 = arith.constant 0 : index
    %c0_113 = arith.constant 0 : index
    %204 = vector.load %arg2[%c1_111, %c0_112, %c0_113] : memref<2x128x128xf32, #tpu.memory_space<vmem>>, vector<1x128x128xf32>
    %205 = vector.shape_cast %204 : vector<1x128x128xf32> to vector<128x128xf32>
    %cst_114 = arith.constant dense<0.000000e+00> : vector<8x128xf32>
    %206 = tpu.matmul %178, %205, %cst_114 {dimension_numbers = #tpu.dot_dimension_numbers<[1], [0], [0], [1], [0, 0, 1, 1], [], []>} : vector<8x128xf32>, vector<128x128xf32>, vector<8x128xf32> -> vector<8x128xf32>
    %207 = arith.addf %203, %206 : vector<8x128xf32>
    %cst_115 = arith.constant 5.000000e-01 : f32
    %208 = vector.broadcast %cst_115 : f32 to vector<8x128xf32>
    %209 = arith.mulf %208, %207 : vector<8x128xf32>
    %210 = math.tanh %209 : vector<8x128xf32>
    %cst_116 = arith.constant 5.000000e-01 : f32
    %211 = vector.broadcast %cst_116 : f32 to vector<8x128xf32>
    %212 = arith.mulf %211, %210 : vector<8x128xf32>
    %cst_117 = arith.constant 5.000000e-01 : f32
    %213 = vector.broadcast %cst_117 : f32 to vector<8x128xf32>
    %214 = arith.addf %212, %213 : vector<8x128xf32>
    %c64_i32_118 = arith.constant 64 : i32
    %215 = tpu.dynamic_rotate %214 by %c64_i32_118 dim 1 : vector<8x128xf32>, i32 -> vector<8x128xf32>
    %c32_i32_119 = arith.constant 32 : i32
    %216 = tpu.dynamic_rotate %214 by %c32_i32_119 dim 1 : vector<8x128xf32>, i32 -> vector<8x128xf32>
    %217 = arith.addf %206, %16 : vector<8x128xf32>
    %218 = arith.mulf %215, %217 : vector<8x128xf32>
    %219 = arith.addf %203, %218 : vector<8x128xf32>
    %220 = math.tanh %219 : vector<8x128xf32>
    %221 = arith.subf %178, %220 : vector<8x128xf32>
    %222 = arith.mulf %216, %221 : vector<8x128xf32>
    %223 = arith.addf %220, %222 : vector<8x128xf32>
    %c40 = arith.constant 40 : index
    %c0_120 = arith.constant 0 : index
    %224 = vector.load %arg8[%c40, %c0_120] : memref<128x128xf32, #tpu.memory_space<vmem>>, vector<8x128xf32>
    %c0_121 = arith.constant 0 : index
    %c0_122 = arith.constant 0 : index
    %c0_123 = arith.constant 0 : index
    %225 = vector.load %arg2[%c0_121, %c0_122, %c0_123] : memref<2x128x128xf32, #tpu.memory_space<vmem>>, vector<1x128x128xf32>
    %226 = vector.shape_cast %225 : vector<1x128x128xf32> to vector<128x128xf32>
    %cst_124 = arith.constant dense<0.000000e+00> : vector<8x128xf32>
    %227 = tpu.matmul %199, %226, %cst_124 {dimension_numbers = #tpu.dot_dimension_numbers<[1], [0], [0], [1], [0, 0, 1, 1], [], []>} : vector<8x128xf32>, vector<128x128xf32>, vector<8x128xf32> -> vector<8x128xf32>
    %228 = arith.addf %224, %227 : vector<8x128xf32>
    %cst_125 = arith.constant 5.000000e-01 : f32
    %229 = vector.broadcast %cst_125 : f32 to vector<8x128xf32>
    %230 = arith.mulf %229, %228 : vector<8x128xf32>
    %231 = math.tanh %230 : vector<8x128xf32>
    %cst_126 = arith.constant 5.000000e-01 : f32
    %232 = vector.broadcast %cst_126 : f32 to vector<8x128xf32>
    %233 = arith.mulf %232, %231 : vector<8x128xf32>
    %cst_127 = arith.constant 5.000000e-01 : f32
    %234 = vector.broadcast %cst_127 : f32 to vector<8x128xf32>
    %235 = arith.addf %233, %234 : vector<8x128xf32>
    %c64_i32_128 = arith.constant 64 : i32
    %236 = tpu.dynamic_rotate %235 by %c64_i32_128 dim 1 : vector<8x128xf32>, i32 -> vector<8x128xf32>
    %c32_i32_129 = arith.constant 32 : i32
    %237 = tpu.dynamic_rotate %235 by %c32_i32_129 dim 1 : vector<8x128xf32>, i32 -> vector<8x128xf32>
    %238 = arith.addf %227, %12 : vector<8x128xf32>
    %239 = arith.mulf %236, %238 : vector<8x128xf32>
    %240 = arith.addf %224, %239 : vector<8x128xf32>
    %241 = math.tanh %240 : vector<8x128xf32>
    %242 = arith.subf %199, %241 : vector<8x128xf32>
    %243 = arith.mulf %237, %242 : vector<8x128xf32>
    %244 = arith.addf %241, %243 : vector<8x128xf32>
    %c1_130 = arith.constant 1 : index
    %c0_131 = arith.constant 0 : index
    %c0_132 = arith.constant 0 : index
    %245 = vector.load %arg1[%c1_130, %c0_131, %c0_132] : memref<2x128x128xf32, #tpu.memory_space<vmem>>, vector<1x128x128xf32>
    %246 = vector.shape_cast %245 : vector<1x128x128xf32> to vector<128x128xf32>
    %cst_133 = arith.constant dense<0.000000e+00> : vector<8x128xf32>
    %247 = tpu.matmul %199, %246, %cst_133 {dimension_numbers = #tpu.dot_dimension_numbers<[1], [0], [0], [1], [0, 0, 1, 1], [], []>} : vector<8x128xf32>, vector<128x128xf32>, vector<8x128xf32> -> vector<8x128xf32>
    %248 = arith.addf %247, %20 : vector<8x128xf32>
    %c1_134 = arith.constant 1 : index
    %c0_135 = arith.constant 0 : index
    %c0_136 = arith.constant 0 : index
    %249 = vector.load %arg2[%c1_134, %c0_135, %c0_136] : memref<2x128x128xf32, #tpu.memory_space<vmem>>, vector<1x128x128xf32>
    %250 = vector.shape_cast %249 : vector<1x128x128xf32> to vector<128x128xf32>
    %cst_137 = arith.constant dense<0.000000e+00> : vector<8x128xf32>
    %251 = tpu.matmul %223, %250, %cst_137 {dimension_numbers = #tpu.dot_dimension_numbers<[1], [0], [0], [1], [0, 0, 1, 1], [], []>} : vector<8x128xf32>, vector<128x128xf32>, vector<8x128xf32> -> vector<8x128xf32>
    %252 = arith.addf %248, %251 : vector<8x128xf32>
    %cst_138 = arith.constant 5.000000e-01 : f32
    %253 = vector.broadcast %cst_138 : f32 to vector<8x128xf32>
    %254 = arith.mulf %253, %252 : vector<8x128xf32>
    %255 = math.tanh %254 : vector<8x128xf32>
    %cst_139 = arith.constant 5.000000e-01 : f32
    %256 = vector.broadcast %cst_139 : f32 to vector<8x128xf32>
    %257 = arith.mulf %256, %255 : vector<8x128xf32>
    %cst_140 = arith.constant 5.000000e-01 : f32
    %258 = vector.broadcast %cst_140 : f32 to vector<8x128xf32>
    %259 = arith.addf %257, %258 : vector<8x128xf32>
    %c64_i32_141 = arith.constant 64 : i32
    %260 = tpu.dynamic_rotate %259 by %c64_i32_141 dim 1 : vector<8x128xf32>, i32 -> vector<8x128xf32>
    %c32_i32_142 = arith.constant 32 : i32
    %261 = tpu.dynamic_rotate %259 by %c32_i32_142 dim 1 : vector<8x128xf32>, i32 -> vector<8x128xf32>
    %262 = arith.addf %251, %16 : vector<8x128xf32>
    %263 = arith.mulf %260, %262 : vector<8x128xf32>
    %264 = arith.addf %248, %263 : vector<8x128xf32>
    %265 = math.tanh %264 : vector<8x128xf32>
    %266 = arith.subf %223, %265 : vector<8x128xf32>
    %267 = arith.mulf %261, %266 : vector<8x128xf32>
    %268 = arith.addf %265, %267 : vector<8x128xf32>
    %c48 = arith.constant 48 : index
    %c0_143 = arith.constant 0 : index
    %269 = vector.load %arg8[%c48, %c0_143] : memref<128x128xf32, #tpu.memory_space<vmem>>, vector<8x128xf32>
    %c0_144 = arith.constant 0 : index
    %c0_145 = arith.constant 0 : index
    %c0_146 = arith.constant 0 : index
    %270 = vector.load %arg2[%c0_144, %c0_145, %c0_146] : memref<2x128x128xf32, #tpu.memory_space<vmem>>, vector<1x128x128xf32>
    %271 = vector.shape_cast %270 : vector<1x128x128xf32> to vector<128x128xf32>
    %cst_147 = arith.constant dense<0.000000e+00> : vector<8x128xf32>
    %272 = tpu.matmul %244, %271, %cst_147 {dimension_numbers = #tpu.dot_dimension_numbers<[1], [0], [0], [1], [0, 0, 1, 1], [], []>} : vector<8x128xf32>, vector<128x128xf32>, vector<8x128xf32> -> vector<8x128xf32>
    %273 = arith.addf %269, %272 : vector<8x128xf32>
    %cst_148 = arith.constant 5.000000e-01 : f32
    %274 = vector.broadcast %cst_148 : f32 to vector<8x128xf32>
    %275 = arith.mulf %274, %273 : vector<8x128xf32>
    %276 = math.tanh %275 : vector<8x128xf32>
    %cst_149 = arith.constant 5.000000e-01 : f32
    %277 = vector.broadcast %cst_149 : f32 to vector<8x128xf32>
    %278 = arith.mulf %277, %276 : vector<8x128xf32>
    %cst_150 = arith.constant 5.000000e-01 : f32
    %279 = vector.broadcast %cst_150 : f32 to vector<8x128xf32>
    %280 = arith.addf %278, %279 : vector<8x128xf32>
    %c64_i32_151 = arith.constant 64 : i32
    %281 = tpu.dynamic_rotate %280 by %c64_i32_151 dim 1 : vector<8x128xf32>, i32 -> vector<8x128xf32>
    %c32_i32_152 = arith.constant 32 : i32
    %282 = tpu.dynamic_rotate %280 by %c32_i32_152 dim 1 : vector<8x128xf32>, i32 -> vector<8x128xf32>
    %283 = arith.addf %272, %12 : vector<8x128xf32>
    %284 = arith.mulf %281, %283 : vector<8x128xf32>
    %285 = arith.addf %269, %284 : vector<8x128xf32>
    %286 = math.tanh %285 : vector<8x128xf32>
    %287 = arith.subf %244, %286 : vector<8x128xf32>
    %288 = arith.mulf %282, %287 : vector<8x128xf32>
    %289 = arith.addf %286, %288 : vector<8x128xf32>
    %c1_153 = arith.constant 1 : index
    %c0_154 = arith.constant 0 : index
    %c0_155 = arith.constant 0 : index
    %290 = vector.load %arg1[%c1_153, %c0_154, %c0_155] : memref<2x128x128xf32, #tpu.memory_space<vmem>>, vector<1x128x128xf32>
    %291 = vector.shape_cast %290 : vector<1x128x128xf32> to vector<128x128xf32>
    %cst_156 = arith.constant dense<0.000000e+00> : vector<8x128xf32>
    %292 = tpu.matmul %244, %291, %cst_156 {dimension_numbers = #tpu.dot_dimension_numbers<[1], [0], [0], [1], [0, 0, 1, 1], [], []>} : vector<8x128xf32>, vector<128x128xf32>, vector<8x128xf32> -> vector<8x128xf32>
    %293 = arith.addf %292, %20 : vector<8x128xf32>
    %c1_157 = arith.constant 1 : index
    %c0_158 = arith.constant 0 : index
    %c0_159 = arith.constant 0 : index
    %294 = vector.load %arg2[%c1_157, %c0_158, %c0_159] : memref<2x128x128xf32, #tpu.memory_space<vmem>>, vector<1x128x128xf32>
    %295 = vector.shape_cast %294 : vector<1x128x128xf32> to vector<128x128xf32>
    %cst_160 = arith.constant dense<0.000000e+00> : vector<8x128xf32>
    %296 = tpu.matmul %268, %295, %cst_160 {dimension_numbers = #tpu.dot_dimension_numbers<[1], [0], [0], [1], [0, 0, 1, 1], [], []>} : vector<8x128xf32>, vector<128x128xf32>, vector<8x128xf32> -> vector<8x128xf32>
    %297 = arith.addf %293, %296 : vector<8x128xf32>
    %cst_161 = arith.constant 5.000000e-01 : f32
    %298 = vector.broadcast %cst_161 : f32 to vector<8x128xf32>
    %299 = arith.mulf %298, %297 : vector<8x128xf32>
    %300 = math.tanh %299 : vector<8x128xf32>
    %cst_162 = arith.constant 5.000000e-01 : f32
    %301 = vector.broadcast %cst_162 : f32 to vector<8x128xf32>
    %302 = arith.mulf %301, %300 : vector<8x128xf32>
    %cst_163 = arith.constant 5.000000e-01 : f32
    %303 = vector.broadcast %cst_163 : f32 to vector<8x128xf32>
    %304 = arith.addf %302, %303 : vector<8x128xf32>
    %c64_i32_164 = arith.constant 64 : i32
    %305 = tpu.dynamic_rotate %304 by %c64_i32_164 dim 1 : vector<8x128xf32>, i32 -> vector<8x128xf32>
    %c32_i32_165 = arith.constant 32 : i32
    %306 = tpu.dynamic_rotate %304 by %c32_i32_165 dim 1 : vector<8x128xf32>, i32 -> vector<8x128xf32>
    %307 = arith.addf %296, %16 : vector<8x128xf32>
    %308 = arith.mulf %305, %307 : vector<8x128xf32>
    %309 = arith.addf %293, %308 : vector<8x128xf32>
    %310 = math.tanh %309 : vector<8x128xf32>
    %311 = arith.subf %268, %310 : vector<8x128xf32>
    %312 = arith.mulf %306, %311 : vector<8x128xf32>
    %313 = arith.addf %310, %312 : vector<8x128xf32>
    %c56 = arith.constant 56 : index
    %c0_166 = arith.constant 0 : index
    %314 = vector.load %arg8[%c56, %c0_166] : memref<128x128xf32, #tpu.memory_space<vmem>>, vector<8x128xf32>
    %c0_167 = arith.constant 0 : index
    %c0_168 = arith.constant 0 : index
    %c0_169 = arith.constant 0 : index
    %315 = vector.load %arg2[%c0_167, %c0_168, %c0_169] : memref<2x128x128xf32, #tpu.memory_space<vmem>>, vector<1x128x128xf32>
    %316 = vector.shape_cast %315 : vector<1x128x128xf32> to vector<128x128xf32>
    %cst_170 = arith.constant dense<0.000000e+00> : vector<8x128xf32>
    %317 = tpu.matmul %289, %316, %cst_170 {dimension_numbers = #tpu.dot_dimension_numbers<[1], [0], [0], [1], [0, 0, 1, 1], [], []>} : vector<8x128xf32>, vector<128x128xf32>, vector<8x128xf32> -> vector<8x128xf32>
    %318 = arith.addf %314, %317 : vector<8x128xf32>
    %cst_171 = arith.constant 5.000000e-01 : f32
    %319 = vector.broadcast %cst_171 : f32 to vector<8x128xf32>
    %320 = arith.mulf %319, %318 : vector<8x128xf32>
    %321 = math.tanh %320 : vector<8x128xf32>
    %cst_172 = arith.constant 5.000000e-01 : f32
    %322 = vector.broadcast %cst_172 : f32 to vector<8x128xf32>
    %323 = arith.mulf %322, %321 : vector<8x128xf32>
    %cst_173 = arith.constant 5.000000e-01 : f32
    %324 = vector.broadcast %cst_173 : f32 to vector<8x128xf32>
    %325 = arith.addf %323, %324 : vector<8x128xf32>
    %c64_i32_174 = arith.constant 64 : i32
    %326 = tpu.dynamic_rotate %325 by %c64_i32_174 dim 1 : vector<8x128xf32>, i32 -> vector<8x128xf32>
    %c32_i32_175 = arith.constant 32 : i32
    %327 = tpu.dynamic_rotate %325 by %c32_i32_175 dim 1 : vector<8x128xf32>, i32 -> vector<8x128xf32>
    %328 = arith.addf %317, %12 : vector<8x128xf32>
    %329 = arith.mulf %326, %328 : vector<8x128xf32>
    %330 = arith.addf %314, %329 : vector<8x128xf32>
    %331 = math.tanh %330 : vector<8x128xf32>
    %332 = arith.subf %289, %331 : vector<8x128xf32>
    %333 = arith.mulf %327, %332 : vector<8x128xf32>
    %334 = arith.addf %331, %333 : vector<8x128xf32>
    %c1_176 = arith.constant 1 : index
    %c0_177 = arith.constant 0 : index
    %c0_178 = arith.constant 0 : index
    %335 = vector.load %arg1[%c1_176, %c0_177, %c0_178] : memref<2x128x128xf32, #tpu.memory_space<vmem>>, vector<1x128x128xf32>
    %336 = vector.shape_cast %335 : vector<1x128x128xf32> to vector<128x128xf32>
    %cst_179 = arith.constant dense<0.000000e+00> : vector<8x128xf32>
    %337 = tpu.matmul %289, %336, %cst_179 {dimension_numbers = #tpu.dot_dimension_numbers<[1], [0], [0], [1], [0, 0, 1, 1], [], []>} : vector<8x128xf32>, vector<128x128xf32>, vector<8x128xf32> -> vector<8x128xf32>
    %338 = arith.addf %337, %20 : vector<8x128xf32>
    %c1_180 = arith.constant 1 : index
    %c0_181 = arith.constant 0 : index
    %c0_182 = arith.constant 0 : index
    %339 = vector.load %arg2[%c1_180, %c0_181, %c0_182] : memref<2x128x128xf32, #tpu.memory_space<vmem>>, vector<1x128x128xf32>
    %340 = vector.shape_cast %339 : vector<1x128x128xf32> to vector<128x128xf32>
    %cst_183 = arith.constant dense<0.000000e+00> : vector<8x128xf32>
    %341 = tpu.matmul %313, %340, %cst_183 {dimension_numbers = #tpu.dot_dimension_numbers<[1], [0], [0], [1], [0, 0, 1, 1], [], []>} : vector<8x128xf32>, vector<128x128xf32>, vector<8x128xf32> -> vector<8x128xf32>
    %342 = arith.addf %338, %341 : vector<8x128xf32>
    %cst_184 = arith.constant 5.000000e-01 : f32
    %343 = vector.broadcast %cst_184 : f32 to vector<8x128xf32>
    %344 = arith.mulf %343, %342 : vector<8x128xf32>
    %345 = math.tanh %344 : vector<8x128xf32>
    %cst_185 = arith.constant 5.000000e-01 : f32
    %346 = vector.broadcast %cst_185 : f32 to vector<8x128xf32>
    %347 = arith.mulf %346, %345 : vector<8x128xf32>
    %cst_186 = arith.constant 5.000000e-01 : f32
    %348 = vector.broadcast %cst_186 : f32 to vector<8x128xf32>
    %349 = arith.addf %347, %348 : vector<8x128xf32>
    %c64_i32_187 = arith.constant 64 : i32
    %350 = tpu.dynamic_rotate %349 by %c64_i32_187 dim 1 : vector<8x128xf32>, i32 -> vector<8x128xf32>
    %c32_i32_188 = arith.constant 32 : i32
    %351 = tpu.dynamic_rotate %349 by %c32_i32_188 dim 1 : vector<8x128xf32>, i32 -> vector<8x128xf32>
    %352 = arith.addf %341, %16 : vector<8x128xf32>
    %353 = arith.mulf %350, %352 : vector<8x128xf32>
    %354 = arith.addf %338, %353 : vector<8x128xf32>
    %355 = math.tanh %354 : vector<8x128xf32>
    %356 = arith.subf %313, %355 : vector<8x128xf32>
    %357 = arith.mulf %351, %356 : vector<8x128xf32>
    %358 = arith.addf %355, %357 : vector<8x128xf32>
    %c64 = arith.constant 64 : index
    %c0_189 = arith.constant 0 : index
    %359 = vector.load %arg8[%c64, %c0_189] : memref<128x128xf32, #tpu.memory_space<vmem>>, vector<8x128xf32>
    %c0_190 = arith.constant 0 : index
    %c0_191 = arith.constant 0 : index
    %c0_192 = arith.constant 0 : index
    %360 = vector.load %arg2[%c0_190, %c0_191, %c0_192] : memref<2x128x128xf32, #tpu.memory_space<vmem>>, vector<1x128x128xf32>
    %361 = vector.shape_cast %360 : vector<1x128x128xf32> to vector<128x128xf32>
    %cst_193 = arith.constant dense<0.000000e+00> : vector<8x128xf32>
    %362 = tpu.matmul %334, %361, %cst_193 {dimension_numbers = #tpu.dot_dimension_numbers<[1], [0], [0], [1], [0, 0, 1, 1], [], []>} : vector<8x128xf32>, vector<128x128xf32>, vector<8x128xf32> -> vector<8x128xf32>
    %363 = arith.addf %359, %362 : vector<8x128xf32>
    %cst_194 = arith.constant 5.000000e-01 : f32
    %364 = vector.broadcast %cst_194 : f32 to vector<8x128xf32>
    %365 = arith.mulf %364, %363 : vector<8x128xf32>
    %366 = math.tanh %365 : vector<8x128xf32>
    %cst_195 = arith.constant 5.000000e-01 : f32
    %367 = vector.broadcast %cst_195 : f32 to vector<8x128xf32>
    %368 = arith.mulf %367, %366 : vector<8x128xf32>
    %cst_196 = arith.constant 5.000000e-01 : f32
    %369 = vector.broadcast %cst_196 : f32 to vector<8x128xf32>
    %370 = arith.addf %368, %369 : vector<8x128xf32>
    %c64_i32_197 = arith.constant 64 : i32
    %371 = tpu.dynamic_rotate %370 by %c64_i32_197 dim 1 : vector<8x128xf32>, i32 -> vector<8x128xf32>
    %c32_i32_198 = arith.constant 32 : i32
    %372 = tpu.dynamic_rotate %370 by %c32_i32_198 dim 1 : vector<8x128xf32>, i32 -> vector<8x128xf32>
    %373 = arith.addf %362, %12 : vector<8x128xf32>
    %374 = arith.mulf %371, %373 : vector<8x128xf32>
    %375 = arith.addf %359, %374 : vector<8x128xf32>
    %376 = math.tanh %375 : vector<8x128xf32>
    %377 = arith.subf %334, %376 : vector<8x128xf32>
    %378 = arith.mulf %372, %377 : vector<8x128xf32>
    %379 = arith.addf %376, %378 : vector<8x128xf32>
    %c1_199 = arith.constant 1 : index
    %c0_200 = arith.constant 0 : index
    %c0_201 = arith.constant 0 : index
    %380 = vector.load %arg1[%c1_199, %c0_200, %c0_201] : memref<2x128x128xf32, #tpu.memory_space<vmem>>, vector<1x128x128xf32>
    %381 = vector.shape_cast %380 : vector<1x128x128xf32> to vector<128x128xf32>
    %cst_202 = arith.constant dense<0.000000e+00> : vector<8x128xf32>
    %382 = tpu.matmul %334, %381, %cst_202 {dimension_numbers = #tpu.dot_dimension_numbers<[1], [0], [0], [1], [0, 0, 1, 1], [], []>} : vector<8x128xf32>, vector<128x128xf32>, vector<8x128xf32> -> vector<8x128xf32>
    %383 = arith.addf %382, %20 : vector<8x128xf32>
    %c1_203 = arith.constant 1 : index
    %c0_204 = arith.constant 0 : index
    %c0_205 = arith.constant 0 : index
    %384 = vector.load %arg2[%c1_203, %c0_204, %c0_205] : memref<2x128x128xf32, #tpu.memory_space<vmem>>, vector<1x128x128xf32>
    %385 = vector.shape_cast %384 : vector<1x128x128xf32> to vector<128x128xf32>
    %cst_206 = arith.constant dense<0.000000e+00> : vector<8x128xf32>
    %386 = tpu.matmul %358, %385, %cst_206 {dimension_numbers = #tpu.dot_dimension_numbers<[1], [0], [0], [1], [0, 0, 1, 1], [], []>} : vector<8x128xf32>, vector<128x128xf32>, vector<8x128xf32> -> vector<8x128xf32>
    %387 = arith.addf %383, %386 : vector<8x128xf32>
    %cst_207 = arith.constant 5.000000e-01 : f32
    %388 = vector.broadcast %cst_207 : f32 to vector<8x128xf32>
    %389 = arith.mulf %388, %387 : vector<8x128xf32>
    %390 = math.tanh %389 : vector<8x128xf32>
    %cst_208 = arith.constant 5.000000e-01 : f32
    %391 = vector.broadcast %cst_208 : f32 to vector<8x128xf32>
    %392 = arith.mulf %391, %390 : vector<8x128xf32>
    %cst_209 = arith.constant 5.000000e-01 : f32
    %393 = vector.broadcast %cst_209 : f32 to vector<8x128xf32>
    %394 = arith.addf %392, %393 : vector<8x128xf32>
    %c64_i32_210 = arith.constant 64 : i32
    %395 = tpu.dynamic_rotate %394 by %c64_i32_210 dim 1 : vector<8x128xf32>, i32 -> vector<8x128xf32>
    %c32_i32_211 = arith.constant 32 : i32
    %396 = tpu.dynamic_rotate %394 by %c32_i32_211 dim 1 : vector<8x128xf32>, i32 -> vector<8x128xf32>
    %397 = arith.addf %386, %16 : vector<8x128xf32>
    %398 = arith.mulf %395, %397 : vector<8x128xf32>
    %399 = arith.addf %383, %398 : vector<8x128xf32>
    %400 = math.tanh %399 : vector<8x128xf32>
    %401 = arith.subf %358, %400 : vector<8x128xf32>
    %402 = arith.mulf %396, %401 : vector<8x128xf32>
    %403 = arith.addf %400, %402 : vector<8x128xf32>
    %c72 = arith.constant 72 : index
    %c0_212 = arith.constant 0 : index
    %404 = vector.load %arg8[%c72, %c0_212] : memref<128x128xf32, #tpu.memory_space<vmem>>, vector<8x128xf32>
    %c0_213 = arith.constant 0 : index
    %c0_214 = arith.constant 0 : index
    %c0_215 = arith.constant 0 : index
    %405 = vector.load %arg2[%c0_213, %c0_214, %c0_215] : memref<2x128x128xf32, #tpu.memory_space<vmem>>, vector<1x128x128xf32>
    %406 = vector.shape_cast %405 : vector<1x128x128xf32> to vector<128x128xf32>
    %cst_216 = arith.constant dense<0.000000e+00> : vector<8x128xf32>
    %407 = tpu.matmul %379, %406, %cst_216 {dimension_numbers = #tpu.dot_dimension_numbers<[1], [0], [0], [1], [0, 0, 1, 1], [], []>} : vector<8x128xf32>, vector<128x128xf32>, vector<8x128xf32> -> vector<8x128xf32>
    %408 = arith.addf %404, %407 : vector<8x128xf32>
    %cst_217 = arith.constant 5.000000e-01 : f32
    %409 = vector.broadcast %cst_217 : f32 to vector<8x128xf32>
    %410 = arith.mulf %409, %408 : vector<8x128xf32>
    %411 = math.tanh %410 : vector<8x128xf32>
    %cst_218 = arith.constant 5.000000e-01 : f32
    %412 = vector.broadcast %cst_218 : f32 to vector<8x128xf32>
    %413 = arith.mulf %412, %411 : vector<8x128xf32>
    %cst_219 = arith.constant 5.000000e-01 : f32
    %414 = vector.broadcast %cst_219 : f32 to vector<8x128xf32>
    %415 = arith.addf %413, %414 : vector<8x128xf32>
    %c64_i32_220 = arith.constant 64 : i32
    %416 = tpu.dynamic_rotate %415 by %c64_i32_220 dim 1 : vector<8x128xf32>, i32 -> vector<8x128xf32>
    %c32_i32_221 = arith.constant 32 : i32
    %417 = tpu.dynamic_rotate %415 by %c32_i32_221 dim 1 : vector<8x128xf32>, i32 -> vector<8x128xf32>
    %418 = arith.addf %407, %12 : vector<8x128xf32>
    %419 = arith.mulf %416, %418 : vector<8x128xf32>
    %420 = arith.addf %404, %419 : vector<8x128xf32>
    %421 = math.tanh %420 : vector<8x128xf32>
    %422 = arith.subf %379, %421 : vector<8x128xf32>
    %423 = arith.mulf %417, %422 : vector<8x128xf32>
    %424 = arith.addf %421, %423 : vector<8x128xf32>
    %c1_222 = arith.constant 1 : index
    %c0_223 = arith.constant 0 : index
    %c0_224 = arith.constant 0 : index
    %425 = vector.load %arg1[%c1_222, %c0_223, %c0_224] : memref<2x128x128xf32, #tpu.memory_space<vmem>>, vector<1x128x128xf32>
    %426 = vector.shape_cast %425 : vector<1x128x128xf32> to vector<128x128xf32>
    %cst_225 = arith.constant dense<0.000000e+00> : vector<8x128xf32>
    %427 = tpu.matmul %379, %426, %cst_225 {dimension_numbers = #tpu.dot_dimension_numbers<[1], [0], [0], [1], [0, 0, 1, 1], [], []>} : vector<8x128xf32>, vector<128x128xf32>, vector<8x128xf32> -> vector<8x128xf32>
    %428 = arith.addf %427, %20 : vector<8x128xf32>
    %c1_226 = arith.constant 1 : index
    %c0_227 = arith.constant 0 : index
    %c0_228 = arith.constant 0 : index
    %429 = vector.load %arg2[%c1_226, %c0_227, %c0_228] : memref<2x128x128xf32, #tpu.memory_space<vmem>>, vector<1x128x128xf32>
    %430 = vector.shape_cast %429 : vector<1x128x128xf32> to vector<128x128xf32>
    %cst_229 = arith.constant dense<0.000000e+00> : vector<8x128xf32>
    %431 = tpu.matmul %403, %430, %cst_229 {dimension_numbers = #tpu.dot_dimension_numbers<[1], [0], [0], [1], [0, 0, 1, 1], [], []>} : vector<8x128xf32>, vector<128x128xf32>, vector<8x128xf32> -> vector<8x128xf32>
    %432 = arith.addf %428, %431 : vector<8x128xf32>
    %cst_230 = arith.constant 5.000000e-01 : f32
    %433 = vector.broadcast %cst_230 : f32 to vector<8x128xf32>
    %434 = arith.mulf %433, %432 : vector<8x128xf32>
    %435 = math.tanh %434 : vector<8x128xf32>
    %cst_231 = arith.constant 5.000000e-01 : f32
    %436 = vector.broadcast %cst_231 : f32 to vector<8x128xf32>
    %437 = arith.mulf %436, %435 : vector<8x128xf32>
    %cst_232 = arith.constant 5.000000e-01 : f32
    %438 = vector.broadcast %cst_232 : f32 to vector<8x128xf32>
    %439 = arith.addf %437, %438 : vector<8x128xf32>
    %c64_i32_233 = arith.constant 64 : i32
    %440 = tpu.dynamic_rotate %439 by %c64_i32_233 dim 1 : vector<8x128xf32>, i32 -> vector<8x128xf32>
    %c32_i32_234 = arith.constant 32 : i32
    %441 = tpu.dynamic_rotate %439 by %c32_i32_234 dim 1 : vector<8x128xf32>, i32 -> vector<8x128xf32>
    %442 = arith.addf %431, %16 : vector<8x128xf32>
    %443 = arith.mulf %440, %442 : vector<8x128xf32>
    %444 = arith.addf %428, %443 : vector<8x128xf32>
    %445 = math.tanh %444 : vector<8x128xf32>
    %446 = arith.subf %403, %445 : vector<8x128xf32>
    %447 = arith.mulf %441, %446 : vector<8x128xf32>
    %448 = arith.addf %445, %447 : vector<8x128xf32>
    %c80 = arith.constant 80 : index
    %c0_235 = arith.constant 0 : index
    %449 = vector.load %arg8[%c80, %c0_235] : memref<128x128xf32, #tpu.memory_space<vmem>>, vector<8x128xf32>
    %c0_236 = arith.constant 0 : index
    %c0_237 = arith.constant 0 : index
    %c0_238 = arith.constant 0 : index
    %450 = vector.load %arg2[%c0_236, %c0_237, %c0_238] : memref<2x128x128xf32, #tpu.memory_space<vmem>>, vector<1x128x128xf32>
    %451 = vector.shape_cast %450 : vector<1x128x128xf32> to vector<128x128xf32>
    %cst_239 = arith.constant dense<0.000000e+00> : vector<8x128xf32>
    %452 = tpu.matmul %424, %451, %cst_239 {dimension_numbers = #tpu.dot_dimension_numbers<[1], [0], [0], [1], [0, 0, 1, 1], [], []>} : vector<8x128xf32>, vector<128x128xf32>, vector<8x128xf32> -> vector<8x128xf32>
    %453 = arith.addf %449, %452 : vector<8x128xf32>
    %cst_240 = arith.constant 5.000000e-01 : f32
    %454 = vector.broadcast %cst_240 : f32 to vector<8x128xf32>
    %455 = arith.mulf %454, %453 : vector<8x128xf32>
    %456 = math.tanh %455 : vector<8x128xf32>
    %cst_241 = arith.constant 5.000000e-01 : f32
    %457 = vector.broadcast %cst_241 : f32 to vector<8x128xf32>
    %458 = arith.mulf %457, %456 : vector<8x128xf32>
    %cst_242 = arith.constant 5.000000e-01 : f32
    %459 = vector.broadcast %cst_242 : f32 to vector<8x128xf32>
    %460 = arith.addf %458, %459 : vector<8x128xf32>
    %c64_i32_243 = arith.constant 64 : i32
    %461 = tpu.dynamic_rotate %460 by %c64_i32_243 dim 1 : vector<8x128xf32>, i32 -> vector<8x128xf32>
    %c32_i32_244 = arith.constant 32 : i32
    %462 = tpu.dynamic_rotate %460 by %c32_i32_244 dim 1 : vector<8x128xf32>, i32 -> vector<8x128xf32>
    %463 = arith.addf %452, %12 : vector<8x128xf32>
    %464 = arith.mulf %461, %463 : vector<8x128xf32>
    %465 = arith.addf %449, %464 : vector<8x128xf32>
    %466 = math.tanh %465 : vector<8x128xf32>
    %467 = arith.subf %424, %466 : vector<8x128xf32>
    %468 = arith.mulf %462, %467 : vector<8x128xf32>
    %469 = arith.addf %466, %468 : vector<8x128xf32>
    %c1_245 = arith.constant 1 : index
    %c0_246 = arith.constant 0 : index
    %c0_247 = arith.constant 0 : index
    %470 = vector.load %arg1[%c1_245, %c0_246, %c0_247] : memref<2x128x128xf32, #tpu.memory_space<vmem>>, vector<1x128x128xf32>
    %471 = vector.shape_cast %470 : vector<1x128x128xf32> to vector<128x128xf32>
    %cst_248 = arith.constant dense<0.000000e+00> : vector<8x128xf32>
    %472 = tpu.matmul %424, %471, %cst_248 {dimension_numbers = #tpu.dot_dimension_numbers<[1], [0], [0], [1], [0, 0, 1, 1], [], []>} : vector<8x128xf32>, vector<128x128xf32>, vector<8x128xf32> -> vector<8x128xf32>
    %473 = arith.addf %472, %20 : vector<8x128xf32>
    %c1_249 = arith.constant 1 : index
    %c0_250 = arith.constant 0 : index
    %c0_251 = arith.constant 0 : index
    %474 = vector.load %arg2[%c1_249, %c0_250, %c0_251] : memref<2x128x128xf32, #tpu.memory_space<vmem>>, vector<1x128x128xf32>
    %475 = vector.shape_cast %474 : vector<1x128x128xf32> to vector<128x128xf32>
    %cst_252 = arith.constant dense<0.000000e+00> : vector<8x128xf32>
    %476 = tpu.matmul %448, %475, %cst_252 {dimension_numbers = #tpu.dot_dimension_numbers<[1], [0], [0], [1], [0, 0, 1, 1], [], []>} : vector<8x128xf32>, vector<128x128xf32>, vector<8x128xf32> -> vector<8x128xf32>
    %477 = arith.addf %473, %476 : vector<8x128xf32>
    %cst_253 = arith.constant 5.000000e-01 : f32
    %478 = vector.broadcast %cst_253 : f32 to vector<8x128xf32>
    %479 = arith.mulf %478, %477 : vector<8x128xf32>
    %480 = math.tanh %479 : vector<8x128xf32>
    %cst_254 = arith.constant 5.000000e-01 : f32
    %481 = vector.broadcast %cst_254 : f32 to vector<8x128xf32>
    %482 = arith.mulf %481, %480 : vector<8x128xf32>
    %cst_255 = arith.constant 5.000000e-01 : f32
    %483 = vector.broadcast %cst_255 : f32 to vector<8x128xf32>
    %484 = arith.addf %482, %483 : vector<8x128xf32>
    %c64_i32_256 = arith.constant 64 : i32
    %485 = tpu.dynamic_rotate %484 by %c64_i32_256 dim 1 : vector<8x128xf32>, i32 -> vector<8x128xf32>
    %c32_i32_257 = arith.constant 32 : i32
    %486 = tpu.dynamic_rotate %484 by %c32_i32_257 dim 1 : vector<8x128xf32>, i32 -> vector<8x128xf32>
    %487 = arith.addf %476, %16 : vector<8x128xf32>
    %488 = arith.mulf %485, %487 : vector<8x128xf32>
    %489 = arith.addf %473, %488 : vector<8x128xf32>
    %490 = math.tanh %489 : vector<8x128xf32>
    %491 = arith.subf %448, %490 : vector<8x128xf32>
    %492 = arith.mulf %486, %491 : vector<8x128xf32>
    %493 = arith.addf %490, %492 : vector<8x128xf32>
    %c88 = arith.constant 88 : index
    %c0_258 = arith.constant 0 : index
    %494 = vector.load %arg8[%c88, %c0_258] : memref<128x128xf32, #tpu.memory_space<vmem>>, vector<8x128xf32>
    %c0_259 = arith.constant 0 : index
    %c0_260 = arith.constant 0 : index
    %c0_261 = arith.constant 0 : index
    %495 = vector.load %arg2[%c0_259, %c0_260, %c0_261] : memref<2x128x128xf32, #tpu.memory_space<vmem>>, vector<1x128x128xf32>
    %496 = vector.shape_cast %495 : vector<1x128x128xf32> to vector<128x128xf32>
    %cst_262 = arith.constant dense<0.000000e+00> : vector<8x128xf32>
    %497 = tpu.matmul %469, %496, %cst_262 {dimension_numbers = #tpu.dot_dimension_numbers<[1], [0], [0], [1], [0, 0, 1, 1], [], []>} : vector<8x128xf32>, vector<128x128xf32>, vector<8x128xf32> -> vector<8x128xf32>
    %498 = arith.addf %494, %497 : vector<8x128xf32>
    %cst_263 = arith.constant 5.000000e-01 : f32
    %499 = vector.broadcast %cst_263 : f32 to vector<8x128xf32>
    %500 = arith.mulf %499, %498 : vector<8x128xf32>
    %501 = math.tanh %500 : vector<8x128xf32>
    %cst_264 = arith.constant 5.000000e-01 : f32
    %502 = vector.broadcast %cst_264 : f32 to vector<8x128xf32>
    %503 = arith.mulf %502, %501 : vector<8x128xf32>
    %cst_265 = arith.constant 5.000000e-01 : f32
    %504 = vector.broadcast %cst_265 : f32 to vector<8x128xf32>
    %505 = arith.addf %503, %504 : vector<8x128xf32>
    %c64_i32_266 = arith.constant 64 : i32
    %506 = tpu.dynamic_rotate %505 by %c64_i32_266 dim 1 : vector<8x128xf32>, i32 -> vector<8x128xf32>
    %c32_i32_267 = arith.constant 32 : i32
    %507 = tpu.dynamic_rotate %505 by %c32_i32_267 dim 1 : vector<8x128xf32>, i32 -> vector<8x128xf32>
    %508 = arith.addf %497, %12 : vector<8x128xf32>
    %509 = arith.mulf %506, %508 : vector<8x128xf32>
    %510 = arith.addf %494, %509 : vector<8x128xf32>
    %511 = math.tanh %510 : vector<8x128xf32>
    %512 = arith.subf %469, %511 : vector<8x128xf32>
    %513 = arith.mulf %507, %512 : vector<8x128xf32>
    %514 = arith.addf %511, %513 : vector<8x128xf32>
    %c1_268 = arith.constant 1 : index
    %c0_269 = arith.constant 0 : index
    %c0_270 = arith.constant 0 : index
    %515 = vector.load %arg1[%c1_268, %c0_269, %c0_270] : memref<2x128x128xf32, #tpu.memory_space<vmem>>, vector<1x128x128xf32>
    %516 = vector.shape_cast %515 : vector<1x128x128xf32> to vector<128x128xf32>
    %cst_271 = arith.constant dense<0.000000e+00> : vector<8x128xf32>
    %517 = tpu.matmul %469, %516, %cst_271 {dimension_numbers = #tpu.dot_dimension_numbers<[1], [0], [0], [1], [0, 0, 1, 1], [], []>} : vector<8x128xf32>, vector<128x128xf32>, vector<8x128xf32> -> vector<8x128xf32>
    %518 = arith.addf %517, %20 : vector<8x128xf32>
    %c1_272 = arith.constant 1 : index
    %c0_273 = arith.constant 0 : index
    %c0_274 = arith.constant 0 : index
    %519 = vector.load %arg2[%c1_272, %c0_273, %c0_274] : memref<2x128x128xf32, #tpu.memory_space<vmem>>, vector<1x128x128xf32>
    %520 = vector.shape_cast %519 : vector<1x128x128xf32> to vector<128x128xf32>
    %cst_275 = arith.constant dense<0.000000e+00> : vector<8x128xf32>
    %521 = tpu.matmul %493, %520, %cst_275 {dimension_numbers = #tpu.dot_dimension_numbers<[1], [0], [0], [1], [0, 0, 1, 1], [], []>} : vector<8x128xf32>, vector<128x128xf32>, vector<8x128xf32> -> vector<8x128xf32>
    %522 = arith.addf %518, %521 : vector<8x128xf32>
    %cst_276 = arith.constant 5.000000e-01 : f32
    %523 = vector.broadcast %cst_276 : f32 to vector<8x128xf32>
    %524 = arith.mulf %523, %522 : vector<8x128xf32>
    %525 = math.tanh %524 : vector<8x128xf32>
    %cst_277 = arith.constant 5.000000e-01 : f32
    %526 = vector.broadcast %cst_277 : f32 to vector<8x128xf32>
    %527 = arith.mulf %526, %525 : vector<8x128xf32>
    %cst_278 = arith.constant 5.000000e-01 : f32
    %528 = vector.broadcast %cst_278 : f32 to vector<8x128xf32>
    %529 = arith.addf %527, %528 : vector<8x128xf32>
    %c64_i32_279 = arith.constant 64 : i32
    %530 = tpu.dynamic_rotate %529 by %c64_i32_279 dim 1 : vector<8x128xf32>, i32 -> vector<8x128xf32>
    %c32_i32_280 = arith.constant 32 : i32
    %531 = tpu.dynamic_rotate %529 by %c32_i32_280 dim 1 : vector<8x128xf32>, i32 -> vector<8x128xf32>
    %532 = arith.addf %521, %16 : vector<8x128xf32>
    %533 = arith.mulf %530, %532 : vector<8x128xf32>
    %534 = arith.addf %518, %533 : vector<8x128xf32>
    %535 = math.tanh %534 : vector<8x128xf32>
    %536 = arith.subf %493, %535 : vector<8x128xf32>
    %537 = arith.mulf %531, %536 : vector<8x128xf32>
    %538 = arith.addf %535, %537 : vector<8x128xf32>
    %c96 = arith.constant 96 : index
    %c0_281 = arith.constant 0 : index
    %539 = vector.load %arg8[%c96, %c0_281] : memref<128x128xf32, #tpu.memory_space<vmem>>, vector<8x128xf32>
    %c0_282 = arith.constant 0 : index
    %c0_283 = arith.constant 0 : index
    %c0_284 = arith.constant 0 : index
    %540 = vector.load %arg2[%c0_282, %c0_283, %c0_284] : memref<2x128x128xf32, #tpu.memory_space<vmem>>, vector<1x128x128xf32>
    %541 = vector.shape_cast %540 : vector<1x128x128xf32> to vector<128x128xf32>
    %cst_285 = arith.constant dense<0.000000e+00> : vector<8x128xf32>
    %542 = tpu.matmul %514, %541, %cst_285 {dimension_numbers = #tpu.dot_dimension_numbers<[1], [0], [0], [1], [0, 0, 1, 1], [], []>} : vector<8x128xf32>, vector<128x128xf32>, vector<8x128xf32> -> vector<8x128xf32>
    %543 = arith.addf %539, %542 : vector<8x128xf32>
    %cst_286 = arith.constant 5.000000e-01 : f32
    %544 = vector.broadcast %cst_286 : f32 to vector<8x128xf32>
    %545 = arith.mulf %544, %543 : vector<8x128xf32>
    %546 = math.tanh %545 : vector<8x128xf32>
    %cst_287 = arith.constant 5.000000e-01 : f32
    %547 = vector.broadcast %cst_287 : f32 to vector<8x128xf32>
    %548 = arith.mulf %547, %546 : vector<8x128xf32>
    %cst_288 = arith.constant 5.000000e-01 : f32
    %549 = vector.broadcast %cst_288 : f32 to vector<8x128xf32>
    %550 = arith.addf %548, %549 : vector<8x128xf32>
    %c64_i32_289 = arith.constant 64 : i32
    %551 = tpu.dynamic_rotate %550 by %c64_i32_289 dim 1 : vector<8x128xf32>, i32 -> vector<8x128xf32>
    %c32_i32_290 = arith.constant 32 : i32
    %552 = tpu.dynamic_rotate %550 by %c32_i32_290 dim 1 : vector<8x128xf32>, i32 -> vector<8x128xf32>
    %553 = arith.addf %542, %12 : vector<8x128xf32>
    %554 = arith.mulf %551, %553 : vector<8x128xf32>
    %555 = arith.addf %539, %554 : vector<8x128xf32>
    %556 = math.tanh %555 : vector<8x128xf32>
    %557 = arith.subf %514, %556 : vector<8x128xf32>
    %558 = arith.mulf %552, %557 : vector<8x128xf32>
    %559 = arith.addf %556, %558 : vector<8x128xf32>
    %c1_291 = arith.constant 1 : index
    %c0_292 = arith.constant 0 : index
    %c0_293 = arith.constant 0 : index
    %560 = vector.load %arg1[%c1_291, %c0_292, %c0_293] : memref<2x128x128xf32, #tpu.memory_space<vmem>>, vector<1x128x128xf32>
    %561 = vector.shape_cast %560 : vector<1x128x128xf32> to vector<128x128xf32>
    %cst_294 = arith.constant dense<0.000000e+00> : vector<8x128xf32>
    %562 = tpu.matmul %514, %561, %cst_294 {dimension_numbers = #tpu.dot_dimension_numbers<[1], [0], [0], [1], [0, 0, 1, 1], [], []>} : vector<8x128xf32>, vector<128x128xf32>, vector<8x128xf32> -> vector<8x128xf32>
    %563 = arith.addf %562, %20 : vector<8x128xf32>
    %c1_295 = arith.constant 1 : index
    %c0_296 = arith.constant 0 : index
    %c0_297 = arith.constant 0 : index
    %564 = vector.load %arg2[%c1_295, %c0_296, %c0_297] : memref<2x128x128xf32, #tpu.memory_space<vmem>>, vector<1x128x128xf32>
    %565 = vector.shape_cast %564 : vector<1x128x128xf32> to vector<128x128xf32>
    %cst_298 = arith.constant dense<0.000000e+00> : vector<8x128xf32>
    %566 = tpu.matmul %538, %565, %cst_298 {dimension_numbers = #tpu.dot_dimension_numbers<[1], [0], [0], [1], [0, 0, 1, 1], [], []>} : vector<8x128xf32>, vector<128x128xf32>, vector<8x128xf32> -> vector<8x128xf32>
    %567 = arith.addf %563, %566 : vector<8x128xf32>
    %cst_299 = arith.constant 5.000000e-01 : f32
    %568 = vector.broadcast %cst_299 : f32 to vector<8x128xf32>
    %569 = arith.mulf %568, %567 : vector<8x128xf32>
    %570 = math.tanh %569 : vector<8x128xf32>
    %cst_300 = arith.constant 5.000000e-01 : f32
    %571 = vector.broadcast %cst_300 : f32 to vector<8x128xf32>
    %572 = arith.mulf %571, %570 : vector<8x128xf32>
    %cst_301 = arith.constant 5.000000e-01 : f32
    %573 = vector.broadcast %cst_301 : f32 to vector<8x128xf32>
    %574 = arith.addf %572, %573 : vector<8x128xf32>
    %c64_i32_302 = arith.constant 64 : i32
    %575 = tpu.dynamic_rotate %574 by %c64_i32_302 dim 1 : vector<8x128xf32>, i32 -> vector<8x128xf32>
    %c32_i32_303 = arith.constant 32 : i32
    %576 = tpu.dynamic_rotate %574 by %c32_i32_303 dim 1 : vector<8x128xf32>, i32 -> vector<8x128xf32>
    %577 = arith.addf %566, %16 : vector<8x128xf32>
    %578 = arith.mulf %575, %577 : vector<8x128xf32>
    %579 = arith.addf %563, %578 : vector<8x128xf32>
    %580 = math.tanh %579 : vector<8x128xf32>
    %581 = arith.subf %538, %580 : vector<8x128xf32>
    %582 = arith.mulf %576, %581 : vector<8x128xf32>
    %583 = arith.addf %580, %582 : vector<8x128xf32>
    %c104 = arith.constant 104 : index
    %c0_304 = arith.constant 0 : index
    %584 = vector.load %arg8[%c104, %c0_304] : memref<128x128xf32, #tpu.memory_space<vmem>>, vector<8x128xf32>
    %c0_305 = arith.constant 0 : index
    %c0_306 = arith.constant 0 : index
    %c0_307 = arith.constant 0 : index
    %585 = vector.load %arg2[%c0_305, %c0_306, %c0_307] : memref<2x128x128xf32, #tpu.memory_space<vmem>>, vector<1x128x128xf32>
    %586 = vector.shape_cast %585 : vector<1x128x128xf32> to vector<128x128xf32>
    %cst_308 = arith.constant dense<0.000000e+00> : vector<8x128xf32>
    %587 = tpu.matmul %559, %586, %cst_308 {dimension_numbers = #tpu.dot_dimension_numbers<[1], [0], [0], [1], [0, 0, 1, 1], [], []>} : vector<8x128xf32>, vector<128x128xf32>, vector<8x128xf32> -> vector<8x128xf32>
    %588 = arith.addf %584, %587 : vector<8x128xf32>
    %cst_309 = arith.constant 5.000000e-01 : f32
    %589 = vector.broadcast %cst_309 : f32 to vector<8x128xf32>
    %590 = arith.mulf %589, %588 : vector<8x128xf32>
    %591 = math.tanh %590 : vector<8x128xf32>
    %cst_310 = arith.constant 5.000000e-01 : f32
    %592 = vector.broadcast %cst_310 : f32 to vector<8x128xf32>
    %593 = arith.mulf %592, %591 : vector<8x128xf32>
    %cst_311 = arith.constant 5.000000e-01 : f32
    %594 = vector.broadcast %cst_311 : f32 to vector<8x128xf32>
    %595 = arith.addf %593, %594 : vector<8x128xf32>
    %c64_i32_312 = arith.constant 64 : i32
    %596 = tpu.dynamic_rotate %595 by %c64_i32_312 dim 1 : vector<8x128xf32>, i32 -> vector<8x128xf32>
    %c32_i32_313 = arith.constant 32 : i32
    %597 = tpu.dynamic_rotate %595 by %c32_i32_313 dim 1 : vector<8x128xf32>, i32 -> vector<8x128xf32>
    %598 = arith.addf %587, %12 : vector<8x128xf32>
    %599 = arith.mulf %596, %598 : vector<8x128xf32>
    %600 = arith.addf %584, %599 : vector<8x128xf32>
    %601 = math.tanh %600 : vector<8x128xf32>
    %602 = arith.subf %559, %601 : vector<8x128xf32>
    %603 = arith.mulf %597, %602 : vector<8x128xf32>
    %604 = arith.addf %601, %603 : vector<8x128xf32>
    %c1_314 = arith.constant 1 : index
    %c0_315 = arith.constant 0 : index
    %c0_316 = arith.constant 0 : index
    %605 = vector.load %arg1[%c1_314, %c0_315, %c0_316] : memref<2x128x128xf32, #tpu.memory_space<vmem>>, vector<1x128x128xf32>
    %606 = vector.shape_cast %605 : vector<1x128x128xf32> to vector<128x128xf32>
    %cst_317 = arith.constant dense<0.000000e+00> : vector<8x128xf32>
    %607 = tpu.matmul %559, %606, %cst_317 {dimension_numbers = #tpu.dot_dimension_numbers<[1], [0], [0], [1], [0, 0, 1, 1], [], []>} : vector<8x128xf32>, vector<128x128xf32>, vector<8x128xf32> -> vector<8x128xf32>
    %608 = arith.addf %607, %20 : vector<8x128xf32>
    %c1_318 = arith.constant 1 : index
    %c0_319 = arith.constant 0 : index
    %c0_320 = arith.constant 0 : index
    %609 = vector.load %arg2[%c1_318, %c0_319, %c0_320] : memref<2x128x128xf32, #tpu.memory_space<vmem>>, vector<1x128x128xf32>
    %610 = vector.shape_cast %609 : vector<1x128x128xf32> to vector<128x128xf32>
    %cst_321 = arith.constant dense<0.000000e+00> : vector<8x128xf32>
    %611 = tpu.matmul %583, %610, %cst_321 {dimension_numbers = #tpu.dot_dimension_numbers<[1], [0], [0], [1], [0, 0, 1, 1], [], []>} : vector<8x128xf32>, vector<128x128xf32>, vector<8x128xf32> -> vector<8x128xf32>
    %612 = arith.addf %608, %611 : vector<8x128xf32>
    %cst_322 = arith.constant 5.000000e-01 : f32
    %613 = vector.broadcast %cst_322 : f32 to vector<8x128xf32>
    %614 = arith.mulf %613, %612 : vector<8x128xf32>
    %615 = math.tanh %614 : vector<8x128xf32>
    %cst_323 = arith.constant 5.000000e-01 : f32
    %616 = vector.broadcast %cst_323 : f32 to vector<8x128xf32>
    %617 = arith.mulf %616, %615 : vector<8x128xf32>
    %cst_324 = arith.constant 5.000000e-01 : f32
    %618 = vector.broadcast %cst_324 : f32 to vector<8x128xf32>
    %619 = arith.addf %617, %618 : vector<8x128xf32>
    %c64_i32_325 = arith.constant 64 : i32
    %620 = tpu.dynamic_rotate %619 by %c64_i32_325 dim 1 : vector<8x128xf32>, i32 -> vector<8x128xf32>
    %c32_i32_326 = arith.constant 32 : i32
    %621 = tpu.dynamic_rotate %619 by %c32_i32_326 dim 1 : vector<8x128xf32>, i32 -> vector<8x128xf32>
    %622 = arith.addf %611, %16 : vector<8x128xf32>
    %623 = arith.mulf %620, %622 : vector<8x128xf32>
    %624 = arith.addf %608, %623 : vector<8x128xf32>
    %625 = math.tanh %624 : vector<8x128xf32>
    %626 = arith.subf %583, %625 : vector<8x128xf32>
    %627 = arith.mulf %621, %626 : vector<8x128xf32>
    %628 = arith.addf %625, %627 : vector<8x128xf32>
    %c112 = arith.constant 112 : index
    %c0_327 = arith.constant 0 : index
    %629 = vector.load %arg8[%c112, %c0_327] : memref<128x128xf32, #tpu.memory_space<vmem>>, vector<8x128xf32>
    %c0_328 = arith.constant 0 : index
    %c0_329 = arith.constant 0 : index
    %c0_330 = arith.constant 0 : index
    %630 = vector.load %arg2[%c0_328, %c0_329, %c0_330] : memref<2x128x128xf32, #tpu.memory_space<vmem>>, vector<1x128x128xf32>
    %631 = vector.shape_cast %630 : vector<1x128x128xf32> to vector<128x128xf32>
    %cst_331 = arith.constant dense<0.000000e+00> : vector<8x128xf32>
    %632 = tpu.matmul %604, %631, %cst_331 {dimension_numbers = #tpu.dot_dimension_numbers<[1], [0], [0], [1], [0, 0, 1, 1], [], []>} : vector<8x128xf32>, vector<128x128xf32>, vector<8x128xf32> -> vector<8x128xf32>
    %633 = arith.addf %629, %632 : vector<8x128xf32>
    %cst_332 = arith.constant 5.000000e-01 : f32
    %634 = vector.broadcast %cst_332 : f32 to vector<8x128xf32>
    %635 = arith.mulf %634, %633 : vector<8x128xf32>
    %636 = math.tanh %635 : vector<8x128xf32>
    %cst_333 = arith.constant 5.000000e-01 : f32
    %637 = vector.broadcast %cst_333 : f32 to vector<8x128xf32>
    %638 = arith.mulf %637, %636 : vector<8x128xf32>
    %cst_334 = arith.constant 5.000000e-01 : f32
    %639 = vector.broadcast %cst_334 : f32 to vector<8x128xf32>
    %640 = arith.addf %638, %639 : vector<8x128xf32>
    %c64_i32_335 = arith.constant 64 : i32
    %641 = tpu.dynamic_rotate %640 by %c64_i32_335 dim 1 : vector<8x128xf32>, i32 -> vector<8x128xf32>
    %c32_i32_336 = arith.constant 32 : i32
    %642 = tpu.dynamic_rotate %640 by %c32_i32_336 dim 1 : vector<8x128xf32>, i32 -> vector<8x128xf32>
    %643 = arith.addf %632, %12 : vector<8x128xf32>
    %644 = arith.mulf %641, %643 : vector<8x128xf32>
    %645 = arith.addf %629, %644 : vector<8x128xf32>
    %646 = math.tanh %645 : vector<8x128xf32>
    %647 = arith.subf %604, %646 : vector<8x128xf32>
    %648 = arith.mulf %642, %647 : vector<8x128xf32>
    %649 = arith.addf %646, %648 : vector<8x128xf32>
    %c1_337 = arith.constant 1 : index
    %c0_338 = arith.constant 0 : index
    %c0_339 = arith.constant 0 : index
    %650 = vector.load %arg1[%c1_337, %c0_338, %c0_339] : memref<2x128x128xf32, #tpu.memory_space<vmem>>, vector<1x128x128xf32>
    %651 = vector.shape_cast %650 : vector<1x128x128xf32> to vector<128x128xf32>
    %cst_340 = arith.constant dense<0.000000e+00> : vector<8x128xf32>
    %652 = tpu.matmul %604, %651, %cst_340 {dimension_numbers = #tpu.dot_dimension_numbers<[1], [0], [0], [1], [0, 0, 1, 1], [], []>} : vector<8x128xf32>, vector<128x128xf32>, vector<8x128xf32> -> vector<8x128xf32>
    %653 = arith.addf %652, %20 : vector<8x128xf32>
    %c1_341 = arith.constant 1 : index
    %c0_342 = arith.constant 0 : index
    %c0_343 = arith.constant 0 : index
    %654 = vector.load %arg2[%c1_341, %c0_342, %c0_343] : memref<2x128x128xf32, #tpu.memory_space<vmem>>, vector<1x128x128xf32>
    %655 = vector.shape_cast %654 : vector<1x128x128xf32> to vector<128x128xf32>
    %cst_344 = arith.constant dense<0.000000e+00> : vector<8x128xf32>
    %656 = tpu.matmul %628, %655, %cst_344 {dimension_numbers = #tpu.dot_dimension_numbers<[1], [0], [0], [1], [0, 0, 1, 1], [], []>} : vector<8x128xf32>, vector<128x128xf32>, vector<8x128xf32> -> vector<8x128xf32>
    %657 = arith.addf %653, %656 : vector<8x128xf32>
    %cst_345 = arith.constant 5.000000e-01 : f32
    %658 = vector.broadcast %cst_345 : f32 to vector<8x128xf32>
    %659 = arith.mulf %658, %657 : vector<8x128xf32>
    %660 = math.tanh %659 : vector<8x128xf32>
    %cst_346 = arith.constant 5.000000e-01 : f32
    %661 = vector.broadcast %cst_346 : f32 to vector<8x128xf32>
    %662 = arith.mulf %661, %660 : vector<8x128xf32>
    %cst_347 = arith.constant 5.000000e-01 : f32
    %663 = vector.broadcast %cst_347 : f32 to vector<8x128xf32>
    %664 = arith.addf %662, %663 : vector<8x128xf32>
    %c64_i32_348 = arith.constant 64 : i32
    %665 = tpu.dynamic_rotate %664 by %c64_i32_348 dim 1 : vector<8x128xf32>, i32 -> vector<8x128xf32>
    %c32_i32_349 = arith.constant 32 : i32
    %666 = tpu.dynamic_rotate %664 by %c32_i32_349 dim 1 : vector<8x128xf32>, i32 -> vector<8x128xf32>
    %667 = arith.addf %656, %16 : vector<8x128xf32>
    %668 = arith.mulf %665, %667 : vector<8x128xf32>
    %669 = arith.addf %653, %668 : vector<8x128xf32>
    %670 = math.tanh %669 : vector<8x128xf32>
    %671 = arith.subf %628, %670 : vector<8x128xf32>
    %672 = arith.mulf %666, %671 : vector<8x128xf32>
    %673 = arith.addf %670, %672 : vector<8x128xf32>
    %c120 = arith.constant 120 : index
    %c0_350 = arith.constant 0 : index
    %674 = vector.load %arg8[%c120, %c0_350] : memref<128x128xf32, #tpu.memory_space<vmem>>, vector<8x128xf32>
    %c0_351 = arith.constant 0 : index
    %c0_352 = arith.constant 0 : index
    %c0_353 = arith.constant 0 : index
    %675 = vector.load %arg2[%c0_351, %c0_352, %c0_353] : memref<2x128x128xf32, #tpu.memory_space<vmem>>, vector<1x128x128xf32>
    %676 = vector.shape_cast %675 : vector<1x128x128xf32> to vector<128x128xf32>
    %cst_354 = arith.constant dense<0.000000e+00> : vector<8x128xf32>
    %677 = tpu.matmul %649, %676, %cst_354 {dimension_numbers = #tpu.dot_dimension_numbers<[1], [0], [0], [1], [0, 0, 1, 1], [], []>} : vector<8x128xf32>, vector<128x128xf32>, vector<8x128xf32> -> vector<8x128xf32>
    %678 = arith.addf %674, %677 : vector<8x128xf32>
    %cst_355 = arith.constant 5.000000e-01 : f32
    %679 = vector.broadcast %cst_355 : f32 to vector<8x128xf32>
    %680 = arith.mulf %679, %678 : vector<8x128xf32>
    %681 = math.tanh %680 : vector<8x128xf32>
    %cst_356 = arith.constant 5.000000e-01 : f32
    %682 = vector.broadcast %cst_356 : f32 to vector<8x128xf32>
    %683 = arith.mulf %682, %681 : vector<8x128xf32>
    %cst_357 = arith.constant 5.000000e-01 : f32
    %684 = vector.broadcast %cst_357 : f32 to vector<8x128xf32>
    %685 = arith.addf %683, %684 : vector<8x128xf32>
    %c64_i32_358 = arith.constant 64 : i32
    %686 = tpu.dynamic_rotate %685 by %c64_i32_358 dim 1 : vector<8x128xf32>, i32 -> vector<8x128xf32>
    %c32_i32_359 = arith.constant 32 : i32
    %687 = tpu.dynamic_rotate %685 by %c32_i32_359 dim 1 : vector<8x128xf32>, i32 -> vector<8x128xf32>
    %688 = arith.addf %677, %12 : vector<8x128xf32>
    %689 = arith.mulf %686, %688 : vector<8x128xf32>
    %690 = arith.addf %674, %689 : vector<8x128xf32>
    %691 = math.tanh %690 : vector<8x128xf32>
    %692 = arith.subf %649, %691 : vector<8x128xf32>
    %693 = arith.mulf %687, %692 : vector<8x128xf32>
    %694 = arith.addf %691, %693 : vector<8x128xf32>
    %c1_360 = arith.constant 1 : index
    %c0_361 = arith.constant 0 : index
    %c0_362 = arith.constant 0 : index
    %695 = vector.load %arg1[%c1_360, %c0_361, %c0_362] : memref<2x128x128xf32, #tpu.memory_space<vmem>>, vector<1x128x128xf32>
    %696 = vector.shape_cast %695 : vector<1x128x128xf32> to vector<128x128xf32>
    %cst_363 = arith.constant dense<0.000000e+00> : vector<8x128xf32>
    %697 = tpu.matmul %649, %696, %cst_363 {dimension_numbers = #tpu.dot_dimension_numbers<[1], [0], [0], [1], [0, 0, 1, 1], [], []>} : vector<8x128xf32>, vector<128x128xf32>, vector<8x128xf32> -> vector<8x128xf32>
    %698 = arith.addf %697, %20 : vector<8x128xf32>
    %c1_364 = arith.constant 1 : index
    %c0_365 = arith.constant 0 : index
    %c0_366 = arith.constant 0 : index
    %699 = vector.load %arg2[%c1_364, %c0_365, %c0_366] : memref<2x128x128xf32, #tpu.memory_space<vmem>>, vector<1x128x128xf32>
    %700 = vector.shape_cast %699 : vector<1x128x128xf32> to vector<128x128xf32>
    %cst_367 = arith.constant dense<0.000000e+00> : vector<8x128xf32>
    %701 = tpu.matmul %673, %700, %cst_367 {dimension_numbers = #tpu.dot_dimension_numbers<[1], [0], [0], [1], [0, 0, 1, 1], [], []>} : vector<8x128xf32>, vector<128x128xf32>, vector<8x128xf32> -> vector<8x128xf32>
    %702 = arith.addf %698, %701 : vector<8x128xf32>
    %cst_368 = arith.constant 5.000000e-01 : f32
    %703 = vector.broadcast %cst_368 : f32 to vector<8x128xf32>
    %704 = arith.mulf %703, %702 : vector<8x128xf32>
    %705 = math.tanh %704 : vector<8x128xf32>
    %cst_369 = arith.constant 5.000000e-01 : f32
    %706 = vector.broadcast %cst_369 : f32 to vector<8x128xf32>
    %707 = arith.mulf %706, %705 : vector<8x128xf32>
    %cst_370 = arith.constant 5.000000e-01 : f32
    %708 = vector.broadcast %cst_370 : f32 to vector<8x128xf32>
    %709 = arith.addf %707, %708 : vector<8x128xf32>
    %c64_i32_371 = arith.constant 64 : i32
    %710 = tpu.dynamic_rotate %709 by %c64_i32_371 dim 1 : vector<8x128xf32>, i32 -> vector<8x128xf32>
    %c32_i32_372 = arith.constant 32 : i32
    %711 = tpu.dynamic_rotate %709 by %c32_i32_372 dim 1 : vector<8x128xf32>, i32 -> vector<8x128xf32>
    %712 = arith.addf %701, %16 : vector<8x128xf32>
    %713 = arith.mulf %710, %712 : vector<8x128xf32>
    %714 = arith.addf %698, %713 : vector<8x128xf32>
    %715 = math.tanh %714 : vector<8x128xf32>
    %716 = arith.subf %673, %715 : vector<8x128xf32>
    %717 = arith.mulf %711, %716 : vector<8x128xf32>
    %718 = arith.addf %715, %717 : vector<8x128xf32>
    %c1_373 = arith.constant 1 : index
    %c0_374 = arith.constant 0 : index
    %c0_375 = arith.constant 0 : index
    %719 = vector.load %arg1[%c1_373, %c0_374, %c0_375] : memref<2x128x128xf32, #tpu.memory_space<vmem>>, vector<1x128x128xf32>
    %720 = vector.shape_cast %719 : vector<1x128x128xf32> to vector<128x128xf32>
    %cst_376 = arith.constant dense<0.000000e+00> : vector<8x128xf32>
    %721 = tpu.matmul %694, %720, %cst_376 {dimension_numbers = #tpu.dot_dimension_numbers<[1], [0], [0], [1], [0, 0, 1, 1], [], []>} : vector<8x128xf32>, vector<128x128xf32>, vector<8x128xf32> -> vector<8x128xf32>
    %722 = arith.addf %721, %20 : vector<8x128xf32>
    %c1_377 = arith.constant 1 : index
    %c0_378 = arith.constant 0 : index
    %c0_379 = arith.constant 0 : index
    %723 = vector.load %arg2[%c1_377, %c0_378, %c0_379] : memref<2x128x128xf32, #tpu.memory_space<vmem>>, vector<1x128x128xf32>
    %724 = vector.shape_cast %723 : vector<1x128x128xf32> to vector<128x128xf32>
    %cst_380 = arith.constant dense<0.000000e+00> : vector<8x128xf32>
    %725 = tpu.matmul %718, %724, %cst_380 {dimension_numbers = #tpu.dot_dimension_numbers<[1], [0], [0], [1], [0, 0, 1, 1], [], []>} : vector<8x128xf32>, vector<128x128xf32>, vector<8x128xf32> -> vector<8x128xf32>
    %726 = arith.addf %722, %725 : vector<8x128xf32>
    %cst_381 = arith.constant 5.000000e-01 : f32
    %727 = vector.broadcast %cst_381 : f32 to vector<8x128xf32>
    %728 = arith.mulf %727, %726 : vector<8x128xf32>
    %729 = math.tanh %728 : vector<8x128xf32>
    %cst_382 = arith.constant 5.000000e-01 : f32
    %730 = vector.broadcast %cst_382 : f32 to vector<8x128xf32>
    %731 = arith.mulf %730, %729 : vector<8x128xf32>
    %cst_383 = arith.constant 5.000000e-01 : f32
    %732 = vector.broadcast %cst_383 : f32 to vector<8x128xf32>
    %733 = arith.addf %731, %732 : vector<8x128xf32>
    %c64_i32_384 = arith.constant 64 : i32
    %734 = tpu.dynamic_rotate %733 by %c64_i32_384 dim 1 : vector<8x128xf32>, i32 -> vector<8x128xf32>
    %c32_i32_385 = arith.constant 32 : i32
    %735 = tpu.dynamic_rotate %733 by %c32_i32_385 dim 1 : vector<8x128xf32>, i32 -> vector<8x128xf32>
    %736 = arith.addf %725, %16 : vector<8x128xf32>
    %737 = arith.mulf %734, %736 : vector<8x128xf32>
    %738 = arith.addf %722, %737 : vector<8x128xf32>
    %739 = math.tanh %738 : vector<8x128xf32>
    %740 = arith.subf %718, %739 : vector<8x128xf32>
    %741 = arith.mulf %735, %740 : vector<8x128xf32>
    %742 = arith.addf %739, %741 : vector<8x128xf32>
    %c0_386 = arith.constant 0 : index
    %c0_387 = arith.constant 0 : index
    %743 = vector.load %arg5[%c0_386, %c0_387] : memref<128x128xf32, #tpu.memory_space<vmem>>, vector<128x128xf32>
    %cst_388 = arith.constant dense<0.000000e+00> : vector<8x128xf32>
    %744 = tpu.matmul %742, %743, %cst_388 {dimension_numbers = #tpu.dot_dimension_numbers<[1], [0], [0], [1], [0, 0, 1, 1], [], []>} : vector<8x128xf32>, vector<128x128xf32>, vector<8x128xf32> -> vector<8x128xf32>
    %c0_389 = arith.constant 0 : index
    %c0_390 = arith.constant 0 : index
    %745 = vector.load %arg6[%c0_389, %c0_390] : memref<1x128xf32, #tpu.memory_space<vmem>>, vector<1x128xf32>
    %746 = vector.broadcast %745 : vector<1x128xf32> to vector<8x128xf32>
    %747 = arith.addf %744, %746 : vector<8x128xf32>
    %c0_391 = arith.constant 0 : index
    %c0_392 = arith.constant 0 : index
    %748 = vector.load %arg7[%c0_391, %c0_392] : memref<8x128xf32, #tpu.memory_space<vmem>>, vector<8x128xf32>
    tpu.vector_store %arg7[%c0_391, %c0_392], %747 {strides = array<i32>} : memref<8x128xf32, #tpu.memory_space<vmem>>, vector<8x128xf32>,
    return
  }
}

</mosaic_0001>

<llo_original>
// kernel: gru_forward.1
$region0: #{gru_forward.1}
  #allocation0 [shape = 'u32[]', space=smem, size = 0x4, offset = 0x4, fixed_abs, tag = 'smem constant byte address 0x4 - core index']
  #allocation1 [shape = 'u32[72,128]{1,0:T(1,128)}', space=vmem, size = 0x9000, scoped, tag = 'internal scratch']
  #allocation2 [shape = 'f32[128,128]{1,0:T(8,128)}', space=vmem, size = 0x10000, scoped, tag = 'scratch operand']
  %s0 = inlined_call_operand.vmem [shape: f32[128,128], index: 0, kind: input, shape index: {}]
  %s1 = inlined_call_operand.hbm [shape: f32[2,128,128], index: 1, kind: input, shape index: {}]
  %s2 = inlined_call_operand.hbm [shape: f32[2,128,128], index: 2, kind: input, shape index: {}]
  %s3 = inlined_call_operand.vmem [shape: f32[2,1,128], index: 3, kind: input, shape index: {}]
  %s4 = inlined_call_operand.vmem [shape: f32[2,1,128], index: 4, kind: input, shape index: {}]
  %s5 = inlined_call_operand.vmem [shape: f32[128,128], index: 5, kind: input, shape index: {}]
  %s6 = inlined_call_operand.vmem [shape: f32[1,128], index: 6, kind: input, shape index: {}]
  %s7 = inlined_call_operand.hbm [shape: f32[8,128], index: 7, kind: output, shape index: {}]
  %s8 = sld [smem:[#allocation0]]
  $region46: #{gru_forward.1} parent=0
    _
  %s10 = ssub.s32 1, %s8
  %s11 = scalar_select 0, %s10, %s8
  $region1: #{gru_forward.1} parent=0
    #allocation3 [shape = 'u8[131072]{0}', space=vmem, size = 0x20000, scoped, tag = 'input window, operand 1, single buffered']
    #allocation4 [shape = 's32[1]{0}', space=sflag, size = 0x4, scoped, tag = 'scoped memory for gru_forward.1']
    #allocation5 [shape = 's32[1]{0}', space=sflag, size = 0x4, scoped, tag = 'scoped memory for gru_forward.1']
    #allocation6 [shape = 'u8[131072]{0}', space=vmem, size = 0x20000, scoped, tag = 'input window, operand 2, single buffered']
    #allocation7 [shape = 's32[1]{0}', space=sflag, size = 0x4, scoped, tag = 'scoped memory for gru_forward.1']
    #allocation8 [shape = 'u8[4096]{0}', space=vmem, size = 0x1000, scoped, tag = 'output window, operand 0, single buffered']
    %12 = vsyncpa [#allocation4], 0
    %13 = vsyncpa [#allocation7], 0
    %14 = vsyncpa [#allocation5], 0
    // Predicated region
    $region2: #{gru_forward.1} parent=1 // pred_check
      _
    $region3: #{gru_forward.1} parent=1 // pred_check_branch
      %16 = sbr.rel (0) target = $region5
    $region4: #{gru_forward.1} parent=1 // pred_region
      _
    $region5: #{gru_forward.1} parent=1 // pred_fallthru
      _
    // Predicated region
    $region6: #{gru_forward.1} parent=1 // pred_check
      _
    $region7: #{gru_forward.1} parent=1 // pred_check_branch
      %18 = sbr.rel (0) target = $region9
    $region8: #{gru_forward.1} parent=1 // pred_region
      %20 = vsyncadd [#allocation4], 0
      %s21 = sshll.u32 %s1, 4
      %s22 = int_to_ptr.hbm [resolvable:$true] %s21
      %s23 = sshll.u32 [#allocation3], 4
      %s24 = int_to_ptr.vmem [resolvable:$true] %s23
      %29 = dma.hbm_to_vmem [thread:$0]  %s22, 4096, %s24, [#allocation4], 128, 128, 8
    $region9: #{gru_forward.1} parent=1 // pred_fallthru
      _
    // Predicated region
    $region10: #{gru_forward.1} parent=1 // pred_check
      _
    $region11: #{gru_forward.1} parent=1 // pred_check_branch
      %31 = sbr.rel (0) target = $region13
    $region12: #{gru_forward.1} parent=1 // pred_region
      %33 = vsyncadd [#allocation7], 0
      %s34 = sshll.u32 %s2, 4
      %s35 = int_to_ptr.hbm [resolvable:$true] %s34
      %s36 = sshll.u32 [#allocation6], 4
      %s37 = int_to_ptr.vmem [resolvable:$true] %s36
      %42 = dma.hbm_to_vmem [thread:$0]  %s35, 4096, %s37, [#allocation7], 128, 128, 8
    $region13: #{gru_forward.1} parent=1 // pred_fallthru
      _
    // Predicated region
    $region14: #{gru_forward.1} parent=1 // pred_check
      _
    $region15: #{gru_forward.1} parent=1 // pred_check_branch
      %44 = sbr.rel (0) target = $region17
    $region16: #{gru_forward.1} parent=1 // pred_region
      _
    $region17: #{gru_forward.1} parent=1 // pred_fallthru
      _
    // Predicated region
    $region18: #{gru_forward.1} parent=1 // pred_check
      _
    $region19: #{gru_forward.1} parent=1 // pred_check_branch
      %46 = sbr.rel (0) target = $region21
    $region20: #{gru_forward.1} parent=1 // pred_region
      _
    $region21: #{gru_forward.1} parent=1 // pred_fallthru
      _
    // Predicated region
    $region22: #{gru_forward.1} parent=1 // pred_check
      _
    $region23: #{gru_forward.1} parent=1 // pred_check_branch
      %48 = sbr.rel (0) target = $region25
    $region24: #{gru_forward.1} parent=1 // pred_region
      _
    $region25: #{gru_forward.1} parent=1 // pred_fallthru
      _
    // Predicated region
    $region26: #{gru_forward.1} parent=1 // pred_check
      _
    $region27: #{gru_forward.1} parent=1 // pred_check_branch
      %50 = sbr.rel (0) target = $region29
    $region28: #{gru_forward.1} parent=1 // pred_region
      _
    $region29: #{gru_forward.1} parent=1 // pred_fallthru
      _
    // Predicated region
    $region30: #{gru_forward.1} parent=1 // pred_check
      _
    $region31: #{gru_forward.1} parent=1 // pred_check_branch
      %52 = sbr.rel (0) target = $region33
    $region32: #{gru_forward.1} parent=1 // pred_region
      %54 = dma.done [#allocation4], 4096
    $region33: #{gru_forward.1} parent=1 // pred_fallthru
      _
    // Predicated region
    $region34: #{gru_forward.1} parent=1 // pred_check
      _
    $region35: #{gru_forward.1} parent=1 // pred_check_branch
      %56 = sbr.rel (0) target = $region37
    $region36: #{gru_forward.1} parent=1 // pred_region
      %58 = dma.done [#allocation7], 4096
    $region37: #{gru_forward.1} parent=1 // pred_fallthru
      _
    %v59 = vld [vmem:[%s0] sm:$0xff]
    %v60 = vld [vmem:[%s0 + $0x8] sm:$0xff]
    %v61 = vld [vmem:[%s0 + $0x10] sm:$0xff]
    %v62 = vld [vmem:[%s0 + $0x18] sm:$0xff]
    %v63 = vld [vmem:[%s0 + $0x20] sm:$0xff]
    %v64 = vld [vmem:[%s0 + $0x28] sm:$0xff]
    %v65 = vld [vmem:[%s0 + $0x30] sm:$0xff]
    %v66 = vld [vmem:[%s0 + $0x38] sm:$0xff]
    %v67 = vld [vmem:[%s0 + $0x40] sm:$0xff]
    %v68 = vld [vmem:[%s0 + $0x48] sm:$0xff]
    %v69 = vld [vmem:[%s0 + $0x50] sm:$0xff]
    %v70 = vld [vmem:[%s0 + $0x58] sm:$0xff]
    %v71 = vld [vmem:[%s0 + $0x60] sm:$0xff]
    %v72 = vld [vmem:[%s0 + $0x68] sm:$0xff]
    %v73 = vld [vmem:[%s0 + $0x70] sm:$0xff]
    %v74 = vld [vmem:[%s0 + $0x78] sm:$0xff]
    %v75 = vld [vmem:[#allocation3] sm:$0xff]
    %v76 = vld [vmem:[#allocation3 + $0x8] sm:$0xff]
    %v77 = vld [vmem:[#allocation3 + $0x10] sm:$0xff]
    %v78 = vld [vmem:[#allocation3 + $0x18] sm:$0xff]
    %v79 = vld [vmem:[#allocation3 + $0x20] sm:$0xff]
    %v80 = vld [vmem:[#allocation3 + $0x28] sm:$0xff]
    %v81 = vld [vmem:[#allocation3 + $0x30] sm:$0xff]
    %v82 = vld [vmem:[#allocation3 + $0x38] sm:$0xff]
    %v83 = vld [vmem:[#allocation3 + $0x40] sm:$0xff]
    %v84 = vld [vmem:[#allocation3 + $0x48] sm:$0xff]
    %v85 = vld [vmem:[#allocation3 + $0x50] sm:$0xff]
    %v86 = vld [vmem:[#allocation3 + $0x58] sm:$0xff]
    %v87 = vld [vmem:[#allocation3 + $0x60] sm:$0xff]
    %v88 = vld [vmem:[#allocation3 + $0x68] sm:$0xff]
    %v89 = vld [vmem:[#allocation3 + $0x70] sm:$0xff]
    %v90 = vld [vmem:[#allocation3 + $0x78] sm:$0xff]
    %v91 = vld [vmem:[%s3] sm:$0x1]
    %v93 = vperm.slane %v91, 0
    %95 = vmatpush.msra.mxu0 %v90
    %96 = vmatpush.msra.mxu0 %v89
    %97 = vmatpush.msra.mxu0 %v88
    %98 = vmatpush.msra.mxu0 %v87
    %99 = vmatpush.msra.mxu0 %v86
    %100 = vmatpush.msra.mxu0 %v85
    %101 = vmatpush.msra.mxu0 %v84
    %102 = vmatpush.msra.mxu0 %v83
    %103 = vmatpush.msra.mxu0 %v82
    %104 = vmatpush.msra.mxu0 %v81
    %105 = vmatpush.msra.mxu0 %v80
    %106 = vmatpush.msra.mxu0 %v79
    %107 = vmatpush.msra.mxu0 %v78
    %108 = vmatpush.msra.mxu0 %v77
    %109 = vmatpush.msra.mxu0 %v76
    %110 = vmatpush.msra.mxu0 %v75
    %111 = vmatmul.f32.gmra.mxu0 %v59
    %v112 = vpop.f32.mrf.mxu0
    %v113 = vadd.f32 %v93, %v112
    %114 = vmatmul.f32.gmra.mxu0 %v60
    %v115 = vpop.f32.mrf.mxu0
    %v116 = vadd.f32 %v93, %v115
    %117 = vmatmul.f32.gmra.mxu0 %v61
    %v118 = vpop.f32.mrf.mxu0
    %v119 = vadd.f32 %v93, %v118
    %120 = vmatmul.f32.gmra.mxu0 %v62
    %v121 = vpop.f32.mrf.mxu0
    %v122 = vadd.f32 %v93, %v121
    %123 = vmatmul.f32.gmra.mxu0 %v63
    %v124 = vpop.f32.mrf.mxu0
    %v125 = vadd.f32 %v93, %v124
    %126 = vmatmul.f32.gmra.mxu0 %v64
    %v127 = vpop.f32.mrf.mxu0
    %v128 = vadd.f32 %v93, %v127
    %129 = vmatmul.f32.gmra.mxu0 %v65
    %v130 = vpop.f32.mrf.mxu0
    %v131 = vadd.f32 %v93, %v130
    %132 = vmatmul.f32.gmra.mxu0 %v66
    %v133 = vpop.f32.mrf.mxu0
    %v134 = vadd.f32 %v93, %v133
    %135 = vmatmul.f32.gmra.mxu0 %v67
    %v136 = vpop.f32.mrf.mxu0
    %v137 = vadd.f32 %v93, %v136
    %138 = vmatmul.f32.gmra.mxu0 %v68
    %v139 = vpop.f32.mrf.mxu0
    %v140 = vadd.f32 %v93, %v139
    %141 = vmatmul.f32.gmra.mxu0 %v69
    %v142 = vpop.f32.mrf.mxu0
    %v143 = vadd.f32 %v93, %v142
    %144 = vmatmul.f32.gmra.mxu0 %v70
    %v145 = vpop.f32.mrf.mxu0
    %v146 = vadd.f32 %v93, %v145
    %147 = vmatmul.f32.gmra.mxu0 %v71
    %v148 = vpop.f32.mrf.mxu0
    %v149 = vadd.f32 %v93, %v148
    %150 = vmatmul.f32.gmra.mxu0 %v72
    %v151 = vpop.f32.mrf.mxu0
    %v152 = vadd.f32 %v93, %v151
    %153 = vmatmul.f32.gmra.mxu0 %v73
    %v154 = vpop.f32.mrf.mxu0
    %v155 = vadd.f32 %v93, %v154
    %156 = vmatmul.f32.gmra.mxu0 %v74
    %v157 = vpop.f32.mrf.mxu0
    %v158 = vadd.f32 %v93, %v157
    %159 = vdwg.mxu0
    %160 = vst [vmem:[#allocation2] sm:$0xff] %v113
    %161 = vst [vmem:[#allocation2 + $0x8] sm:$0xff] %v116
    %162 = vst [vmem:[#allocation2 + $0x10] sm:$0xff] %v119
    %163 = vst [vmem:[#allocation2 + $0x18] sm:$0xff] %v122
    %164 = vst [vmem:[#allocation2 + $0x20] sm:$0xff] %v125
    %165 = vst [vmem:[#allocation2 + $0x28] sm:$0xff] %v128
    %166 = vst [vmem:[#allocation2 + $0x30] sm:$0xff] %v131
    %167 = vst [vmem:[#allocation2 + $0x38] sm:$0xff] %v134
    %168 = vst [vmem:[#allocation2 + $0x40] sm:$0xff] %v137
    %169 = vst [vmem:[#allocation2 + $0x48] sm:$0xff] %v140
    %170 = vst [vmem:[#allocation2 + $0x50] sm:$0xff] %v143
    %171 = vst [vmem:[#allocation2 + $0x58] sm:$0xff] %v146
    %172 = vst [vmem:[#allocation2 + $0x60] sm:$0xff] %v149
    %173 = vst [vmem:[#allocation2 + $0x68] sm:$0xff] %v152
    %174 = vst [vmem:[#allocation2 + $0x70] sm:$0xff] %v155
    %175 = vst [vmem:[#allocation2 + $0x78] sm:$0xff] %v158
    %v176 = vld [vmem:[%s4] sm:$0x1]
    %v178 = vperm.slane %v176, 0
    %s180 = scalar_lea.vmem %s4, 1
    %v181 = vld [vmem:[%s180] sm:$0x1]
    %v183 = vperm.slane %v181, 0
    %s185 = scalar_lea.vmem %s3, 1
    %v186 = vld [vmem:[%s185] sm:$0x1]
    %v188 = vperm.slane %v186, 0
    %v190 = vld [vmem:[#allocation2] sm:$0xff]
    %v191 = vld [vmem:[#allocation6] sm:$0xff]
    %v192 = vld [vmem:[#allocation6 + $0x8] sm:$0xff]
    %v193 = vld [vmem:[#allocation6 + $0x10] sm:$0xff]
    %v194 = vld [vmem:[#allocation6 + $0x18] sm:$0xff]
    %v195 = vld [vmem:[#allocation6 + $0x20] sm:$0xff]
    %v196 = vld [vmem:[#allocation6 + $0x28] sm:$0xff]
    %v197 = vld [vmem:[#allocation6 + $0x30] sm:$0xff]
    %v198 = vld [vmem:[#allocation6 + $0x38] sm:$0xff]
    %v199 = vld [vmem:[#allocation6 + $0x40] sm:$0xff]
    %v200 = vld [vmem:[#allocation6 + $0x48] sm:$0xff]
    %v201 = vld [vmem:[#allocation6 + $0x50] sm:$0xff]
    %v202 = vld [vmem:[#allocation6 + $0x58] sm:$0xff]
    %v203 = vld [vmem:[#allocation6 + $0x60] sm:$0xff]
    %v204 = vld [vmem:[#allocation6 + $0x68] sm:$0xff]
    %v205 = vld [vmem:[#allocation6 + $0x70] sm:$0xff]
    %v206 = vld [vmem:[#allocation6 + $0x78] sm:$0xff]
    %207 = vmatpush.msra.mxu0 %v206
    %208 = vmatpush.msra.mxu0 %v205
    %209 = vmatpush.msra.mxu0 %v204
    %210 = vmatpush.msra.mxu0 %v203
    %211 = vmatpush.msra.mxu0 %v202
    %212 = vmatpush.msra.mxu0 %v201
    %213 = vmatpush.msra.mxu0 %v200
    %214 = vmatpush.msra.mxu0 %v199
    %215 = vmatpush.msra.mxu0 %v198
    %216 = vmatpush.msra.mxu0 %v197
    %217 = vmatpush.msra.mxu0 %v196
    %218 = vmatpush.msra.mxu0 %v195
    %219 = vmatpush.msra.mxu0 %v194
    %220 = vmatpush.msra.mxu0 %v193
    %221 = vmatpush.msra.mxu0 %v192
    %222 = vmatpush.msra.mxu0 %v191
    %223 = vmatmul.f32.gmra.mxu0 0.0
    %v224 = vpop.f32.mrf.mxu0
    %v225 = vadd.f32 0.0, %v224
    %226 = vdwg.mxu0
    %v227 = vadd.f32 %v190, %v225
    %v228 = vmul.f32 %v227, 0.5
    %v229 = vtanh.pop %v228
    %v230 = vmul.f32 %v229, 0.5
    %v231 = vadd.f32 %v230, 0.5
    %232 = vrot.lane.b32.xlu0 %v231, 64
    %v233 = vpop.permute.xlu0 %232
    %234 = vrot.lane.b32.xlu0 %v231, 32
    %v235 = vpop.permute.xlu0 %234
    %v236 = vadd.f32 %v225, %v178
    %v237 = vmul.f32 %v233, %v236
    %v238 = vadd.f32 %v190, %v237
    %v239 = vtanh.pop %v238
    %v240 = vsub.f32 0.0, %v239
    %v241 = vmul.f32 %v235, %v240
    %v242 = vadd.f32 %v239, %v241
    %v243 = vld [vmem:[#allocation2 + $0x8] sm:$0xff]
    %244 = vmatpush.msra.mxu0 %v206
    %245 = vmatpush.msra.mxu0 %v205
    %246 = vmatpush.msra.mxu0 %v204
    %247 = vmatpush.msra.mxu0 %v203
    %248 = vmatpush.msra.mxu0 %v202
    %249 = vmatpush.msra.mxu0 %v201
    %250 = vmatpush.msra.mxu0 %v200
    %251 = vmatpush.msra.mxu0 %v199
    %252 = vmatpush.msra.mxu0 %v198
    %253 = vmatpush.msra.mxu0 %v197
    %254 = vmatpush.msra.mxu0 %v196
    %255 = vmatpush.msra.mxu0 %v195
    %256 = vmatpush.msra.mxu0 %v194
    %257 = vmatpush.msra.mxu0 %v193
    %258 = vmatpush.msra.mxu0 %v192
    %259 = vmatpush.msra.mxu0 %v191
    %260 = vmatmul.f32.gmra.mxu0 %v242
    %v261 = vpop.f32.mrf.mxu0
    %v262 = vadd.f32 0.0, %v261
    %263 = vdwg.mxu0
    %v264 = vadd.f32 %v243, %v262
    %v265 = vmul.f32 %v264, 0.5
    %v266 = vtanh.pop %v265
    %v267 = vmul.f32 %v266, 0.5
    %v268 = vadd.f32 %v267, 0.5
    %269 = vrot.lane.b32.xlu0 %v268, 64
    %v270 = vpop.permute.xlu0 %269
    %271 = vrot.lane.b32.xlu0 %v268, 32
    %v272 = vpop.permute.xlu0 %271
    %v273 = vadd.f32 %v262, %v178
    %v274 = vmul.f32 %v270, %v273
    %v275 = vadd.f32 %v243, %v274
    %v276 = vtanh.pop %v275
    %v277 = vsub.f32 %v242, %v276
    %v278 = vmul.f32 %v272, %v277
    %v279 = vadd.f32 %v276, %v278
    %s280 = scalar_lea.vmem [#allocation3], 128
    %v281 = vld [vmem:[%s280] sm:$0xff]
    %v282 = vld [vmem:[%s280 + $0x8] sm:$0xff]
    %v283 = vld [vmem:[%s280 + $0x10] sm:$0xff]
    %v284 = vld [vmem:[%s280 + $0x18] sm:$0xff]
    %v285 = vld [vmem:[%s280 + $0x20] sm:$0xff]
    %v286 = vld [vmem:[%s280 + $0x28] sm:$0xff]
    %v287 = vld [vmem:[%s280 + $0x30] sm:$0xff]
    %v288 = vld [vmem:[%s280 + $0x38] sm:$0xff]
    %v289 = vld [vmem:[%s280 + $0x40] sm:$0xff]
    %v290 = vld [vmem:[%s280 + $0x48] sm:$0xff]
    %v291 = vld [vmem:[%s280 + $0x50] sm:$0xff]
    %v292 = vld [vmem:[%s280 + $0x58] sm:$0xff]
    %v293 = vld [vmem:[%s280 + $0x60] sm:$0xff]
    %v294 = vld [vmem:[%s280 + $0x68] sm:$0xff]
    %v295 = vld [vmem:[%s280 + $0x70] sm:$0xff]
    %v296 = vld [vmem:[%s280 + $0x78] sm:$0xff]
    %297 = vmatpush.msra.mxu0 %v296
    %298 = vmatpush.msra.mxu0 %v295
    %299 = vmatpush.msra.mxu0 %v294
    %300 = vmatpush.msra.mxu0 %v293
    %301 = vmatpush.msra.mxu0 %v292
    %302 = vmatpush.msra.mxu0 %v291
    %303 = vmatpush.msra.mxu0 %v290
    %304 = vmatpush.msra.mxu0 %v289
    %305 = vmatpush.msra.mxu0 %v288
    %306 = vmatpush.msra.mxu0 %v287
    %307 = vmatpush.msra.mxu0 %v286
    %308 = vmatpush.msra.mxu0 %v285
    %309 = vmatpush.msra.mxu0 %v284
    %310 = vmatpush.msra.mxu0 %v283
    %311 = vmatpush.msra.mxu0 %v282
    %312 = vmatpush.msra.mxu0 %v281
    %313 = vmatmul.f32.gmra.mxu0 %v242
    %v314 = vpop.f32.mrf.mxu0
    %v315 = vadd.f32 %v188, %v314
    %316 = vdwg.mxu0
    %s317 = scalar_lea.vmem [#allocation6], 128
    %v318 = vld [vmem:[%s317] sm:$0xff]
    %v319 = vld [vmem:[%s317 + $0x8] sm:$0xff]
    %v320 = vld [vmem:[%s317 + $0x10] sm:$0xff]
    %v321 = vld [vmem:[%s317 + $0x18] sm:$0xff]
    %v322 = vld [vmem:[%s317 + $0x20] sm:$0xff]
    %v323 = vld [vmem:[%s317 + $0x28] sm:$0xff]
    %v324 = vld [vmem:[%s317 + $0x30] sm:$0xff]
    %v325 = vld [vmem:[%s317 + $0x38] sm:$0xff]
    %v326 = vld [vmem:[%s317 + $0x40] sm:$0xff]
    %v327 = vld [vmem:[%s317 + $0x48] sm:$0xff]
    %v328 = vld [vmem:[%s317 + $0x50] sm:$0xff]
    %v329 = vld [vmem:[%s317 + $0x58] sm:$0xff]
    %v330 = vld [vmem:[%s317 + $0x60] sm:$0xff]
    %v331 = vld [vmem:[%s317 + $0x68] sm:$0xff]
    %v332 = vld [vmem:[%s317 + $0x70] sm:$0xff]
    %v333 = vld [vmem:[%s317 + $0x78] sm:$0xff]
    %334 = vmatpush.msra.mxu0 %v333
    %335 = vmatpush.msra.mxu0 %v332
    %336 = vmatpush.msra.mxu0 %v331
    %337 = vmatpush.msra.mxu0 %v330
    %338 = vmatpush.msra.mxu0 %v329
    %339 = vmatpush.msra.mxu0 %v328
    %340 = vmatpush.msra.mxu0 %v327
    %341 = vmatpush.msra.mxu0 %v326
    %342 = vmatpush.msra.mxu0 %v325
    %343 = vmatpush.msra.mxu0 %v324
    %344 = vmatpush.msra.mxu0 %v323
    %345 = vmatpush.msra.mxu0 %v322
    %346 = vmatpush.msra.mxu0 %v321
    %347 = vmatpush.msra.mxu0 %v320
    %348 = vmatpush.msra.mxu0 %v319
    %349 = vmatpush.msra.mxu0 %v318
    %350 = vmatmul.f32.gmra.mxu0 0.0
    %v351 = vpop.f32.mrf.mxu0
    %v352 = vadd.f32 0.0, %v351
    %353 = vdwg.mxu0
    %v354 = vadd.f32 %v315, %v352
    %v355 = vmul.f32 %v354, 0.5
    %v356 = vtanh.pop %v355
    %v357 = vmul.f32 %v356, 0.5
    %v358 = vadd.f32 %v357, 0.5
    %359 = vrot.lane.b32.xlu0 %v358, 64
    %v360 = vpop.permute.xlu0 %359
    %361 = vrot.lane.b32.xlu0 %v358, 32
    %v362 = vpop.permute.xlu0 %361
    %v363 = vadd.f32 %v352, %v183
    %v364 = vmul.f32 %v360, %v363
    %v365 = vadd.f32 %v315, %v364
    %v366 = vtanh.pop %v365
    %v367 = vsub.f32 0.0, %v366
    %v368 = vmul.f32 %v362, %v367
    %v369 = vadd.f32 %v366, %v368
    %v370 = vld [vmem:[#allocation2 + $0x10] sm:$0xff]
    %371 = vmatpush.msra.mxu0 %v206
    %372 = vmatpush.msra.mxu0 %v205
    %373 = vmatpush.msra.mxu0 %v204
    %374 = vmatpush.msra.mxu0 %v203
    %375 = vmatpush.msra.mxu0 %v202
    %376 = vmatpush.msra.mxu0 %v201
    %377 = vmatpush.msra.mxu0 %v200
    %378 = vmatpush.msra.mxu0 %v199
    %379 = vmatpush.msra.mxu0 %v198
    %380 = vmatpush.msra.mxu0 %v197
    %381 = vmatpush.msra.mxu0 %v196
    %382 = vmatpush.msra.mxu0 %v195
    %383 = vmatpush.msra.mxu0 %v194
    %384 = vmatpush.msra.mxu0 %v193
    %385 = vmatpush.msra.mxu0 %v192
    %386 = vmatpush.msra.mxu0 %v191
    %387 = vmatmul.f32.gmra.mxu0 %v279
    %v388 = vpop.f32.mrf.mxu0
    %v389 = vadd.f32 0.0, %v388
    %390 = vdwg.mxu0
    %v391 = vadd.f32 %v370, %v389
    %v392 = vmul.f32 %v391, 0.5
    %v393 = vtanh.pop %v392
    %v394 = vmul.f32 %v393, 0.5
    %v395 = vadd.f32 %v394, 0.5
    %396 = vrot.lane.b32.xlu0 %v395, 64
    %v397 = vpop.permute.xlu0 %396
    %398 = vrot.lane.b32.xlu0 %v395, 32
    %v399 = vpop.permute.xlu0 %398
    %v400 = vadd.f32 %v389, %v178
    %v401 = vmul.f32 %v397, %v400
    %v402 = vadd.f32 %v370, %v401
    %v403 = vtanh.pop %v402
    %v404 = vsub.f32 %v279, %v403
    %v405 = vmul.f32 %v399, %v404
    %v406 = vadd.f32 %v403, %v405
    %407 = vmatpush.msra.mxu0 %v296
    %408 = vmatpush.msra.mxu0 %v295
    %409 = vmatpush.msra.mxu0 %v294
    %410 = vmatpush.msra.mxu0 %v293
    %411 = vmatpush.msra.mxu0 %v292
    %412 = vmatpush.msra.mxu0 %v291
    %413 = vmatpush.msra.mxu0 %v290
    %414 = vmatpush.msra.mxu0 %v289
    %415 = vmatpush.msra.mxu0 %v288
    %416 = vmatpush.msra.mxu0 %v287
    %417 = vmatpush.msra.mxu0 %v286
    %418 = vmatpush.msra.mxu0 %v285
    %419 = vmatpush.msra.mxu0 %v284
    %420 = vmatpush.msra.mxu0 %v283
    %421 = vmatpush.msra.mxu0 %v282
    %422 = vmatpush.msra.mxu0 %v281
    %423 = vmatmul.f32.gmra.mxu0 %v279
    %v424 = vpop.f32.mrf.mxu0
    %v425 = vadd.f32 %v188, %v424
    %426 = vdwg.mxu0
    %427 = vmatpush.msra.mxu0 %v333
    %428 = vmatpush.msra.mxu0 %v332
    %429 = vmatpush.msra.mxu0 %v331
    %430 = vmatpush.msra.mxu0 %v330
    %431 = vmatpush.msra.mxu0 %v329
    %432 = vmatpush.msra.mxu0 %v328
    %433 = vmatpush.msra.mxu0 %v327
    %434 = vmatpush.msra.mxu0 %v326
    %435 = vmatpush.msra.mxu0 %v325
    %436 = vmatpush.msra.mxu0 %v324
    %437 = vmatpush.msra.mxu0 %v323
    %438 = vmatpush.msra.mxu0 %v322
    %439 = vmatpush.msra.mxu0 %v321
    %440 = vmatpush.msra.mxu0 %v320
    %441 = vmatpush.msra.mxu0 %v319
    %442 = vmatpush.msra.mxu0 %v318
    %443 = vmatmul.f32.gmra.mxu0 %v369
    %v444 = vpop.f32.mrf.mxu0
    %v445 = vadd.f32 0.0, %v444
    %446 = vdwg.mxu0
    %v447 = vadd.f32 %v425, %v445
    %v448 = vmul.f32 %v447, 0.5
    %v449 = vtanh.pop %v448
    %v450 = vmul.f32 %v449, 0.5
    %v451 = vadd.f32 %v450, 0.5
    %452 = vrot.lane.b32.xlu0 %v451, 64
    %v453 = vpop.permute.xlu0 %452
    %454 = vrot.lane.b32.xlu0 %v451, 32
    %v455 = vpop.permute.xlu0 %454
    %v456 = vadd.f32 %v445, %v183
    %v457 = vmul.f32 %v453, %v456
    %v458 = vadd.f32 %v425, %v457
    %v459 = vtanh.pop %v458
    %v460 = vsub.f32 %v369, %v459
    %v461 = vmul.f32 %v455, %v460
    %v462 = vadd.f32 %v459, %v461
    %v463 = vld [vmem:[#allocation2 + $0x18] sm:$0xff]
    %464 = vmatpush.msra.mxu0 %v206
    %465 = vmatpush.msra.mxu0 %v205
    %466 = vmatpush.msra.mxu0 %v204
    %467 = vmatpush.msra.mxu0 %v203
    %468 = vmatpush.msra.mxu0 %v202
    %469 = vmatpush.msra.mxu0 %v201
    %470 = vmatpush.msra.mxu0 %v200
    %471 = vmatpush.msra.mxu0 %v199
    %472 = vmatpush.msra.mxu0 %v198
    %473 = vmatpush.msra.mxu0 %v197
    %474 = vmatpush.msra.mxu0 %v196
    %475 = vmatpush.msra.mxu0 %v195
    %476 = vmatpush.msra.mxu0 %v194
    %477 = vmatpush.msra.mxu0 %v193
    %478 = vmatpush.msra.mxu0 %v192
    %479 = vmatpush.msra.mxu0 %v191
    %480 = vmatmul.f32.gmra.mxu0 %v406
    %v481 = vpop.f32.mrf.mxu0
    %v482 = vadd.f32 0.0, %v481
    %483 = vdwg.mxu0
    %v484 = vadd.f32 %v463, %v482
    %v485 = vmul.f32 %v484, 0.5
    %v486 = vtanh.pop %v485
    %v487 = vmul.f32 %v486, 0.5
    %v488 = vadd.f32 %v487, 0.5
    %489 = vrot.lane.b32.xlu0 %v488, 64
    %v490 = vpop.permute.xlu0 %489
    %491 = vrot.lane.b32.xlu0 %v488, 32
    %v492 = vpop.permute.xlu0 %491
    %v493 = vadd.f32 %v482, %v178
    %v494 = vmul.f32 %v490, %v493
    %v495 = vadd.f32 %v463, %v494
    %v496 = vtanh.pop %v495
    %v497 = vsub.f32 %v406, %v496
    %v498 = vmul.f32 %v492, %v497
    %v499 = vadd.f32 %v496, %v498
    %500 = vmatpush.msra.mxu0 %v296
    %501 = vmatpush.msra.mxu0 %v295
    %502 = vmatpush.msra.mxu0 %v294
    %503 = vmatpush.msra.mxu0 %v293
    %504 = vmatpush.msra.mxu0 %v292
    %505 = vmatpush.msra.mxu0 %v291
    %506 = vmatpush.msra.mxu0 %v290
    %507 = vmatpush.msra.mxu0 %v289
    %508 = vmatpush.msra.mxu0 %v288
    %509 = vmatpush.msra.mxu0 %v287
    %510 = vmatpush.msra.mxu0 %v286
    %511 = vmatpush.msra.mxu0 %v285
    %512 = vmatpush.msra.mxu0 %v284
    %513 = vmatpush.msra.mxu0 %v283
    %514 = vmatpush.msra.mxu0 %v282
    %515 = vmatpush.msra.mxu0 %v281
    %516 = vmatmul.f32.gmra.mxu0 %v406
    %v517 = vpop.f32.mrf.mxu0
    %v518 = vadd.f32 %v188, %v517
    %519 = vdwg.mxu0
    %520 = vmatpush.msra.mxu0 %v333
    %521 = vmatpush.msra.mxu0 %v332
    %522 = vmatpush.msra.mxu0 %v331
    %523 = vmatpush.msra.mxu0 %v330
    %524 = vmatpush.msra.mxu0 %v329
    %525 = vmatpush.msra.mxu0 %v328
    %526 = vmatpush.msra.mxu0 %v327
    %527 = vmatpush.msra.mxu0 %v326
    %528 = vmatpush.msra.mxu0 %v325
    %529 = vmatpush.msra.mxu0 %v324
    %530 = vmatpush.msra.mxu0 %v323
    %531 = vmatpush.msra.mxu0 %v322
    %532 = vmatpush.msra.mxu0 %v321
    %533 = vmatpush.msra.mxu0 %v320
    %534 = vmatpush.msra.mxu0 %v319
    %535 = vmatpush.msra.mxu0 %v318
    %536 = vmatmul.f32.gmra.mxu0 %v462
    %v537 = vpop.f32.mrf.mxu0
    %v538 = vadd.f32 0.0, %v537
    %539 = vdwg.mxu0
    %v540 = vadd.f32 %v518, %v538
    %v541 = vmul.f32 %v540, 0.5
    %v542 = vtanh.pop %v541
    %v543 = vmul.f32 %v542, 0.5
    %v544 = vadd.f32 %v543, 0.5
    %545 = vrot.lane.b32.xlu0 %v544, 64
    %v546 = vpop.permute.xlu0 %545
    %547 = vrot.lane.b32.xlu0 %v544, 32
    %v548 = vpop.permute.xlu0 %547
    %v549 = vadd.f32 %v538, %v183
    %v550 = vmul.f32 %v546, %v549
    %v551 = vadd.f32 %v518, %v550
    %v552 = vtanh.pop %v551
    %v553 = vsub.f32 %v462, %v552
    %v554 = vmul.f32 %v548, %v553
    %v555 = vadd.f32 %v552, %v554
    %v556 = vld [vmem:[#allocation2 + $0x20] sm:$0xff]
    %557 = vmatpush.msra.mxu0 %v206
    %558 = vmatpush.msra.mxu0 %v205
    %559 = vmatpush.msra.mxu0 %v204
    %560 = vmatpush.msra.mxu0 %v203
    %561 = vmatpush.msra.mxu0 %v202
    %562 = vmatpush.msra.mxu0 %v201
    %563 = vmatpush.msra.mxu0 %v200
    %564 = vmatpush.msra.mxu0 %v199
    %565 = vmatpush.msra.mxu0 %v198
    %566 = vmatpush.msra.mxu0 %v197
    %567 = vmatpush.msra.mxu0 %v196
    %568 = vmatpush.msra.mxu0 %v195
    %569 = vmatpush.msra.mxu0 %v194
    %570 = vmatpush.msra.mxu0 %v193
    %571 = vmatpush.msra.mxu0 %v192
    %572 = vmatpush.msra.mxu0 %v191
    %573 = vmatmul.f32.gmra.mxu0 %v499
    %v574 = vpop.f32.mrf.mxu0
    %v575 = vadd.f32 0.0, %v574
    %576 = vdwg.mxu0
    %v577 = vadd.f32 %v556, %v575
    %v578 = vmul.f32 %v577, 0.5
    %v579 = vtanh.pop %v578
    %v580 = vmul.f32 %v579, 0.5
    %v581 = vadd.f32 %v580, 0.5
    %582 = vrot.lane.b32.xlu0 %v581, 64
    %v583 = vpop.permute.xlu0 %582
    %584 = vrot.lane.b32.xlu0 %v581, 32
    %v585 = vpop.permute.xlu0 %584
    %v586 = vadd.f32 %v575, %v178
    %v587 = vmul.f32 %v583, %v586
    %v588 = vadd.f32 %v556, %v587
    %v589 = vtanh.pop %v588
    %v590 = vsub.f32 %v499, %v589
    %v591 = vmul.f32 %v585, %v590
    %v592 = vadd.f32 %v589, %v591
    %593 = vmatpush.msra.mxu0 %v296
    %594 = vmatpush.msra.mxu0 %v295
    %595 = vmatpush.msra.mxu0 %v294
    %596 = vmatpush.msra.mxu0 %v293
    %597 = vmatpush.msra.mxu0 %v292
    %598 = vmatpush.msra.mxu0 %v291
    %599 = vmatpush.msra.mxu0 %v290
    %600 = vmatpush.msra.mxu0 %v289
    %601 = vmatpush.msra.mxu0 %v288
    %602 = vmatpush.msra.mxu0 %v287
    %603 = vmatpush.msra.mxu0 %v286
    %604 = vmatpush.msra.mxu0 %v285
    %605 = vmatpush.msra.mxu0 %v284
    %606 = vmatpush.msra.mxu0 %v283
    %607 = vmatpush.msra.mxu0 %v282
    %608 = vmatpush.msra.mxu0 %v281
    %609 = vmatmul.f32.gmra.mxu0 %v499
    %v610 = vpop.f32.mrf.mxu0
    %v611 = vadd.f32 %v188, %v610
    %612 = vdwg.mxu0
    %613 = vmatpush.msra.mxu0 %v333
    %614 = vmatpush.msra.mxu0 %v332
    %615 = vmatpush.msra.mxu0 %v331
    %616 = vmatpush.msra.mxu0 %v330
    %617 = vmatpush.msra.mxu0 %v329
    %618 = vmatpush.msra.mxu0 %v328
    %619 = vmatpush.msra.mxu0 %v327
    %620 = vmatpush.msra.mxu0 %v326
    %621 = vmatpush.msra.mxu0 %v325
    %622 = vmatpush.msra.mxu0 %v324
    %623 = vmatpush.msra.mxu0 %v323
    %624 = vmatpush.msra.mxu0 %v322
    %625 = vmatpush.msra.mxu0 %v321
    %626 = vmatpush.msra.mxu0 %v320
    %627 = vmatpush.msra.mxu0 %v319
    %628 = vmatpush.msra.mxu0 %v318
    %629 = vmatmul.f32.gmra.mxu0 %v555
    %v630 = vpop.f32.mrf.mxu0
    %v631 = vadd.f32 0.0, %v630
    %632 = vdwg.mxu0
    %v633 = vadd.f32 %v611, %v631
    %v634 = vmul.f32 %v633, 0.5
    %v635 = vtanh.pop %v634
    %v636 = vmul.f32 %v635, 0.5
    %v637 = vadd.f32 %v636, 0.5
    %638 = vrot.lane.b32.xlu0 %v637, 64
    %v639 = vpop.permute.xlu0 %638
    %640 = vrot.lane.b32.xlu0 %v637, 32
    %v641 = vpop.permute.xlu0 %640
    %v642 = vadd.f32 %v631, %v183
    %v643 = vmul.f32 %v639, %v642
    %v644 = vadd.f32 %v611, %v643
    %v645 = vtanh.pop %v644
    %v646 = vsub.f32 %v555, %v645
    %v647 = vmul.f32 %v641, %v646
    %v648 = vadd.f32 %v645, %v647
    %v649 = vld [vmem:[#allocation2 + $0x28] sm:$0xff]
    %650 = vmatpush.msra.mxu0 %v206
    %651 = vmatpush.msra.mxu0 %v205
    %652 = vmatpush.msra.mxu0 %v204
    %653 = vmatpush.msra.mxu0 %v203
    %654 = vmatpush.msra.mxu0 %v202
    %655 = vmatpush.msra.mxu0 %v201
    %656 = vmatpush.msra.mxu0 %v200
    %657 = vmatpush.msra.mxu0 %v199
    %658 = vmatpush.msra.mxu0 %v198
    %659 = vmatpush.msra.mxu0 %v197
    %660 = vmatpush.msra.mxu0 %v196
    %661 = vmatpush.msra.mxu0 %v195
    %662 = vmatpush.msra.mxu0 %v194
    %663 = vmatpush.msra.mxu0 %v193
    %664 = vmatpush.msra.mxu0 %v192
    %665 = vmatpush.msra.mxu0 %v191
    %666 = vmatmul.f32.gmra.mxu0 %v592
    %v667 = vpop.f32.mrf.mxu0
    %v668 = vadd.f32 0.0, %v667
    %669 = vdwg.mxu0
    %v670 = vadd.f32 %v649, %v668
    %v671 = vmul.f32 %v670, 0.5
    %v672 = vtanh.pop %v671
    %v673 = vmul.f32 %v672, 0.5
    %v674 = vadd.f32 %v673, 0.5
    %675 = vrot.lane.b32.xlu0 %v674, 64
    %v676 = vpop.permute.xlu0 %675
    %677 = vrot.lane.b32.xlu0 %v674, 32
    %v678 = vpop.permute.xlu0 %677
    %v679 = vadd.f32 %v668, %v178
    %v680 = vmul.f32 %v676, %v679
    %v681 = vadd.f32 %v649, %v680
    %v682 = vtanh.pop %v681
    %v683 = vsub.f32 %v592, %v682
    %v684 = vmul.f32 %v678, %v683
    %v685 = vadd.f32 %v682, %v684
    %686 = vmatpush.msra.mxu0 %v296
    %687 = vmatpush.msra.mxu0 %v295
    %688 = vmatpush.msra.mxu0 %v294
    %689 = vmatpush.msra.mxu0 %v293
    %690 = vmatpush.msra.mxu0 %v292
    %691 = vmatpush.msra.mxu0 %v291
    %692 = vmatpush.msra.mxu0 %v290
    %693 = vmatpush.msra.mxu0 %v289
    %694 = vmatpush.msra.mxu0 %v288
    %695 = vmatpush.msra.mxu0 %v287
    %696 = vmatpush.msra.mxu0 %v286
    %697 = vmatpush.msra.mxu0 %v285
    %698 = vmatpush.msra.mxu0 %v284
    %699 = vmatpush.msra.mxu0 %v283
    %700 = vmatpush.msra.mxu0 %v282
    %701 = vmatpush.msra.mxu0 %v281
    %702 = vmatmul.f32.gmra.mxu0 %v592
    %v703 = vpop.f32.mrf.mxu0
    %v704 = vadd.f32 %v188, %v703
    %705 = vdwg.mxu0
    %706 = vmatpush.msra.mxu0 %v333
    %707 = vmatpush.msra.mxu0 %v332
    %708 = vmatpush.msra.mxu0 %v331
    %709 = vmatpush.msra.mxu0 %v330
    %710 = vmatpush.msra.mxu0 %v329
    %711 = vmatpush.msra.mxu0 %v328
    %712 = vmatpush.msra.mxu0 %v327
    %713 = vmatpush.msra.mxu0 %v326
    %714 = vmatpush.msra.mxu0 %v325
    %715 = vmatpush.msra.mxu0 %v324
    %716 = vmatpush.msra.mxu0 %v323
    %717 = vmatpush.msra.mxu0 %v322
    %718 = vmatpush.msra.mxu0 %v321
    %719 = vmatpush.msra.mxu0 %v320
    %720 = vmatpush.msra.mxu0 %v319
    %721 = vmatpush.msra.mxu0 %v318
    %722 = vmatmul.f32.gmra.mxu0 %v648
    %v723 = vpop.f32.mrf.mxu0
    %v724 = vadd.f32 0.0, %v723
    %725 = vdwg.mxu0
    %v726 = vadd.f32 %v704, %v724
    %v727 = vmul.f32 %v726, 0.5
    %v728 = vtanh.pop %v727
    %v729 = vmul.f32 %v728, 0.5
    %v730 = vadd.f32 %v729, 0.5
    %731 = vrot.lane.b32.xlu0 %v730, 64
    %v732 = vpop.permute.xlu0 %731
    %733 = vrot.lane.b32.xlu0 %v730, 32
    %v734 = vpop.permute.xlu0 %733
    %v735 = vadd.f32 %v724, %v183
    %v736 = vmul.f32 %v732, %v735
    %v737 = vadd.f32 %v704, %v736
    %v738 = vtanh.pop %v737
    %v739 = vsub.f32 %v648, %v738
    %v740 = vmul.f32 %v734, %v739
    %v741 = vadd.f32 %v738, %v740
    %v742 = vld [vmem:[#allocation2 + $0x30] sm:$0xff]
    %743 = vmatpush.msra.mxu0 %v206
    %744 = vmatpush.msra.mxu0 %v205
    %745 = vmatpush.msra.mxu0 %v204
    %746 = vmatpush.msra.mxu0 %v203
    %747 = vmatpush.msra.mxu0 %v202
    %748 = vmatpush.msra.mxu0 %v201
    %749 = vmatpush.msra.mxu0 %v200
    %750 = vmatpush.msra.mxu0 %v199
    %751 = vmatpush.msra.mxu0 %v198
    %752 = vmatpush.msra.mxu0 %v197
    %753 = vmatpush.msra.mxu0 %v196
    %754 = vmatpush.msra.mxu0 %v195
    %755 = vmatpush.msra.mxu0 %v194
    %756 = vmatpush.msra.mxu0 %v193
    %757 = vmatpush.msra.mxu0 %v192
    %758 = vmatpush.msra.mxu0 %v191
    %759 = vmatmul.f32.gmra.mxu0 %v685
    %v760 = vpop.f32.mrf.mxu0
    %v761 = vadd.f32 0.0, %v760
    %762 = vdwg.mxu0
    %v763 = vadd.f32 %v742, %v761
    %v764 = vmul.f32 %v763, 0.5
    %v765 = vtanh.pop %v764
    %v766 = vmul.f32 %v765, 0.5
    %v767 = vadd.f32 %v766, 0.5
    %768 = vrot.lane.b32.xlu0 %v767, 64
    %v769 = vpop.permute.xlu0 %768
    %770 = vrot.lane.b32.xlu0 %v767, 32
    %v771 = vpop.permute.xlu0 %770
    %v772 = vadd.f32 %v761, %v178
    %v773 = vmul.f32 %v769, %v772
    %v774 = vadd.f32 %v742, %v773
    %v775 = vtanh.pop %v774
    %v776 = vsub.f32 %v685, %v775
    %v777 = vmul.f32 %v771, %v776
    %v778 = vadd.f32 %v775, %v777
    %779 = vmatpush.msra.mxu0 %v296
    %780 = vmatpush.msra.mxu0 %v295
    %781 = vmatpush.msra.mxu0 %v294
    %782 = vmatpush.msra.mxu0 %v293
    %783 = vmatpush.msra.mxu0 %v292
    %784 = vmatpush.msra.mxu0 %v291
    %785 = vmatpush.msra.mxu0 %v290
    %786 = vmatpush.msra.mxu0 %v289
    %787 = vmatpush.msra.mxu0 %v288
    %788 = vmatpush.msra.mxu0 %v287
    %789 = vmatpush.msra.mxu0 %v286
    %790 = vmatpush.msra.mxu0 %v285
    %791 = vmatpush.msra.mxu0 %v284
    %792 = vmatpush.msra.mxu0 %v283
    %793 = vmatpush.msra.mxu0 %v282
    %794 = vmatpush.msra.mxu0 %v281
    %795 = vmatmul.f32.gmra.mxu0 %v685
    %v796 = vpop.f32.mrf.mxu0
    %v797 = vadd.f32 %v188, %v796
    %798 = vdwg.mxu0
    %799 = vmatpush.msra.mxu0 %v333
    %800 = vmatpush.msra.mxu0 %v332
    %801 = vmatpush.msra.mxu0 %v331
    %802 = vmatpush.msra.mxu0 %v330
    %803 = vmatpush.msra.mxu0 %v329
    %804 = vmatpush.msra.mxu0 %v328
    %805 = vmatpush.msra.mxu0 %v327
    %806 = vmatpush.msra.mxu0 %v326
    %807 = vmatpush.msra.mxu0 %v325
    %808 = vmatpush.msra.mxu0 %v324
    %809 = vmatpush.msra.mxu0 %v323
    %810 = vmatpush.msra.mxu0 %v322
    %811 = vmatpush.msra.mxu0 %v321
    %812 = vmatpush.msra.mxu0 %v320
    %813 = vmatpush.msra.mxu0 %v319
    %814 = vmatpush.msra.mxu0 %v318
    %815 = vmatmul.f32.gmra.mxu0 %v741
    %v816 = vpop.f32.mrf.mxu0
    %v817 = vadd.f32 0.0, %v816
    %818 = vdwg.mxu0
    %v819 = vadd.f32 %v797, %v817
    %v820 = vmul.f32 %v819, 0.5
    %v821 = vtanh.pop %v820
    %v822 = vmul.f32 %v821, 0.5
    %v823 = vadd.f32 %v822, 0.5
    %824 = vrot.lane.b32.xlu0 %v823, 64
    %v825 = vpop.permute.xlu0 %824
    %826 = vrot.lane.b32.xlu0 %v823, 32
    %v827 = vpop.permute.xlu0 %826
    %v828 = vadd.f32 %v817, %v183
    %v829 = vmul.f32 %v825, %v828
    %v830 = vadd.f32 %v797, %v829
    %v831 = vtanh.pop %v830
    %v832 = vsub.f32 %v741, %v831
    %v833 = vmul.f32 %v827, %v832
    %v834 = vadd.f32 %v831, %v833
    %v835 = vld [vmem:[#allocation2 + $0x38] sm:$0xff]
    %836 = vmatpush.msra.mxu0 %v206
    %837 = vmatpush.msra.mxu0 %v205
    %838 = vmatpush.msra.mxu0 %v204
    %839 = vmatpush.msra.mxu0 %v203
    %840 = vmatpush.msra.mxu0 %v202
    %841 = vmatpush.msra.mxu0 %v201
    %842 = vmatpush.msra.mxu0 %v200
    %843 = vmatpush.msra.mxu0 %v199
    %844 = vmatpush.msra.mxu0 %v198
    %845 = vmatpush.msra.mxu0 %v197
    %846 = vmatpush.msra.mxu0 %v196
    %847 = vmatpush.msra.mxu0 %v195
    %848 = vmatpush.msra.mxu0 %v194
    %849 = vmatpush.msra.mxu0 %v193
    %850 = vmatpush.msra.mxu0 %v192
    %851 = vmatpush.msra.mxu0 %v191
    %852 = vmatmul.f32.gmra.mxu0 %v778
    %v853 = vpop.f32.mrf.mxu0
    %v854 = vadd.f32 0.0, %v853
    %855 = vdwg.mxu0
    %v856 = vadd.f32 %v835, %v854
    %v857 = vmul.f32 %v856, 0.5
    %v858 = vtanh.pop %v857
    %v859 = vmul.f32 %v858, 0.5
    %v860 = vadd.f32 %v859, 0.5
    %861 = vrot.lane.b32.xlu0 %v860, 64
    %v862 = vpop.permute.xlu0 %861
    %863 = vrot.lane.b32.xlu0 %v860, 32
    %v864 = vpop.permute.xlu0 %863
    %v865 = vadd.f32 %v854, %v178
    %v866 = vmul.f32 %v862, %v865
    %v867 = vadd.f32 %v835, %v866
    %v868 = vtanh.pop %v867
    %v869 = vsub.f32 %v778, %v868
    %v870 = vmul.f32 %v864, %v869
    %v871 = vadd.f32 %v868, %v870
    %872 = vmatpush.msra.mxu0 %v296
    %873 = vmatpush.msra.mxu0 %v295
    %874 = vmatpush.msra.mxu0 %v294
    %875 = vmatpush.msra.mxu0 %v293
    %876 = vmatpush.msra.mxu0 %v292
    %877 = vmatpush.msra.mxu0 %v291
    %878 = vmatpush.msra.mxu0 %v290
    %879 = vmatpush.msra.mxu0 %v289
    %880 = vmatpush.msra.mxu0 %v288
    %881 = vmatpush.msra.mxu0 %v287
    %882 = vmatpush.msra.mxu0 %v286
    %883 = vmatpush.msra.mxu0 %v285
    %884 = vmatpush.msra.mxu0 %v284
    %885 = vmatpush.msra.mxu0 %v283
    %886 = vmatpush.msra.mxu0 %v282
    %887 = vmatpush.msra.mxu0 %v281
    %888 = vmatmul.f32.gmra.mxu0 %v778
    %v889 = vpop.f32.mrf.mxu0
    %v890 = vadd.f32 %v188, %v889
    %891 = vdwg.mxu0
    %892 = vmatpush.msra.mxu0 %v333
    %893 = vmatpush.msra.mxu0 %v332
    %894 = vmatpush.msra.mxu0 %v331
    %895 = vmatpush.msra.mxu0 %v330
    %896 = vmatpush.msra.mxu0 %v329
    %897 = vmatpush.msra.mxu0 %v328
    %898 = vmatpush.msra.mxu0 %v327
    %899 = vmatpush.msra.mxu0 %v326
    %900 = vmatpush.msra.mxu0 %v325
    %901 = vmatpush.msra.mxu0 %v324
    %902 = vmatpush.msra.mxu0 %v323
    %903 = vmatpush.msra.mxu0 %v322
    %904 = vmatpush.msra.mxu0 %v321
    %905 = vmatpush.msra.mxu0 %v320
    %906 = vmatpush.msra.mxu0 %v319
    %907 = vmatpush.msra.mxu0 %v318
    %908 = vmatmul.f32.gmra.mxu0 %v834
    %v909 = vpop.f32.mrf.mxu0
    %v910 = vadd.f32 0.0, %v909
    %911 = vdwg.mxu0
    %v912 = vadd.f32 %v890, %v910
    %v913 = vmul.f32 %v912, 0.5
    %v914 = vtanh.pop %v913
    %v915 = vmul.f32 %v914, 0.5
    %v916 = vadd.f32 %v915, 0.5
    %917 = vrot.lane.b32.xlu0 %v916, 64
    %v918 = vpop.permute.xlu0 %917
    %919 = vrot.lane.b32.xlu0 %v916, 32
    %v920 = vpop.permute.xlu0 %919
    %v921 = vadd.f32 %v910, %v183
    %v922 = vmul.f32 %v918, %v921
    %v923 = vadd.f32 %v890, %v922
    %v924 = vtanh.pop %v923
    %v925 = vsub.f32 %v834, %v924
    %v926 = vmul.f32 %v920, %v925
    %v927 = vadd.f32 %v924, %v926
    %v928 = vld [vmem:[#allocation2 + $0x40] sm:$0xff]
    %929 = vmatpush.msra.mxu0 %v206
    %930 = vmatpush.msra.mxu0 %v205
    %931 = vmatpush.msra.mxu0 %v204
    %932 = vmatpush.msra.mxu0 %v203
    %933 = vmatpush.msra.mxu0 %v202
    %934 = vmatpush.msra.mxu0 %v201
    %935 = vmatpush.msra.mxu0 %v200
    %936 = vmatpush.msra.mxu0 %v199
    %937 = vmatpush.msra.mxu0 %v198
    %938 = vmatpush.msra.mxu0 %v197
    %939 = vmatpush.msra.mxu0 %v196
    %940 = vmatpush.msra.mxu0 %v195
    %941 = vmatpush.msra.mxu0 %v194
    %942 = vmatpush.msra.mxu0 %v193
    %943 = vmatpush.msra.mxu0 %v192
    %944 = vmatpush.msra.mxu0 %v191
    %945 = vmatmul.f32.gmra.mxu0 %v871
    %v946 = vpop.f32.mrf.mxu0
    %v947 = vadd.f32 0.0, %v946
    %948 = vdwg.mxu0
    %v949 = vadd.f32 %v928, %v947
    %v950 = vmul.f32 %v949, 0.5
    %v951 = vtanh.pop %v950
    %v952 = vmul.f32 %v951, 0.5
    %v953 = vadd.f32 %v952, 0.5
    %954 = vrot.lane.b32.xlu0 %v953, 64
    %v955 = vpop.permute.xlu0 %954
    %956 = vrot.lane.b32.xlu0 %v953, 32
    %v957 = vpop.permute.xlu0 %956
    %v958 = vadd.f32 %v947, %v178
    %v959 = vmul.f32 %v955, %v958
    %v960 = vadd.f32 %v928, %v959
    %v961 = vtanh.pop %v960
    %v962 = vsub.f32 %v871, %v961
    %v963 = vmul.f32 %v957, %v962
    %v964 = vadd.f32 %v961, %v963
    %965 = vmatpush.msra.mxu0 %v296
    %966 = vmatpush.msra.mxu0 %v295
    %967 = vmatpush.msra.mxu0 %v294
    %968 = vmatpush.msra.mxu0 %v293
    %969 = vmatpush.msra.mxu0 %v292
    %970 = vmatpush.msra.mxu0 %v291
    %971 = vmatpush.msra.mxu0 %v290
    %972 = vmatpush.msra.mxu0 %v289
    %973 = vmatpush.msra.mxu0 %v288
    %974 = vmatpush.msra.mxu0 %v287
    %975 = vmatpush.msra.mxu0 %v286
    %976 = vmatpush.msra.mxu0 %v285
    %977 = vmatpush.msra.mxu0 %v284
    %978 = vmatpush.msra.mxu0 %v283
    %979 = vmatpush.msra.mxu0 %v282
    %980 = vmatpush.msra.mxu0 %v281
    %981 = vmatmul.f32.gmra.mxu0 %v871
    %v982 = vpop.f32.mrf.mxu0
    %v983 = vadd.f32 %v188, %v982
    %984 = vdwg.mxu0
    %985 = vmatpush.msra.mxu0 %v333
    %986 = vmatpush.msra.mxu0 %v332
    %987 = vmatpush.msra.mxu0 %v331
    %988 = vmatpush.msra.mxu0 %v330
    %989 = vmatpush.msra.mxu0 %v329
    %990 = vmatpush.msra.mxu0 %v328
    %991 = vmatpush.msra.mxu0 %v327
    %992 = vmatpush.msra.mxu0 %v326
    %993 = vmatpush.msra.mxu0 %v325
    %994 = vmatpush.msra.mxu0 %v324
    %995 = vmatpush.msra.mxu0 %v323
    %996 = vmatpush.msra.mxu0 %v322
    %997 = vmatpush.msra.mxu0 %v321
    %998 = vmatpush.msra.mxu0 %v320
    %999 = vmatpush.msra.mxu0 %v319
    %1000 = vmatpush.msra.mxu0 %v318
    %1001 = vmatmul.f32.gmra.mxu0 %v927
    %v1002 = vpop.f32.mrf.mxu0
    %v1003 = vadd.f32 0.0, %v1002
    %1004 = vdwg.mxu0
    %v1005 = vadd.f32 %v983, %v1003
    %v1006 = vmul.f32 %v1005, 0.5
    %v1007 = vtanh.pop %v1006
    %v1008 = vmul.f32 %v1007, 0.5
    %v1009 = vadd.f32 %v1008, 0.5
    %1010 = vrot.lane.b32.xlu0 %v1009, 64
    %v1011 = vpop.permute.xlu0 %1010
    %1012 = vrot.lane.b32.xlu0 %v1009, 32
    %v1013 = vpop.permute.xlu0 %1012
    %v1014 = vadd.f32 %v1003, %v183
    %v1015 = vmul.f32 %v1011, %v1014
    %v1016 = vadd.f32 %v983, %v1015
    %v1017 = vtanh.pop %v1016
    %v1018 = vsub.f32 %v927, %v1017
    %v1019 = vmul.f32 %v1013, %v1018
    %v1020 = vadd.f32 %v1017, %v1019
    %v1021 = vld [vmem:[#allocation2 + $0x48] sm:$0xff]
    %1022 = vmatpush.msra.mxu0 %v206
    %1023 = vmatpush.msra.mxu0 %v205
    %1024 = vmatpush.msra.mxu0 %v204
    %1025 = vmatpush.msra.mxu0 %v203
    %1026 = vmatpush.msra.mxu0 %v202
    %1027 = vmatpush.msra.mxu0 %v201
    %1028 = vmatpush.msra.mxu0 %v200
    %1029 = vmatpush.msra.mxu0 %v199
    %1030 = vmatpush.msra.mxu0 %v198
    %1031 = vmatpush.msra.mxu0 %v197
    %1032 = vmatpush.msra.mxu0 %v196
    %1033 = vmatpush.msra.mxu0 %v195
    %1034 = vmatpush.msra.mxu0 %v194
    %1035 = vmatpush.msra.mxu0 %v193
    %1036 = vmatpush.msra.mxu0 %v192
    %1037 = vmatpush.msra.mxu0 %v191
    %1038 = vmatmul.f32.gmra.mxu0 %v964
    %v1039 = vpop.f32.mrf.mxu0
    %v1040 = vadd.f32 0.0, %v1039
    %1041 = vdwg.mxu0
    %v1042 = vadd.f32 %v1021, %v1040
    %v1043 = vmul.f32 %v1042, 0.5
    %v1044 = vtanh.pop %v1043
    %v1045 = vmul.f32 %v1044, 0.5
    %v1046 = vadd.f32 %v1045, 0.5
    %1047 = vrot.lane.b32.xlu0 %v1046, 64
    %v1048 = vpop.permute.xlu0 %1047
    %1049 = vrot.lane.b32.xlu0 %v1046, 32
    %v1050 = vpop.permute.xlu0 %1049
    %v1051 = vadd.f32 %v1040, %v178
    %v1052 = vmul.f32 %v1048, %v1051
    %v1053 = vadd.f32 %v1021, %v1052
    %v1054 = vtanh.pop %v1053
    %v1055 = vsub.f32 %v964, %v1054
    %v1056 = vmul.f32 %v1050, %v1055
    %v1057 = vadd.f32 %v1054, %v1056
    %1058 = vmatpush.msra.mxu0 %v296
    %1059 = vmatpush.msra.mxu0 %v295
    %1060 = vmatpush.msra.mxu0 %v294
    %1061 = vmatpush.msra.mxu0 %v293
    %1062 = vmatpush.msra.mxu0 %v292
    %1063 = vmatpush.msra.mxu0 %v291
    %1064 = vmatpush.msra.mxu0 %v290
    %1065 = vmatpush.msra.mxu0 %v289
    %1066 = vmatpush.msra.mxu0 %v288
    %1067 = vmatpush.msra.mxu0 %v287
    %1068 = vmatpush.msra.mxu0 %v286
    %1069 = vmatpush.msra.mxu0 %v285
    %1070 = vmatpush.msra.mxu0 %v284
    %1071 = vmatpush.msra.mxu0 %v283
    %1072 = vmatpush.msra.mxu0 %v282
    %1073 = vmatpush.msra.mxu0 %v281
    %1074 = vmatmul.f32.gmra.mxu0 %v964
    %v1075 = vpop.f32.mrf.mxu0
    %v1076 = vadd.f32 %v188, %v1075
    %1077 = vdwg.mxu0
    %1078 = vmatpush.msra.mxu0 %v333
    %1079 = vmatpush.msra.mxu0 %v332
    %1080 = vmatpush.msra.mxu0 %v331
    %1081 = vmatpush.msra.mxu0 %v330
    %1082 = vmatpush.msra.mxu0 %v329
    %1083 = vmatpush.msra.mxu0 %v328
    %1084 = vmatpush.msra.mxu0 %v327
    %1085 = vmatpush.msra.mxu0 %v326
    %1086 = vmatpush.msra.mxu0 %v325
    %1087 = vmatpush.msra.mxu0 %v324
    %1088 = vmatpush.msra.mxu0 %v323
    %1089 = vmatpush.msra.mxu0 %v322
    %1090 = vmatpush.msra.mxu0 %v321
    %1091 = vmatpush.msra.mxu0 %v320
    %1092 = vmatpush.msra.mxu0 %v319
    %1093 = vmatpush.msra.mxu0 %v318
    %1094 = vmatmul.f32.gmra.mxu0 %v1020
    %v1095 = vpop.f32.mrf.mxu0
    %v1096 = vadd.f32 0.0, %v1095
    %1097 = vdwg.mxu0
    %v1098 = vadd.f32 %v1076, %v1096
    %v1099 = vmul.f32 %v1098, 0.5
    %v1100 = vtanh.pop %v1099
    %v1101 = vmul.f32 %v1100, 0.5
    %v1102 = vadd.f32 %v1101, 0.5
    %1103 = vrot.lane.b32.xlu0 %v1102, 64
    %v1104 = vpop.permute.xlu0 %1103
    %1105 = vrot.lane.b32.xlu0 %v1102, 32
    %v1106 = vpop.permute.xlu0 %1105
    %v1107 = vadd.f32 %v1096, %v183
    %v1108 = vmul.f32 %v1104, %v1107
    %v1109 = vadd.f32 %v1076, %v1108
    %v1110 = vtanh.pop %v1109
    %v1111 = vsub.f32 %v1020, %v1110
    %v1112 = vmul.f32 %v1106, %v1111
    %v1113 = vadd.f32 %v1110, %v1112
    %v1114 = vld [vmem:[#allocation2 + $0x50] sm:$0xff]
    %1115 = vmatpush.msra.mxu0 %v206
    %1116 = vmatpush.msra.mxu0 %v205
    %1117 = vmatpush.msra.mxu0 %v204
    %1118 = vmatpush.msra.mxu0 %v203
    %1119 = vmatpush.msra.mxu0 %v202
    %1120 = vmatpush.msra.mxu0 %v201
    %1121 = vmatpush.msra.mxu0 %v200
    %1122 = vmatpush.msra.mxu0 %v199
    %1123 = vmatpush.msra.mxu0 %v198
    %1124 = vmatpush.msra.mxu0 %v197
    %1125 = vmatpush.msra.mxu0 %v196
    %1126 = vmatpush.msra.mxu0 %v195
    %1127 = vmatpush.msra.mxu0 %v194
    %1128 = vmatpush.msra.mxu0 %v193
    %1129 = vmatpush.msra.mxu0 %v192
    %1130 = vmatpush.msra.mxu0 %v191
    %1131 = vmatmul.f32.gmra.mxu0 %v1057
    %v1132 = vpop.f32.mrf.mxu0
    %v1133 = vadd.f32 0.0, %v1132
    %1134 = vdwg.mxu0
    %v1135 = vadd.f32 %v1114, %v1133
    %v1136 = vmul.f32 %v1135, 0.5
    %v1137 = vtanh.pop %v1136
    %v1138 = vmul.f32 %v1137, 0.5
    %v1139 = vadd.f32 %v1138, 0.5
    %1140 = vrot.lane.b32.xlu0 %v1139, 64
    %v1141 = vpop.permute.xlu0 %1140
    %1142 = vrot.lane.b32.xlu0 %v1139, 32
    %v1143 = vpop.permute.xlu0 %1142
    %v1144 = vadd.f32 %v1133, %v178
    %v1145 = vmul.f32 %v1141, %v1144
    %v1146 = vadd.f32 %v1114, %v1145
    %v1147 = vtanh.pop %v1146
    %v1148 = vsub.f32 %v1057, %v1147
    %v1149 = vmul.f32 %v1143, %v1148
    %v1150 = vadd.f32 %v1147, %v1149
    %1151 = vmatpush.msra.mxu0 %v296
    %1152 = vmatpush.msra.mxu0 %v295
    %1153 = vmatpush.msra.mxu0 %v294
    %1154 = vmatpush.msra.mxu0 %v293
    %1155 = vmatpush.msra.mxu0 %v292
    %1156 = vmatpush.msra.mxu0 %v291
    %1157 = vmatpush.msra.mxu0 %v290
    %1158 = vmatpush.msra.mxu0 %v289
    %1159 = vmatpush.msra.mxu0 %v288
    %1160 = vmatpush.msra.mxu0 %v287
    %1161 = vmatpush.msra.mxu0 %v286
    %1162 = vmatpush.msra.mxu0 %v285
    %1163 = vmatpush.msra.mxu0 %v284
    %1164 = vmatpush.msra.mxu0 %v283
    %1165 = vmatpush.msra.mxu0 %v282
    %1166 = vmatpush.msra.mxu0 %v281
    %1167 = vmatmul.f32.gmra.mxu0 %v1057
    %v1168 = vpop.f32.mrf.mxu0
    %v1169 = vadd.f32 %v188, %v1168
    %1170 = vdwg.mxu0
    %1171 = vmatpush.msra.mxu0 %v333
    %1172 = vmatpush.msra.mxu0 %v332
    %1173 = vmatpush.msra.mxu0 %v331
    %1174 = vmatpush.msra.mxu0 %v330
    %1175 = vmatpush.msra.mxu0 %v329
    %1176 = vmatpush.msra.mxu0 %v328
    %1177 = vmatpush.msra.mxu0 %v327
    %1178 = vmatpush.msra.mxu0 %v326
    %1179 = vmatpush.msra.mxu0 %v325
    %1180 = vmatpush.msra.mxu0 %v324
    %1181 = vmatpush.msra.mxu0 %v323
    %1182 = vmatpush.msra.mxu0 %v322
    %1183 = vmatpush.msra.mxu0 %v321
    %1184 = vmatpush.msra.mxu0 %v320
    %1185 = vmatpush.msra.mxu0 %v319
    %1186 = vmatpush.msra.mxu0 %v318
    %1187 = vmatmul.f32.gmra.mxu0 %v1113
    %v1188 = vpop.f32.mrf.mxu0
    %v1189 = vadd.f32 0.0, %v1188
    %1190 = vdwg.mxu0
    %v1191 = vadd.f32 %v1169, %v1189
    %v1192 = vmul.f32 %v1191, 0.5
    %v1193 = vtanh.pop %v1192
    %v1194 = vmul.f32 %v1193, 0.5
    %v1195 = vadd.f32 %v1194, 0.5
    %1196 = vrot.lane.b32.xlu0 %v1195, 64
    %v1197 = vpop.permute.xlu0 %1196
    %1198 = vrot.lane.b32.xlu0 %v1195, 32
    %v1199 = vpop.permute.xlu0 %1198
    %v1200 = vadd.f32 %v1189, %v183
    %v1201 = vmul.f32 %v1197, %v1200
    %v1202 = vadd.f32 %v1169, %v1201
    %v1203 = vtanh.pop %v1202
    %v1204 = vsub.f32 %v1113, %v1203
    %v1205 = vmul.f32 %v1199, %v1204
    %v1206 = vadd.f32 %v1203, %v1205
    %v1207 = vld [vmem:[#allocation2 + $0x58] sm:$0xff]
    %1208 = vmatpush.msra.mxu0 %v206
    %1209 = vmatpush.msra.mxu0 %v205
    %1210 = vmatpush.msra.mxu0 %v204
    %1211 = vmatpush.msra.mxu0 %v203
    %1212 = vmatpush.msra.mxu0 %v202
    %1213 = vmatpush.msra.mxu0 %v201
    %1214 = vmatpush.msra.mxu0 %v200
    %1215 = vmatpush.msra.mxu0 %v199
    %1216 = vmatpush.msra.mxu0 %v198
    %1217 = vmatpush.msra.mxu0 %v197
    %1218 = vmatpush.msra.mxu0 %v196
    %1219 = vmatpush.msra.mxu0 %v195
    %1220 = vmatpush.msra.mxu0 %v194
    %1221 = vmatpush.msra.mxu0 %v193
    %1222 = vmatpush.msra.mxu0 %v192
    %1223 = vmatpush.msra.mxu0 %v191
    %1224 = vmatmul.f32.gmra.mxu0 %v1150
    %v1225 = vpop.f32.mrf.mxu0
    %v1226 = vadd.f32 0.0, %v1225
    %1227 = vdwg.mxu0
    %v1228 = vadd.f32 %v1207, %v1226
    %v1229 = vmul.f32 %v1228, 0.5
    %v1230 = vtanh.pop %v1229
    %v1231 = vmul.f32 %v1230, 0.5
    %v1232 = vadd.f32 %v1231, 0.5
    %1233 = vrot.lane.b32.xlu0 %v1232, 64
    %v1234 = vpop.permute.xlu0 %1233
    %1235 = vrot.lane.b32.xlu0 %v1232, 32
    %v1236 = vpop.permute.xlu0 %1235
    %v1237 = vadd.f32 %v1226, %v178
    %v1238 = vmul.f32 %v1234, %v1237
    %v1239 = vadd.f32 %v1207, %v1238
    %v1240 = vtanh.pop %v1239
    %v1241 = vsub.f32 %v1150, %v1240
    %v1242 = vmul.f32 %v1236, %v1241
    %v1243 = vadd.f32 %v1240, %v1242
    %1244 = vmatpush.msra.mxu0 %v296
    %1245 = vmatpush.msra.mxu0 %v295
    %1246 = vmatpush.msra.mxu0 %v294
    %1247 = vmatpush.msra.mxu0 %v293
    %1248 = vmatpush.msra.mxu0 %v292
    %1249 = vmatpush.msra.mxu0 %v291
    %1250 = vmatpush.msra.mxu0 %v290
    %1251 = vmatpush.msra.mxu0 %v289
    %1252 = vmatpush.msra.mxu0 %v288
    %1253 = vmatpush.msra.mxu0 %v287
    %1254 = vmatpush.msra.mxu0 %v286
    %1255 = vmatpush.msra.mxu0 %v285
    %1256 = vmatpush.msra.mxu0 %v284
    %1257 = vmatpush.msra.mxu0 %v283
    %1258 = vmatpush.msra.mxu0 %v282
    %1259 = vmatpush.msra.mxu0 %v281
    %1260 = vmatmul.f32.gmra.mxu0 %v1150
    %v1261 = vpop.f32.mrf.mxu0
    %v1262 = vadd.f32 %v188, %v1261
    %1263 = vdwg.mxu0
    %1264 = vmatpush.msra.mxu0 %v333
    %1265 = vmatpush.msra.mxu0 %v332
    %1266 = vmatpush.msra.mxu0 %v331
    %1267 = vmatpush.msra.mxu0 %v330
    %1268 = vmatpush.msra.mxu0 %v329
    %1269 = vmatpush.msra.mxu0 %v328
    %1270 = vmatpush.msra.mxu0 %v327
    %1271 = vmatpush.msra.mxu0 %v326
    %1272 = vmatpush.msra.mxu0 %v325
    %1273 = vmatpush.msra.mxu0 %v324
    %1274 = vmatpush.msra.mxu0 %v323
    %1275 = vmatpush.msra.mxu0 %v322
    %1276 = vmatpush.msra.mxu0 %v321
    %1277 = vmatpush.msra.mxu0 %v320
    %1278 = vmatpush.msra.mxu0 %v319
    %1279 = vmatpush.msra.mxu0 %v318
    %1280 = vmatmul.f32.gmra.mxu0 %v1206
    %v1281 = vpop.f32.mrf.mxu0
    %v1282 = vadd.f32 0.0, %v1281
    %1283 = vdwg.mxu0
    %v1284 = vadd.f32 %v1262, %v1282
    %v1285 = vmul.f32 %v1284, 0.5
    %v1286 = vtanh.pop %v1285
    %v1287 = vmul.f32 %v1286, 0.5
    %v1288 = vadd.f32 %v1287, 0.5
    %1289 = vrot.lane.b32.xlu0 %v1288, 64
    %v1290 = vpop.permute.xlu0 %1289
    %1291 = vrot.lane.b32.xlu0 %v1288, 32
    %v1292 = vpop.permute.xlu0 %1291
    %v1293 = vadd.f32 %v1282, %v183
    %v1294 = vmul.f32 %v1290, %v1293
    %v1295 = vadd.f32 %v1262, %v1294
    %v1296 = vtanh.pop %v1295
    %v1297 = vsub.f32 %v1206, %v1296
    %v1298 = vmul.f32 %v1292, %v1297
    %v1299 = vadd.f32 %v1296, %v1298
    %v1300 = vld [vmem:[#allocation2 + $0x60] sm:$0xff]
    %1301 = vmatpush.msra.mxu0 %v206
    %1302 = vmatpush.msra.mxu0 %v205
    %1303 = vmatpush.msra.mxu0 %v204
    %1304 = vmatpush.msra.mxu0 %v203
    %1305 = vmatpush.msra.mxu0 %v202
    %1306 = vmatpush.msra.mxu0 %v201
    %1307 = vmatpush.msra.mxu0 %v200
    %1308 = vmatpush.msra.mxu0 %v199
    %1309 = vmatpush.msra.mxu0 %v198
    %1310 = vmatpush.msra.mxu0 %v197
    %1311 = vmatpush.msra.mxu0 %v196
    %1312 = vmatpush.msra.mxu0 %v195
    %1313 = vmatpush.msra.mxu0 %v194
    %1314 = vmatpush.msra.mxu0 %v193
    %1315 = vmatpush.msra.mxu0 %v192
    %1316 = vmatpush.msra.mxu0 %v191
    %1317 = vmatmul.f32.gmra.mxu0 %v1243
    %v1318 = vpop.f32.mrf.mxu0
    %v1319 = vadd.f32 0.0, %v1318
    %1320 = vdwg.mxu0
    %v1321 = vadd.f32 %v1300, %v1319
    %v1322 = vmul.f32 %v1321, 0.5
    %v1323 = vtanh.pop %v1322
    %v1324 = vmul.f32 %v1323, 0.5
    %v1325 = vadd.f32 %v1324, 0.5
    %1326 = vrot.lane.b32.xlu0 %v1325, 64
    %v1327 = vpop.permute.xlu0 %1326
    %1328 = vrot.lane.b32.xlu0 %v1325, 32
    %v1329 = vpop.permute.xlu0 %1328
    %v1330 = vadd.f32 %v1319, %v178
    %v1331 = vmul.f32 %v1327, %v1330
    %v1332 = vadd.f32 %v1300, %v1331
    %v1333 = vtanh.pop %v1332
    %v1334 = vsub.f32 %v1243, %v1333
    %v1335 = vmul.f32 %v1329, %v1334
    %v1336 = vadd.f32 %v1333, %v1335
    %1337 = vmatpush.msra.mxu0 %v296
    %1338 = vmatpush.msra.mxu0 %v295
    %1339 = vmatpush.msra.mxu0 %v294
    %1340 = vmatpush.msra.mxu0 %v293
    %1341 = vmatpush.msra.mxu0 %v292
    %1342 = vmatpush.msra.mxu0 %v291
    %1343 = vmatpush.msra.mxu0 %v290
    %1344 = vmatpush.msra.mxu0 %v289
    %1345 = vmatpush.msra.mxu0 %v288
    %1346 = vmatpush.msra.mxu0 %v287
    %1347 = vmatpush.msra.mxu0 %v286
    %1348 = vmatpush.msra.mxu0 %v285
    %1349 = vmatpush.msra.mxu0 %v284
    %1350 = vmatpush.msra.mxu0 %v283
    %1351 = vmatpush.msra.mxu0 %v282
    %1352 = vmatpush.msra.mxu0 %v281
    %1353 = vmatmul.f32.gmra.mxu0 %v1243
    %v1354 = vpop.f32.mrf.mxu0
    %v1355 = vadd.f32 %v188, %v1354
    %1356 = vdwg.mxu0
    %1357 = vmatpush.msra.mxu0 %v333
    %1358 = vmatpush.msra.mxu0 %v332
    %1359 = vmatpush.msra.mxu0 %v331
    %1360 = vmatpush.msra.mxu0 %v330
    %1361 = vmatpush.msra.mxu0 %v329
    %1362 = vmatpush.msra.mxu0 %v328
    %1363 = vmatpush.msra.mxu0 %v327
    %1364 = vmatpush.msra.mxu0 %v326
    %1365 = vmatpush.msra.mxu0 %v325
    %1366 = vmatpush.msra.mxu0 %v324
    %1367 = vmatpush.msra.mxu0 %v323
    %1368 = vmatpush.msra.mxu0 %v322
    %1369 = vmatpush.msra.mxu0 %v321
    %1370 = vmatpush.msra.mxu0 %v320
    %1371 = vmatpush.msra.mxu0 %v319
    %1372 = vmatpush.msra.mxu0 %v318
    %1373 = vmatmul.f32.gmra.mxu0 %v1299
    %v1374 = vpop.f32.mrf.mxu0
    %v1375 = vadd.f32 0.0, %v1374
    %1376 = vdwg.mxu0
    %v1377 = vadd.f32 %v1355, %v1375
    %v1378 = vmul.f32 %v1377, 0.5
    %v1379 = vtanh.pop %v1378
    %v1380 = vmul.f32 %v1379, 0.5
    %v1381 = vadd.f32 %v1380, 0.5
    %1382 = vrot.lane.b32.xlu0 %v1381, 64
    %v1383 = vpop.permute.xlu0 %1382
    %1384 = vrot.lane.b32.xlu0 %v1381, 32
    %v1385 = vpop.permute.xlu0 %1384
    %v1386 = vadd.f32 %v1375, %v183
    %v1387 = vmul.f32 %v1383, %v1386
    %v1388 = vadd.f32 %v1355, %v1387
    %v1389 = vtanh.pop %v1388
    %v1390 = vsub.f32 %v1299, %v1389
    %v1391 = vmul.f32 %v1385, %v1390
    %v1392 = vadd.f32 %v1389, %v1391
    %v1393 = vld [vmem:[#allocation2 + $0x68] sm:$0xff]
    %1394 = vmatpush.msra.mxu0 %v206
    %1395 = vmatpush.msra.mxu0 %v205
    %1396 = vmatpush.msra.mxu0 %v204
    %1397 = vmatpush.msra.mxu0 %v203
    %1398 = vmatpush.msra.mxu0 %v202
    %1399 = vmatpush.msra.mxu0 %v201
    %1400 = vmatpush.msra.mxu0 %v200
    %1401 = vmatpush.msra.mxu0 %v199
    %1402 = vmatpush.msra.mxu0 %v198
    %1403 = vmatpush.msra.mxu0 %v197
    %1404 = vmatpush.msra.mxu0 %v196
    %1405 = vmatpush.msra.mxu0 %v195
    %1406 = vmatpush.msra.mxu0 %v194
    %1407 = vmatpush.msra.mxu0 %v193
    %1408 = vmatpush.msra.mxu0 %v192
    %1409 = vmatpush.msra.mxu0 %v191
    %1410 = vmatmul.f32.gmra.mxu0 %v1336
    %v1411 = vpop.f32.mrf.mxu0
    %v1412 = vadd.f32 0.0, %v1411
    %1413 = vdwg.mxu0
    %v1414 = vadd.f32 %v1393, %v1412
    %v1415 = vmul.f32 %v1414, 0.5
    %v1416 = vtanh.pop %v1415
    %v1417 = vmul.f32 %v1416, 0.5
    %v1418 = vadd.f32 %v1417, 0.5
    %1419 = vrot.lane.b32.xlu0 %v1418, 64
    %v1420 = vpop.permute.xlu0 %1419
    %1421 = vrot.lane.b32.xlu0 %v1418, 32
    %v1422 = vpop.permute.xlu0 %1421
    %v1423 = vadd.f32 %v1412, %v178
    %v1424 = vmul.f32 %v1420, %v1423
    %v1425 = vadd.f32 %v1393, %v1424
    %v1426 = vtanh.pop %v1425
    %v1427 = vsub.f32 %v1336, %v1426
    %v1428 = vmul.f32 %v1422, %v1427
    %v1429 = vadd.f32 %v1426, %v1428
    %1430 = vmatpush.msra.mxu0 %v296
    %1431 = vmatpush.msra.mxu0 %v295
    %1432 = vmatpush.msra.mxu0 %v294
    %1433 = vmatpush.msra.mxu0 %v293
    %1434 = vmatpush.msra.mxu0 %v292
    %1435 = vmatpush.msra.mxu0 %v291
    %1436 = vmatpush.msra.mxu0 %v290
    %1437 = vmatpush.msra.mxu0 %v289
    %1438 = vmatpush.msra.mxu0 %v288
    %1439 = vmatpush.msra.mxu0 %v287
    %1440 = vmatpush.msra.mxu0 %v286
    %1441 = vmatpush.msra.mxu0 %v285
    %1442 = vmatpush.msra.mxu0 %v284
    %1443 = vmatpush.msra.mxu0 %v283
    %1444 = vmatpush.msra.mxu0 %v282
    %1445 = vmatpush.msra.mxu0 %v281
    %1446 = vmatmul.f32.gmra.mxu0 %v1336
    %v1447 = vpop.f32.mrf.mxu0
    %v1448 = vadd.f32 %v188, %v1447
    %1449 = vdwg.mxu0
    %1450 = vmatpush.msra.mxu0 %v333
    %1451 = vmatpush.msra.mxu0 %v332
    %1452 = vmatpush.msra.mxu0 %v331
    %1453 = vmatpush.msra.mxu0 %v330
    %1454 = vmatpush.msra.mxu0 %v329
    %1455 = vmatpush.msra.mxu0 %v328
    %1456 = vmatpush.msra.mxu0 %v327
    %1457 = vmatpush.msra.mxu0 %v326
    %1458 = vmatpush.msra.mxu0 %v325
    %1459 = vmatpush.msra.mxu0 %v324
    %1460 = vmatpush.msra.mxu0 %v323
    %1461 = vmatpush.msra.mxu0 %v322
    %1462 = vmatpush.msra.mxu0 %v321
    %1463 = vmatpush.msra.mxu0 %v320
    %1464 = vmatpush.msra.mxu0 %v319
    %1465 = vmatpush.msra.mxu0 %v318
    %1466 = vmatmul.f32.gmra.mxu0 %v1392
    %v1467 = vpop.f32.mrf.mxu0
    %v1468 = vadd.f32 0.0, %v1467
    %1469 = vdwg.mxu0
    %v1470 = vadd.f32 %v1448, %v1468
    %v1471 = vmul.f32 %v1470, 0.5
    %v1472 = vtanh.pop %v1471
    %v1473 = vmul.f32 %v1472, 0.5
    %v1474 = vadd.f32 %v1473, 0.5
    %1475 = vrot.lane.b32.xlu0 %v1474, 64
    %v1476 = vpop.permute.xlu0 %1475
    %1477 = vrot.lane.b32.xlu0 %v1474, 32
    %v1478 = vpop.permute.xlu0 %1477
    %v1479 = vadd.f32 %v1468, %v183
    %v1480 = vmul.f32 %v1476, %v1479
    %v1481 = vadd.f32 %v1448, %v1480
    %v1482 = vtanh.pop %v1481
    %v1483 = vsub.f32 %v1392, %v1482
    %v1484 = vmul.f32 %v1478, %v1483
    %v1485 = vadd.f32 %v1482, %v1484
    %v1486 = vld [vmem:[#allocation2 + $0x70] sm:$0xff]
    %1487 = vmatpush.msra.mxu0 %v206
    %1488 = vmatpush.msra.mxu0 %v205
    %1489 = vmatpush.msra.mxu0 %v204
    %1490 = vmatpush.msra.mxu0 %v203
    %1491 = vmatpush.msra.mxu0 %v202
    %1492 = vmatpush.msra.mxu0 %v201
    %1493 = vmatpush.msra.mxu0 %v200
    %1494 = vmatpush.msra.mxu0 %v199
    %1495 = vmatpush.msra.mxu0 %v198
    %1496 = vmatpush.msra.mxu0 %v197
    %1497 = vmatpush.msra.mxu0 %v196
    %1498 = vmatpush.msra.mxu0 %v195
    %1499 = vmatpush.msra.mxu0 %v194
    %1500 = vmatpush.msra.mxu0 %v193
    %1501 = vmatpush.msra.mxu0 %v192
    %1502 = vmatpush.msra.mxu0 %v191
    %1503 = vmatmul.f32.gmra.mxu0 %v1429
    %v1504 = vpop.f32.mrf.mxu0
    %v1505 = vadd.f32 0.0, %v1504
    %1506 = vdwg.mxu0
    %v1507 = vadd.f32 %v1486, %v1505
    %v1508 = vmul.f32 %v1507, 0.5
    %v1509 = vtanh.pop %v1508
    %v1510 = vmul.f32 %v1509, 0.5
    %v1511 = vadd.f32 %v1510, 0.5
    %1512 = vrot.lane.b32.xlu0 %v1511, 64
    %v1513 = vpop.permute.xlu0 %1512
    %1514 = vrot.lane.b32.xlu0 %v1511, 32
    %v1515 = vpop.permute.xlu0 %1514
    %v1516 = vadd.f32 %v1505, %v178
    %v1517 = vmul.f32 %v1513, %v1516
    %v1518 = vadd.f32 %v1486, %v1517
    %v1519 = vtanh.pop %v1518
    %v1520 = vsub.f32 %v1429, %v1519
    %v1521 = vmul.f32 %v1515, %v1520
    %v1522 = vadd.f32 %v1519, %v1521
    %1523 = vmatpush.msra.mxu0 %v296
    %1524 = vmatpush.msra.mxu0 %v295
    %1525 = vmatpush.msra.mxu0 %v294
    %1526 = vmatpush.msra.mxu0 %v293
    %1527 = vmatpush.msra.mxu0 %v292
    %1528 = vmatpush.msra.mxu0 %v291
    %1529 = vmatpush.msra.mxu0 %v290
    %1530 = vmatpush.msra.mxu0 %v289
    %1531 = vmatpush.msra.mxu0 %v288
    %1532 = vmatpush.msra.mxu0 %v287
    %1533 = vmatpush.msra.mxu0 %v286
    %1534 = vmatpush.msra.mxu0 %v285
    %1535 = vmatpush.msra.mxu0 %v284
    %1536 = vmatpush.msra.mxu0 %v283
    %1537 = vmatpush.msra.mxu0 %v282
    %1538 = vmatpush.msra.mxu0 %v281
    %1539 = vmatmul.f32.gmra.mxu0 %v1429
    %v1540 = vpop.f32.mrf.mxu0
    %v1541 = vadd.f32 %v188, %v1540
    %1542 = vdwg.mxu0
    %1543 = vmatpush.msra.mxu0 %v333
    %1544 = vmatpush.msra.mxu0 %v332
    %1545 = vmatpush.msra.mxu0 %v331
    %1546 = vmatpush.msra.mxu0 %v330
    %1547 = vmatpush.msra.mxu0 %v329
    %1548 = vmatpush.msra.mxu0 %v328
    %1549 = vmatpush.msra.mxu0 %v327
    %1550 = vmatpush.msra.mxu0 %v326
    %1551 = vmatpush.msra.mxu0 %v325
    %1552 = vmatpush.msra.mxu0 %v324
    %1553 = vmatpush.msra.mxu0 %v323
    %1554 = vmatpush.msra.mxu0 %v322
    %1555 = vmatpush.msra.mxu0 %v321
    %1556 = vmatpush.msra.mxu0 %v320
    %1557 = vmatpush.msra.mxu0 %v319
    %1558 = vmatpush.msra.mxu0 %v318
    %1559 = vmatmul.f32.gmra.mxu0 %v1485
    %v1560 = vpop.f32.mrf.mxu0
    %v1561 = vadd.f32 0.0, %v1560
    %1562 = vdwg.mxu0
    %v1563 = vadd.f32 %v1541, %v1561
    %v1564 = vmul.f32 %v1563, 0.5
    %v1565 = vtanh.pop %v1564
    %v1566 = vmul.f32 %v1565, 0.5
    %v1567 = vadd.f32 %v1566, 0.5
    %1568 = vrot.lane.b32.xlu0 %v1567, 64
    %v1569 = vpop.permute.xlu0 %1568
    %1570 = vrot.lane.b32.xlu0 %v1567, 32
    %v1571 = vpop.permute.xlu0 %1570
    %v1572 = vadd.f32 %v1561, %v183
    %v1573 = vmul.f32 %v1569, %v1572
    %v1574 = vadd.f32 %v1541, %v1573
    %v1575 = vtanh.pop %v1574
    %v1576 = vsub.f32 %v1485, %v1575
    %v1577 = vmul.f32 %v1571, %v1576
    %v1578 = vadd.f32 %v1575, %v1577
    %v1579 = vld [vmem:[#allocation2 + $0x78] sm:$0xff]
    %1580 = vmatpush.msra.mxu0 %v206
    %1581 = vmatpush.msra.mxu0 %v205
    %1582 = vmatpush.msra.mxu0 %v204
    %1583 = vmatpush.msra.mxu0 %v203
    %1584 = vmatpush.msra.mxu0 %v202
    %1585 = vmatpush.msra.mxu0 %v201
    %1586 = vmatpush.msra.mxu0 %v200
    %1587 = vmatpush.msra.mxu0 %v199
    %1588 = vmatpush.msra.mxu0 %v198
    %1589 = vmatpush.msra.mxu0 %v197
    %1590 = vmatpush.msra.mxu0 %v196
    %1591 = vmatpush.msra.mxu0 %v195
    %1592 = vmatpush.msra.mxu0 %v194
    %1593 = vmatpush.msra.mxu0 %v193
    %1594 = vmatpush.msra.mxu0 %v192
    %1595 = vmatpush.msra.mxu0 %v191
    %1596 = vmatmul.f32.gmra.mxu0 %v1522
    %v1597 = vpop.f32.mrf.mxu0
    %v1598 = vadd.f32 0.0, %v1597
    %1599 = vdwg.mxu0
    %v1600 = vadd.f32 %v1579, %v1598
    %v1601 = vmul.f32 %v1600, 0.5
    %v1602 = vtanh.pop %v1601
    %v1603 = vmul.f32 %v1602, 0.5
    %v1604 = vadd.f32 %v1603, 0.5
    %1605 = vrot.lane.b32.xlu0 %v1604, 64
    %v1606 = vpop.permute.xlu0 %1605
    %1607 = vrot.lane.b32.xlu0 %v1604, 32
    %v1608 = vpop.permute.xlu0 %1607
    %v1609 = vadd.f32 %v1598, %v178
    %v1610 = vmul.f32 %v1606, %v1609
    %v1611 = vadd.f32 %v1579, %v1610
    %v1612 = vtanh.pop %v1611
    %v1613 = vsub.f32 %v1522, %v1612
    %v1614 = vmul.f32 %v1608, %v1613
    %v1615 = vadd.f32 %v1612, %v1614
    %1616 = vmatpush.msra.mxu0 %v296
    %1617 = vmatpush.msra.mxu0 %v295
    %1618 = vmatpush.msra.mxu0 %v294
    %1619 = vmatpush.msra.mxu0 %v293
    %1620 = vmatpush.msra.mxu0 %v292
    %1621 = vmatpush.msra.mxu0 %v291
    %1622 = vmatpush.msra.mxu0 %v290
    %1623 = vmatpush.msra.mxu0 %v289
    %1624 = vmatpush.msra.mxu0 %v288
    %1625 = vmatpush.msra.mxu0 %v287
    %1626 = vmatpush.msra.mxu0 %v286
    %1627 = vmatpush.msra.mxu0 %v285
    %1628 = vmatpush.msra.mxu0 %v284
    %1629 = vmatpush.msra.mxu0 %v283
    %1630 = vmatpush.msra.mxu0 %v282
    %1631 = vmatpush.msra.mxu0 %v281
    %1632 = vmatmul.f32.gmra.mxu0 %v1522
    %v1633 = vpop.f32.mrf.mxu0
    %v1634 = vadd.f32 %v188, %v1633
    %1635 = vdwg.mxu0
    %1636 = vmatpush.msra.mxu0 %v333
    %1637 = vmatpush.msra.mxu0 %v332
    %1638 = vmatpush.msra.mxu0 %v331
    %1639 = vmatpush.msra.mxu0 %v330
    %1640 = vmatpush.msra.mxu0 %v329
    %1641 = vmatpush.msra.mxu0 %v328
    %1642 = vmatpush.msra.mxu0 %v327
    %1643 = vmatpush.msra.mxu0 %v326
    %1644 = vmatpush.msra.mxu0 %v325
    %1645 = vmatpush.msra.mxu0 %v324
    %1646 = vmatpush.msra.mxu0 %v323
    %1647 = vmatpush.msra.mxu0 %v322
    %1648 = vmatpush.msra.mxu0 %v321
    %1649 = vmatpush.msra.mxu0 %v320
    %1650 = vmatpush.msra.mxu0 %v319
    %1651 = vmatpush.msra.mxu0 %v318
    %1652 = vmatmul.f32.gmra.mxu0 %v1578
    %v1653 = vpop.f32.mrf.mxu0
    %v1654 = vadd.f32 0.0, %v1653
    %1655 = vdwg.mxu0
    %v1656 = vadd.f32 %v1634, %v1654
    %v1657 = vmul.f32 %v1656, 0.5
    %v1658 = vtanh.pop %v1657
    %v1659 = vmul.f32 %v1658, 0.5
    %v1660 = vadd.f32 %v1659, 0.5
    %1661 = vrot.lane.b32.xlu0 %v1660, 64
    %v1662 = vpop.permute.xlu0 %1661
    %1663 = vrot.lane.b32.xlu0 %v1660, 32
    %v1664 = vpop.permute.xlu0 %1663
    %v1665 = vadd.f32 %v1654, %v183
    %v1666 = vmul.f32 %v1662, %v1665
    %v1667 = vadd.f32 %v1634, %v1666
    %v1668 = vtanh.pop %v1667
    %v1669 = vsub.f32 %v1578, %v1668
    %v1670 = vmul.f32 %v1664, %v1669
    %v1671 = vadd.f32 %v1668, %v1670
    %1672 = vmatpush.msra.mxu0 %v296
    %1673 = vmatpush.msra.mxu0 %v295
    %1674 = vmatpush.msra.mxu0 %v294
    %1675 = vmatpush.msra.mxu0 %v293
    %1676 = vmatpush.msra.mxu0 %v292
    %1677 = vmatpush.msra.mxu0 %v291
    %1678 = vmatpush.msra.mxu0 %v290
    %1679 = vmatpush.msra.mxu0 %v289
    %1680 = vmatpush.msra.mxu0 %v288
    %1681 = vmatpush.msra.mxu0 %v287
    %1682 = vmatpush.msra.mxu0 %v286
    %1683 = vmatpush.msra.mxu0 %v285
    %1684 = vmatpush.msra.mxu0 %v284
    %1685 = vmatpush.msra.mxu0 %v283
    %1686 = vmatpush.msra.mxu0 %v282
    %1687 = vmatpush.msra.mxu0 %v281
    %1688 = vmatmul.f32.gmra.mxu0 %v1615
    %v1689 = vpop.f32.mrf.mxu0
    %v1690 = vadd.f32 %v188, %v1689
    %1691 = vdwg.mxu0
    %1692 = vmatpush.msra.mxu0 %v333
    %1693 = vmatpush.msra.mxu0 %v332
    %1694 = vmatpush.msra.mxu0 %v331
    %1695 = vmatpush.msra.mxu0 %v330
    %1696 = vmatpush.msra.mxu0 %v329
    %1697 = vmatpush.msra.mxu0 %v328
    %1698 = vmatpush.msra.mxu0 %v327
    %1699 = vmatpush.msra.mxu0 %v326
    %1700 = vmatpush.msra.mxu0 %v325
    %1701 = vmatpush.msra.mxu0 %v324
    %1702 = vmatpush.msra.mxu0 %v323
    %1703 = vmatpush.msra.mxu0 %v322
    %1704 = vmatpush.msra.mxu0 %v321
    %1705 = vmatpush.msra.mxu0 %v320
    %1706 = vmatpush.msra.mxu0 %v319
    %1707 = vmatpush.msra.mxu0 %v318
    %1708 = vmatmul.f32.gmra.mxu0 %v1671
    %v1709 = vpop.f32.mrf.mxu0
    %v1710 = vadd.f32 0.0, %v1709
    %1711 = vdwg.mxu0
    %v1712 = vadd.f32 %v1690, %v1710
    %v1713 = vmul.f32 %v1712, 0.5
    %v1714 = vtanh.pop %v1713
    %v1715 = vmul.f32 %v1714, 0.5
    %v1716 = vadd.f32 %v1715, 0.5
    %1717 = vrot.lane.b32.xlu0 %v1716, 64
    %v1718 = vpop.permute.xlu0 %1717
    %1719 = vrot.lane.b32.xlu0 %v1716, 32
    %v1720 = vpop.permute.xlu0 %1719
    %v1721 = vadd.f32 %v1710, %v183
    %v1722 = vmul.f32 %v1718, %v1721
    %v1723 = vadd.f32 %v1690, %v1722
    %v1724 = vtanh.pop %v1723
    %v1725 = vsub.f32 %v1671, %v1724
    %v1726 = vmul.f32 %v1720, %v1725
    %v1727 = vadd.f32 %v1724, %v1726
    %v1728 = vld [vmem:[%s5] sm:$0xff]
    %v1729 = vld [vmem:[%s5 + $0x8] sm:$0xff]
    %v1730 = vld [vmem:[%s5 + $0x10] sm:$0xff]
    %v1731 = vld [vmem:[%s5 + $0x18] sm:$0xff]
    %v1732 = vld [vmem:[%s5 + $0x20] sm:$0xff]
    %v1733 = vld [vmem:[%s5 + $0x28] sm:$0xff]
    %v1734 = vld [vmem:[%s5 + $0x30] sm:$0xff]
    %v1735 = vld [vmem:[%s5 + $0x38] sm:$0xff]
    %v1736 = vld [vmem:[%s5 + $0x40] sm:$0xff]
    %v1737 = vld [vmem:[%s5 + $0x48] sm:$0xff]
    %v1738 = vld [vmem:[%s5 + $0x50] sm:$0xff]
    %v1739 = vld [vmem:[%s5 + $0x58] sm:$0xff]
    %v1740 = vld [vmem:[%s5 + $0x60] sm:$0xff]
    %v1741 = vld [vmem:[%s5 + $0x68] sm:$0xff]
    %v1742 = vld [vmem:[%s5 + $0x70] sm:$0xff]
    %v1743 = vld [vmem:[%s5 + $0x78] sm:$0xff]
    %v1744 = vld [vmem:[%s6] sm:$0x1]
    %v1746 = vperm.slane %v1744, 0
    %1748 = vmatpush.msra.mxu0 %v1743
    %1749 = vmatpush.msra.mxu0 %v1742
    %1750 = vmatpush.msra.mxu0 %v1741
    %1751 = vmatpush.msra.mxu0 %v1740
    %1752 = vmatpush.msra.mxu0 %v1739
    %1753 = vmatpush.msra.mxu0 %v1738
    %1754 = vmatpush.msra.mxu0 %v1737
    %1755 = vmatpush.msra.mxu0 %v1736
    %1756 = vmatpush.msra.mxu0 %v1735
    %1757 = vmatpush.msra.mxu0 %v1734
    %1758 = vmatpush.msra.mxu0 %v1733
    %1759 = vmatpush.msra.mxu0 %v1732
    %1760 = vmatpush.msra.mxu0 %v1731
    %1761 = vmatpush.msra.mxu0 %v1730
    %1762 = vmatpush.msra.mxu0 %v1729
    %1763 = vmatpush.msra.mxu0 %v1728
    %1764 = vmatmul.f32.gmra.mxu0 %v1727
    %v1765 = vpop.f32.mrf.mxu0
    %v1766 = vadd.f32 %v1746, %v1765
    %1767 = vdwg.mxu0
    %1768 = vst [vmem:[#allocation8] sm:$0xff] %v1766
    // Predicated region
    $region38: #{gru_forward.1} parent=1 // pred_check
      _
    $region39: #{gru_forward.1} parent=1 // pred_check_branch
      %1770 = sbr.rel (0) target = $region41
    $region40: #{gru_forward.1} parent=1 // pred_region
      %1772 = vsyncadd [#allocation5], 0
      %s1774 = sshll.u32 [#allocation8], 4
      %s1775 = int_to_ptr.vmem [resolvable:$true] %s1774
      %s1776 = sshll.u32 %s7, 4
      %s1777 = int_to_ptr.hbm [resolvable:$true] %s1776
      %1779 = dma.vmem_to_hbm [thread:$0]  %s1775, 128, %s1777, [#allocation5]
    $region41: #{gru_forward.1} parent=1 // pred_fallthru
      _
    // Predicated region
    $region42: #{gru_forward.1} parent=1 // pred_check
      _
    $region43: #{gru_forward.1} parent=1 // pred_check_branch
      %1781 = sbr.rel (0) target = $region45
    $region44: #{gru_forward.1} parent=1 // pred_region
      %1783 = dma.done [#allocation5], 128
    $region45: #{gru_forward.1} parent=1 // pred_fallthru
      _
    %1784 = vsyncpa [#allocation4], 1
    %1785 = vsyncpa [#allocation7], 1
    %1786 = vsyncpa [#allocation5], 1

</llo_original>
